<compile_context>
chip_gen: v5e
topology: v5e:2x2
jax: 0.10.0
libtpu: 0.0.40
codegen_flags: <defaults>
</compile_context>

<pallas_src>
import functools

import jax
import jax.numpy as jnp
from jax.experimental import pallas as pl
from jax.experimental.pallas import tpu as pltpu


# --------------------------------------------------------------------------
# Kernel
# --------------------------------------------------------------------------
def _vdc_kernel(
    cam_ref,     # (C, 3, 1) f32   camera positions
    l1b_ref,     # (C, W, 1) f32   per-camera layer-1 bias
    feat_ref,    # (F, T)    matmul dtype   (splats on lanes)
    means_ref,   # (3, T)    f32
    colors_ref,  # (3, T)    f32
    w1f_ref,     # (W, F)    matmul dtype
    w1s_ref,     # (W, 16)   matmul dtype   (bases 1..15; unused bases zeroed)
    w2_ref,      # (W, W)    matmul dtype
    b2_ref,      # (W, 1)    f32
    w3_ref,      # (3, W)    matmul dtype
    b3_ref,      # (3, 1)    f32
    out_ref,     # (C, 3, T) f32
    sh_ref,      # (16, T)   f32 scratch (SH basis rows, splats on lanes)
    *,
    num_cameras: int,
    cur_sh_degree: int,
):
    num_use = (cur_sh_degree + 1) ** 2
    k = num_use - 1                 # SH rows computed here (base 0 folded into l1 bias)
    T = sh_ref.shape[1]
    mm_dtype = w1f_ref.dtype

    feat = feat_ref[...]
    means = means_ref[...]
    colors = colors_ref[...]
    w1f = w1f_ref[...]
    w1s = w1s_ref[...]
    w2 = w2_ref[...]
    b2 = b2_ref[...]
    w3 = w3_ref[...]
    b3 = b3_ref[...]

    # Camera-independent work, hoisted out of the unrolled camera loop.
    h_feat = jnp.dot(w1f, feat, preferred_element_type=jnp.float32)     # (W, T)
    exp_neg_c = jnp.exp(-colors)                                        # (3, T)

    if 0 < k < 16:
        # Unused SH rows hit zero weight columns, but stale scratch could hold
        # NaN/Inf (NaN * 0 = NaN) -> zero them once per tile.
        sh_ref[k:, :] = jnp.zeros((16 - k, T), sh_ref.dtype)

    def put(row, val):              # store one (1, T) SH basis row into scratch
        sh_ref[row:row + 1, :] = val.astype(sh_ref.dtype)

    for c in range(num_cameras):    # C is small and static -> unrolled
        # ---- view directions at (3, T) density -----------------------------
        cam = cam_ref[c]                                        # (3, 1)
        d = means - cam                                         # (3, T)
        n2 = jnp.sum(d * d, axis=0, keepdims=True)              # (1, T) sublane reduce
        inv = jax.lax.rsqrt(jnp.maximum(n2, 1e-24))             # == 1 / max(|d|, 1e-12)
        dn = d * inv
        x = dn[0:1, :]
        y = dn[1:2, :]
        z = dn[2:3, :]

        # ---- layer 1: features + SH + per-camera bias -----------------------
        h = h_feat
        if k > 0:
            fA1 = -0.48860251190292
            put(0, fA1 * y)
            put(1, -fA1 * z)
            put(2, fA1 * x)
            if k > 3:
                z2 = z * z
                fB2 = -1.092548430592079 * z
                fA2 = 0.5462742152960395
                fC1 = x * x - y * y
                fS1 = 2.0 * x * y
                put(3, fA2 * fS1)
                put(4, fB2 * y)
                put(5, 0.9461746957575601 * z2 - 0.3153915652525201)
                put(6, fB2 * x)
                put(7, fA2 * fC1)
            if k > 8:
                fC3 = -2.285228997322329 * z2 + 0.4570457994644658
                fB3 = 1.445305721320277 * z
                fA3 = -0.5900435899266435
                fC2 = x * fC1 - y * fS1
                fS2 = x * fS1 + y * fC1
                put(8, fA3 * fS2)
                put(9, fB3 * fS1)
                put(10, fC3 * y)
                put(11, z * (1.865881662950577 * z2 - 1.119528997770346))
                put(12, fC3 * x)
                put(13, fB3 * fC1)
                put(14, fA3 * fC2)
            h = h + jnp.dot(w1s, sh_ref[...].astype(mm_dtype),
                            preferred_element_type=jnp.float32)

        h = jnp.maximum(h + l1b_ref[c], 0.0)                    # (W, T)

        # ---- layer 2 + head --------------------------------------------------
        h = jnp.maximum(
            jnp.dot(w2, h.astype(mm_dtype), preferred_element_type=jnp.float32) + b2,
            0.0,
        )
        adj = jnp.dot(w3, h.astype(mm_dtype), preferred_element_type=jnp.float32) + b3

        # ---- fused epilogue: sigmoid(colors + inverse_sigmoid(adj)) ---------
        a = jnp.clip(adj, 1e-07, 1.0 - 1e-07)
        out = a / (a + exp_neg_c * (1.0 - a))                   # (3, T) f32
        out_ref[c] = out.astype(out_ref.dtype)


# --------------------------------------------------------------------------
# Wrapper
# --------------------------------------------------------------------------
def view_dependent_color_mlp(
    params,
    features,      # (N, F) f32
    camera_ids,    # (C,) int32 or None
    means,         # (N, 3) f32
    colors,        # (N, 3) f32
    cam_2_world,   # (C, 4, 4) f32
    cur_sh_degree: int,
    *,
    tile_n: int = 2048,                # lane-dense splat tile (multiple of 256)
    matmul_dtype=jnp.bfloat16,         # operand dtype of the MXU matmuls
):
    C = cam_2_world.shape[0]
    N, F = features.shape
    E = params["embed_table"].shape[1]
    W = params["w2"].shape[0]
    num_use = (cur_sh_degree + 1) ** 2
    assert num_use <= 16, "kernel supports sh_degree <= 3"
    k = num_use - 1

    # ---- glue: embedding lookup + camera positions -------------------------
    if camera_ids is None:
        embeds = jnp.zeros((C, E), jnp.float32)
    else:
        embeds = params["embed_table"][camera_ids].astype(jnp.float32)
    cam_pos = cam_2_world[:, :3, 3].astype(jnp.float32).reshape(C, 3, 1)

    # ---- split W1 by input: [embed | features | sh_bases] ------------------
    w1 = params["w1"].astype(jnp.float32)                      # (E+F+16, W)
    w1e = w1[:E]
    w1f = w1[E:E + F]
    w1s = w1[E + F:]                                           # (num_bases, W)

    # Per-camera layer-1 bias: embeds @ W1e + b1 + SH0_const * W1s[0].
    SH0 = 0.2820947917738781
    l1_bias = embeds @ w1e + params["b1"][None, :] + SH0 * w1s[0][None, :]
    l1_bias = l1_bias.astype(jnp.float32).reshape(C, W, 1)

    # Transposed weights for the (W, T) activation layout.  Only the SH bases
    # actually used this call are kept; the rest is zero-padded to 16 columns
    # so the in-kernel SH operand is one full sublane tile.
    w1f_t = w1f.T.astype(matmul_dtype)                         # (W, F)
    w1s_used = w1s[1:num_use].T                                # (W, k)
    w1s_t = jnp.pad(w1s_used, ((0, 0), (0, 16 - k))).astype(matmul_dtype)  # (W, 16)
    w2_t = params["w2"].T.astype(matmul_dtype)                 # (W, W)
    w3_t = params["w3"].T.astype(matmul_dtype)                 # (3, W)
    b2 = params["b2"].astype(jnp.float32).reshape(W, 1)
    b3 = params["b3"].astype(jnp.float32).reshape(3, 1)

    # Lane-major per-splat tensors, padded to a multiple of tile_n.
    # TODO(synk): for per-frame reuse with static splats, cache these
    # transposed/padded tensors across calls (they are camera independent).
    n_pad = pl.cdiv(N, tile_n) * tile_n
    pad = n_pad - N
    feat_t = features.T.astype(matmul_dtype)                   # (F, N)
    means_t = means.T.astype(jnp.float32)                      # (3, N)
    colors_t = colors.T.astype(jnp.float32)                    # (3, N)
    if pad:
        feat_t = jnp.pad(feat_t, ((0, 0), (0, pad)))
        means_t = jnp.pad(means_t, ((0, 0), (0, pad)))
        colors_t = jnp.pad(colors_t, ((0, 0), (0, pad)))

    grid = (n_pad // tile_n,)
    kernel = functools.partial(_vdc_kernel, num_cameras=C,
                               cur_sh_degree=cur_sh_degree)

    out_t = pl.pallas_call(
        kernel,
        out_shape=jax.ShapeDtypeStruct((C, 3, n_pad), jnp.float32),
        grid=grid,
        in_specs=[
            pl.BlockSpec((C, 3, 1), lambda n: (0, 0, 0)),      # cam_pos
            pl.BlockSpec((C, W, 1), lambda n: (0, 0, 0)),      # l1_bias
            pl.BlockSpec((F, tile_n), lambda n: (0, n)),       # features^T
            pl.BlockSpec((3, tile_n), lambda n: (0, n)),       # means^T
            pl.BlockSpec((3, tile_n), lambda n: (0, n)),       # colors^T
            pl.BlockSpec((W, F), lambda n: (0, 0)),            # w1f^T
            pl.BlockSpec((W, 16), lambda n: (0, 0)),           # w1s^T (padded)
            pl.BlockSpec((W, W), lambda n: (0, 0)),            # w2^T
            pl.BlockSpec((W, 1), lambda n: (0, 0)),            # b2
            pl.BlockSpec((3, W), lambda n: (0, 0)),            # w3^T
            pl.BlockSpec((3, 1), lambda n: (0, 0)),            # b3
        ],
        out_specs=pl.BlockSpec((C, 3, tile_n), lambda n: (0, 0, n)),
        scratch_shapes=[pltpu.VMEM((16, tile_n), jnp.float32)],
        compiler_params=pltpu.CompilerParams(
            dimension_semantics=("parallel",)
        ),
    )(cam_pos, l1_bias, feat_t, means_t, colors_t,
      w1f_t, w1s_t, w2_t, b2, w3_t, b3)

    # (C, 3, n_pad) -> (C, N, 3), dropping the padded splats.
    # TODO(synk): keep the (C, 3, N) layout downstream to skip this transpose pass.
    return jnp.transpose(out_t[:, :, :N], (0, 2, 1))


# --------------------------------------------------------------------------
# Pure-JAX reference (faithful f32 port of the PyTorch module)
# --------------------------------------------------------------------------
def _reference(params, features, camera_ids, means, colors, cam_2_world, cur_sh_degree):
    C = cam_2_world.shape[0]
    N, F = features.shape
    E = params["embed_table"].shape[1]
    embeds = (
        jnp.zeros((C, E), jnp.float32)
        if camera_ids is None
        else params["embed_table"][camera_ids]
    )
    cam_pos = cam_2_world[:, :3, 3]
    d = means[None, :, :] - cam_pos[:, None, :]
    d = d / jnp.maximum(jnp.linalg.norm(d, axis=-1, keepdims=True), 1e-12)
    x, y, z = d[..., 0], d[..., 1], d[..., 2]
    n_use = (cur_sh_degree + 1) ** 2
    sh = [jnp.zeros_like(x)] * 16
    sh[0] = jnp.full_like(x, 0.2820947917738781)
    if n_use > 1:
        fA = -0.48860251190292
        sh[1], sh[2], sh[3] = fA * y, -fA * z, fA * x
    if n_use > 4:
        z2 = z * z
        fB = -1.092548430592079 * z
        fA = 0.5462742152960395
        fC1 = x * x - y * y
        fS1 = 2 * x * y
        sh[4], sh[5] = fA * fS1, fB * y
        sh[6] = 0.9461746957575601 * z2 - 0.3153915652525201
        sh[7], sh[8] = fB * x, fA * fC1
    if n_use > 9:
        fC = -2.285228997322329 * z2 + 0.4570457994644658
        fB = 1.445305721320277 * z
        fA = -0.5900435899266435
        fC2 = x * fC1 - y * fS1
        fS2 = x * fS1 + y * fC1
        sh[9], sh[10], sh[11] = fA * fS2, fB * fS1, fC * y
        sh[12] = z * (1.865881662950577 * z2 - 1.119528997770346)
        sh[13], sh[14], sh[15] = fC * x, fB * fC1, fA * fC2
    sh_b = jnp.stack(sh, axis=-1)                              # (C, N, 16)
    h = jnp.concatenate(
        [
            jnp.broadcast_to(embeds[:, None, :], (C, N, E)),
            jnp.broadcast_to(features[None], (C, N, F)),
            sh_b,
        ],
        axis=-1,
    )
    h = jax.nn.relu(h @ params["w1"] + params["b1"])
    h = jax.nn.relu(h @ params["w2"] + params["b2"])
    adj = h @ params["w3"] + params["b3"]
    adj = jnp.clip(adj, 1e-07, 1.0 - 1e-07)
    return jax.nn.sigmoid(colors[None] + jnp.log(adj / (1.0 - adj)))


# --------------------------------------------------------------------------
# Main
# --------------------------------------------------------------------------
if __name__ == "__main__":
    # Module hyperparameters.
    feature_dim = 32
    num_cameras = 2
    embed_dim = 16
    sh_degree = 3
    mlp_width = 64
    num_bases = (sh_degree + 1) ** 2               # 16
    in_dim = embed_dim + feature_dim + num_bases   # 64

    # Small demo problem; N deliberately NOT a multiple of tile_n to exercise
    # the padding path, and small tile_n so the grid has >1 step.
    C, N = num_cameras, 1000
    tile_n = 512

    key = jax.random.PRNGKey(0)
    keys = jax.random.split(key, 12)

    params = {
        "embed_table": 0.1 * jax.random.normal(keys[0], (num_cameras, embed_dim), jnp.float32),
        "w1": 0.2 * jax.random.normal(keys[1], (in_dim, mlp_width), jnp.float32),
        "b1": 0.05 * jax.random.normal(keys[2], (mlp_width,), jnp.float32),
        "w2": 0.2 * jax.random.normal(keys[3], (mlp_width, mlp_width), jnp.float32),
        "b2": 0.05 * jax.random.normal(keys[4], (mlp_width,), jnp.float32),
        "w3": 0.2 * jax.random.normal(keys[5], (mlp_width, 3), jnp.float32),
        "b3": 0.05 * jax.random.normal(keys[6], (3,), jnp.float32),
    }

    features = jax.random.normal(keys[7], (N, feature_dim), jnp.float32)
    means = 2.0 * jax.random.normal(keys[8], (N, 3), jnp.float32)
    colors = jax.random.normal(keys[9], (N, 3), jnp.float32)
    camera_ids = jnp.arange(C, dtype=jnp.int32)
    cam_t = 5.0 * jax.random.normal(keys[10], (C, 3), jnp.float32)
    cam_2_world = jnp.tile(jnp.eye(4, dtype=jnp.float32)[None], (C, 1, 1))
    cam_2_world = cam_2_world.at[:, :3, 3].set(cam_t)

    # 1) Full-f32 matmul path, SH degree 3: tight check against the reference.
    ref3 = _reference(params, features, camera_ids, means, colors, cam_2_world, 3)
    out_f32 = view_dependent_color_mlp(
        params, features, camera_ids, means, colors, cam_2_world, 3,
        tile_n=tile_n, matmul_dtype=jnp.float32,
    )
    out_f32 = jax.block_until_ready(out_f32)
    assert out_f32.shape == (C, N, 3)
    assert jnp.allclose(out_f32, ref3, atol=3e-3, rtol=3e-3), "f32 deg-3 kernel mismatch"

    # 2) Full-f32 path, SH degree 1: exercises the zero-padded SH rows/weights.
    ref1 = _reference(params, features, camera_ids, means, colors, cam_2_world, 1)
    out_f32_d1 = view_dependent_color_mlp(
        params, features, camera_ids, means, colors, cam_2_world, 1,
        tile_n=tile_n, matmul_dtype=jnp.float32,
    )
    out_f32_d1 = jax.block_until_ready(out_f32_d1)
    assert jnp.allclose(out_f32_d1, ref1, atol=3e-3, rtol=3e-3), "f32 deg-1 kernel mismatch"

    # 3) bf16 matmul path (the fast v5e/v6e/v7x config).  Element-wise tolerance
    #    is not meaningful near the inverse-sigmoid clip boundaries, so check
    #    aggregate error instead.
    out_bf16 = view_dependent_color_mlp(
        params, features, camera_ids, means, colors, cam_2_world, 3,
        tile_n=tile_n,
    )
    out_bf16 = jax.block_until_ready(out_bf16)
    assert out_bf16.shape == (C, N, 3)
    assert bool(jnp.all(jnp.isfinite(out_bf16))), "non-finite values in bf16 output"
    mean_err = float(jnp.mean(jnp.abs(out_bf16 - ref3)))
    assert mean_err < 1e-2, f"bf16 kernel mean abs error too large: {mean_err}"

    print("KERNEL_OK")
</pallas_src>

<mosaic_0001>
module attributes {stable_mosaic.version = 11 : i64} {
  func.func @_vdc_kernel(%arg0: i32, %arg1: memref<2x3x1xf32, #tpu.memory_space<vmem>>, %arg2: memref<2x64x1xf32, #tpu.memory_space<vmem>>, %arg3: memref<32x512xf32, #tpu.memory_space<vmem>>, %arg4: memref<3x512xf32, #tpu.memory_space<vmem>>, %arg5: memref<3x512xf32, #tpu.memory_space<vmem>>, %arg6: memref<64x32xf32, #tpu.memory_space<vmem>>, %arg7: memref<64x16xf32, #tpu.memory_space<vmem>>, %arg8: memref<64x64xf32, #tpu.memory_space<vmem>>, %arg9: memref<64x1xf32, #tpu.memory_space<vmem>>, %arg10: memref<3x64xf32, #tpu.memory_space<vmem>>, %arg11: memref<3x1xf32, #tpu.memory_space<vmem>>, %arg12: memref<2x3x512xf32, #tpu.memory_space<vmem>>, %arg13: memref<16x512xf32, #tpu.memory_space<vmem>>) attributes {dimension_semantics = [#tpu.dimension_semantics<parallel>], iteration_bounds = array<i64: 2>, scalar_prefetch = 0 : i64, scratch_operands = 1 : i64, tpu.core_type = #tpu.core_type<tc>, window_params = [{pipeline_mode = #tpu.pipeline_mode<synchronous>, transform_indices = @transform_0, window_bounds = array<i64: 2, 3, 1>}, {pipeline_mode = #tpu.pipeline_mode<synchronous>, transform_indices = @transform_1, window_bounds = array<i64: 2, 64, 1>}, {transform_indices = @transform_2, window_bounds = array<i64: 32, 512>}, {transform_indices = @transform_3, window_bounds = array<i64: 3, 512>}, {transform_indices = @transform_4, window_bounds = array<i64: 3, 512>}, {pipeline_mode = #tpu.pipeline_mode<synchronous>, transform_indices = @transform_5, window_bounds = array<i64: 64, 32>}, {pipeline_mode = #tpu.pipeline_mode<synchronous>, transform_indices = @transform_6, window_bounds = array<i64: 64, 16>}, {pipeline_mode = #tpu.pipeline_mode<synchronous>, transform_indices = @transform_7, window_bounds = array<i64: 64, 64>}, {pipeline_mode = #tpu.pipeline_mode<synchronous>, transform_indices = @transform_8, window_bounds = array<i64: 64, 1>}, {pipeline_mode = #tpu.pipeline_mode<synchronous>, transform_indices = @transform_9, window_bounds = array<i64: 3, 64>}, {pipeline_mode = #tpu.pipeline_mode<synchronous>, transform_indices = @transform_10, window_bounds = array<i64: 3, 1>}, {transform_indices = @transform_11, window_bounds = array<i64: 2, 3, 512>}]} {
    %c0 = arith.constant 0 : index
    %c0_0 = arith.constant 0 : index
    %0 = vector.load %arg3[%c0, %c0_0] : memref<32x512xf32, #tpu.memory_space<vmem>>, vector<32x512xf32>
    %c0_1 = arith.constant 0 : index
    %c0_2 = arith.constant 0 : index
    %1 = vector.load %arg4[%c0_1, %c0_2] : memref<3x512xf32, #tpu.memory_space<vmem>>, vector<3x512xf32>
    %c0_3 = arith.constant 0 : index
    %c0_4 = arith.constant 0 : index
    %2 = vector.load %arg5[%c0_3, %c0_4] : memref<3x512xf32, #tpu.memory_space<vmem>>, vector<3x512xf32>
    %c0_5 = arith.constant 0 : index
    %c0_6 = arith.constant 0 : index
    %3 = vector.load %arg6[%c0_5, %c0_6] : memref<64x32xf32, #tpu.memory_space<vmem>>, vector<64x32xf32>
    %c0_7 = arith.constant 0 : index
    %c0_8 = arith.constant 0 : index
    %4 = vector.load %arg7[%c0_7, %c0_8] : memref<64x16xf32, #tpu.memory_space<vmem>>, vector<64x16xf32>
    %c0_9 = arith.constant 0 : index
    %c0_10 = arith.constant 0 : index
    %5 = vector.load %arg8[%c0_9, %c0_10] : memref<64x64xf32, #tpu.memory_space<vmem>>, vector<64x64xf32>
    %c0_11 = arith.constant 0 : index
    %c0_12 = arith.constant 0 : index
    %6 = vector.load %arg9[%c0_11, %c0_12] : memref<64x1xf32, #tpu.memory_space<vmem>>, vector<64x1xf32>
    %c0_13 = arith.constant 0 : index
    %c0_14 = arith.constant 0 : index
    %7 = vector.load %arg10[%c0_13, %c0_14] : memref<3x64xf32, #tpu.memory_space<vmem>>, vector<3x64xf32>
    %c0_15 = arith.constant 0 : index
    %c0_16 = arith.constant 0 : index
    %8 = vector.load %arg11[%c0_15, %c0_16] : memref<3x1xf32, #tpu.memory_space<vmem>>, vector<3x1xf32>
    %cst = arith.constant dense<0.000000e+00> : vector<64x512xf32>
    %9 = tpu.matmul %3, %0, %cst {dimension_numbers = #tpu.dot_dimension_numbers<[1], [0], [0], [1], [0, 0, 1, 1], [], []>} : vector<64x32xf32>, vector<32x512xf32>, vector<64x512xf32> -> vector<64x512xf32>
    %cst_17 = arith.constant 0.000000e+00 : f32
    %10 = vector.broadcast %cst_17 : f32 to vector<3x512xf32>
    %11 = arith.subf %10, %2 : vector<3x512xf32>
    %12 = math.exp %11 : vector<3x512xf32>
    %cst_18 = arith.constant 0.000000e+00 : f32
    %13 = vector.broadcast %cst_18 : f32 to vector<1x512xf32>
    %c15 = arith.constant 15 : index
    %c0_19 = arith.constant 0 : index
    %14 = vector.load %arg13[%c15, %c0_19] : memref<16x512xf32, #tpu.memory_space<vmem>>, vector<1x512xf32>
    tpu.vector_store %arg13[%c15, %c0_19], %13 {strides = array<i32>} : memref<16x512xf32, #tpu.memory_space<vmem>>, vector<1x512xf32>,
    %c0_20 = arith.constant 0 : index
    %c0_21 = arith.constant 0 : index
    %c0_22 = arith.constant 0 : index
    %15 = vector.load %arg1[%c0_20, %c0_21, %c0_22] : memref<2x3x1xf32, #tpu.memory_space<vmem>>, vector<1x3x1xf32>
    %16 = vector.shape_cast %15 : vector<1x3x1xf32> to vector<3x1xf32>
    %17 = vector.broadcast %16 : vector<3x1xf32> to vector<3x512xf32>
    %18 = arith.subf %1, %17 : vector<3x512xf32>
    %19 = arith.mulf %18, %18 : vector<3x512xf32>
    %cst_23 = arith.constant dense<0.000000e+00> : vector<512xf32>
    %20 = vector.multi_reduction <add>, %19, %cst_23 [0] : vector<3x512xf32> to vector<512xf32>
    %21 = vector.shape_cast %20 : vector<512xf32> to vector<1x512xf32>
    %cst_24 = arith.constant 1.000000e-24 : f32
    %22 = vector.broadcast %cst_24 : f32 to vector<1x512xf32>
    %23 = arith.maximumf %21, %22 : vector<1x512xf32>
    %24 = math.rsqrt %23 : vector<1x512xf32>
    %25 = vector.broadcast %24 : vector<1x512xf32> to vector<3x512xf32>
    %26 = arith.mulf %18, %25 : vector<3x512xf32>
    %27 = vector.extract_strided_slice %26 {offsets = [0, 0], sizes = [1, 512], strides = [1, 1]} : vector<3x512xf32> to vector<1x512xf32>
    %28 = vector.extract_strided_slice %26 {offsets = [1, 0], sizes = [1, 512], strides = [1, 1]} : vector<3x512xf32> to vector<1x512xf32>
    %29 = vector.extract_strided_slice %26 {offsets = [2, 0], sizes = [1, 512], strides = [1, 1]} : vector<3x512xf32> to vector<1x512xf32>
    %cst_25 = arith.constant -0.488602519 : f32
    %30 = vector.broadcast %cst_25 : f32 to vector<1x512xf32>
    %31 = arith.mulf %30, %28 : vector<1x512xf32>
    %c0_26 = arith.constant 0 : index
    %c0_27 = arith.constant 0 : index
    %32 = vector.load %arg13[%c0_26, %c0_27] : memref<16x512xf32, #tpu.memory_space<vmem>>, vector<1x512xf32>
    tpu.vector_store %arg13[%c0_26, %c0_27], %31 {strides = array<i32>} : memref<16x512xf32, #tpu.memory_space<vmem>>, vector<1x512xf32>,
    %cst_28 = arith.constant 0.488602519 : f32
    %33 = vector.broadcast %cst_28 : f32 to vector<1x512xf32>
    %34 = arith.mulf %33, %29 : vector<1x512xf32>
    %c1 = arith.constant 1 : index
    %c0_29 = arith.constant 0 : index
    %35 = vector.load %arg13[%c1, %c0_29] : memref<16x512xf32, #tpu.memory_space<vmem>>, vector<1x512xf32>
    tpu.vector_store %arg13[%c1, %c0_29], %34 {strides = array<i32>} : memref<16x512xf32, #tpu.memory_space<vmem>>, vector<1x512xf32>,
    %cst_30 = arith.constant -0.488602519 : f32
    %36 = vector.broadcast %cst_30 : f32 to vector<1x512xf32>
    %37 = arith.mulf %36, %27 : vector<1x512xf32>
    %c2 = arith.constant 2 : index
    %c0_31 = arith.constant 0 : index
    %38 = vector.load %arg13[%c2, %c0_31] : memref<16x512xf32, #tpu.memory_space<vmem>>, vector<1x512xf32>
    tpu.vector_store %arg13[%c2, %c0_31], %37 {strides = array<i32>} : memref<16x512xf32, #tpu.memory_space<vmem>>, vector<1x512xf32>,
    %39 = arith.mulf %29, %29 : vector<1x512xf32>
    %cst_32 = arith.constant -1.09254849 : f32
    %40 = vector.broadcast %cst_32 : f32 to vector<1x512xf32>
    %41 = arith.mulf %40, %29 : vector<1x512xf32>
    %42 = arith.mulf %27, %27 : vector<1x512xf32>
    %43 = arith.mulf %28, %28 : vector<1x512xf32>
    %44 = arith.subf %42, %43 : vector<1x512xf32>
    %cst_33 = arith.constant 2.000000e+00 : f32
    %45 = vector.broadcast %cst_33 : f32 to vector<1x512xf32>
    %46 = arith.mulf %45, %27 : vector<1x512xf32>
    %47 = arith.mulf %46, %28 : vector<1x512xf32>
    %cst_34 = arith.constant 0.546274245 : f32
    %48 = vector.broadcast %cst_34 : f32 to vector<1x512xf32>
    %49 = arith.mulf %48, %47 : vector<1x512xf32>
    %c3 = arith.constant 3 : index
    %c0_35 = arith.constant 0 : index
    %50 = vector.load %arg13[%c3, %c0_35] : memref<16x512xf32, #tpu.memory_space<vmem>>, vector<1x512xf32>
    tpu.vector_store %arg13[%c3, %c0_35], %49 {strides = array<i32>} : memref<16x512xf32, #tpu.memory_space<vmem>>, vector<1x512xf32>,
    %51 = arith.mulf %41, %28 : vector<1x512xf32>
    %c4 = arith.constant 4 : index
    %c0_36 = arith.constant 0 : index
    %52 = vector.load %arg13[%c4, %c0_36] : memref<16x512xf32, #tpu.memory_space<vmem>>, vector<1x512xf32>
    tpu.vector_store %arg13[%c4, %c0_36], %51 {strides = array<i32>} : memref<16x512xf32, #tpu.memory_space<vmem>>, vector<1x512xf32>,
    %cst_37 = arith.constant 0.946174681 : f32
    %53 = vector.broadcast %cst_37 : f32 to vector<1x512xf32>
    %54 = arith.mulf %53, %39 : vector<1x512xf32>
    %cst_38 = arith.constant 0.31539157 : f32
    %55 = vector.broadcast %cst_38 : f32 to vector<1x512xf32>
    %56 = arith.subf %54, %55 : vector<1x512xf32>
    %c5 = arith.constant 5 : index
    %c0_39 = arith.constant 0 : index
    %57 = vector.load %arg13[%c5, %c0_39] : memref<16x512xf32, #tpu.memory_space<vmem>>, vector<1x512xf32>
    tpu.vector_store %arg13[%c5, %c0_39], %56 {strides = array<i32>} : memref<16x512xf32, #tpu.memory_space<vmem>>, vector<1x512xf32>,
    %58 = arith.mulf %41, %27 : vector<1x512xf32>
    %c6 = arith.constant 6 : index
    %c0_40 = arith.constant 0 : index
    %59 = vector.load %arg13[%c6, %c0_40] : memref<16x512xf32, #tpu.memory_space<vmem>>, vector<1x512xf32>
    tpu.vector_store %arg13[%c6, %c0_40], %58 {strides = array<i32>} : memref<16x512xf32, #tpu.memory_space<vmem>>, vector<1x512xf32>,
    %cst_41 = arith.constant 0.546274245 : f32
    %60 = vector.broadcast %cst_41 : f32 to vector<1x512xf32>
    %61 = arith.mulf %60, %44 : vector<1x512xf32>
    %c7 = arith.constant 7 : index
    %c0_42 = arith.constant 0 : index
    %62 = vector.load %arg13[%c7, %c0_42] : memref<16x512xf32, #tpu.memory_space<vmem>>, vector<1x512xf32>
    tpu.vector_store %arg13[%c7, %c0_42], %61 {strides = array<i32>} : memref<16x512xf32, #tpu.memory_space<vmem>>, vector<1x512xf32>,
    %cst_43 = arith.constant -2.28522897 : f32
    %63 = vector.broadcast %cst_43 : f32 to vector<1x512xf32>
    %64 = arith.mulf %63, %39 : vector<1x512xf32>
    %cst_44 = arith.constant 0.457045794 : f32
    %65 = vector.broadcast %cst_44 : f32 to vector<1x512xf32>
    %66 = arith.addf %64, %65 : vector<1x512xf32>
    %cst_45 = arith.constant 1.44530571 : f32
    %67 = vector.broadcast %cst_45 : f32 to vector<1x512xf32>
    %68 = arith.mulf %67, %29 : vector<1x512xf32>
    %69 = arith.mulf %27, %44 : vector<1x512xf32>
    %70 = arith.mulf %28, %47 : vector<1x512xf32>
    %71 = arith.subf %69, %70 : vector<1x512xf32>
    %72 = arith.mulf %27, %47 : vector<1x512xf32>
    %73 = arith.mulf %28, %44 : vector<1x512xf32>
    %74 = arith.addf %72, %73 : vector<1x512xf32>
    %cst_46 = arith.constant -0.590043604 : f32
    %75 = vector.broadcast %cst_46 : f32 to vector<1x512xf32>
    %76 = arith.mulf %75, %74 : vector<1x512xf32>
    %c8 = arith.constant 8 : index
    %c0_47 = arith.constant 0 : index
    %77 = vector.load %arg13[%c8, %c0_47] : memref<16x512xf32, #tpu.memory_space<vmem>>, vector<1x512xf32>
    tpu.vector_store %arg13[%c8, %c0_47], %76 {strides = array<i32>} : memref<16x512xf32, #tpu.memory_space<vmem>>, vector<1x512xf32>,
    %78 = arith.mulf %68, %47 : vector<1x512xf32>
    %c9 = arith.constant 9 : index
    %c0_48 = arith.constant 0 : index
    %79 = vector.load %arg13[%c9, %c0_48] : memref<16x512xf32, #tpu.memory_space<vmem>>, vector<1x512xf32>
    tpu.vector_store %arg13[%c9, %c0_48], %78 {strides = array<i32>} : memref<16x512xf32, #tpu.memory_space<vmem>>, vector<1x512xf32>,
    %80 = arith.mulf %66, %28 : vector<1x512xf32>
    %c10 = arith.constant 10 : index
    %c0_49 = arith.constant 0 : index
    %81 = vector.load %arg13[%c10, %c0_49] : memref<16x512xf32, #tpu.memory_space<vmem>>, vector<1x512xf32>
    tpu.vector_store %arg13[%c10, %c0_49], %80 {strides = array<i32>} : memref<16x512xf32, #tpu.memory_space<vmem>>, vector<1x512xf32>,
    %cst_50 = arith.constant 1.86588168 : f32
    %82 = vector.broadcast %cst_50 : f32 to vector<1x512xf32>
    %83 = arith.mulf %82, %39 : vector<1x512xf32>
    %cst_51 = arith.constant 1.11952901 : f32
    %84 = vector.broadcast %cst_51 : f32 to vector<1x512xf32>
    %85 = arith.subf %83, %84 : vector<1x512xf32>
    %86 = arith.mulf %29, %85 : vector<1x512xf32>
    %c11 = arith.constant 11 : index
    %c0_52 = arith.constant 0 : index
    %87 = vector.load %arg13[%c11, %c0_52] : memref<16x512xf32, #tpu.memory_space<vmem>>, vector<1x512xf32>
    tpu.vector_store %arg13[%c11, %c0_52], %86 {strides = array<i32>} : memref<16x512xf32, #tpu.memory_space<vmem>>, vector<1x512xf32>,
    %88 = arith.mulf %66, %27 : vector<1x512xf32>
    %c12 = arith.constant 12 : index
    %c0_53 = arith.constant 0 : index
    %89 = vector.load %arg13[%c12, %c0_53] : memref<16x512xf32, #tpu.memory_space<vmem>>, vector<1x512xf32>
    tpu.vector_store %arg13[%c12, %c0_53], %88 {strides = array<i32>} : memref<16x512xf32, #tpu.memory_space<vmem>>, vector<1x512xf32>,
    %90 = arith.mulf %68, %44 : vector<1x512xf32>
    %c13 = arith.constant 13 : index
    %c0_54 = arith.constant 0 : index
    %91 = vector.load %arg13[%c13, %c0_54] : memref<16x512xf32, #tpu.memory_space<vmem>>, vector<1x512xf32>
    tpu.vector_store %arg13[%c13, %c0_54], %90 {strides = array<i32>} : memref<16x512xf32, #tpu.memory_space<vmem>>, vector<1x512xf32>,
    %cst_55 = arith.constant -0.590043604 : f32
    %92 = vector.broadcast %cst_55 : f32 to vector<1x512xf32>
    %93 = arith.mulf %92, %71 : vector<1x512xf32>
    %c14 = arith.constant 14 : index
    %c0_56 = arith.constant 0 : index
    %94 = vector.load %arg13[%c14, %c0_56] : memref<16x512xf32, #tpu.memory_space<vmem>>, vector<1x512xf32>
    tpu.vector_store %arg13[%c14, %c0_56], %93 {strides = array<i32>} : memref<16x512xf32, #tpu.memory_space<vmem>>, vector<1x512xf32>,
    %c0_57 = arith.constant 0 : index
    %c0_58 = arith.constant 0 : index
    %95 = vector.load %arg13[%c0_57, %c0_58] : memref<16x512xf32, #tpu.memory_space<vmem>>, vector<16x512xf32>
    %cst_59 = arith.constant dense<0.000000e+00> : vector<64x512xf32>
    %96 = tpu.matmul %4, %95, %cst_59 {dimension_numbers = #tpu.dot_dimension_numbers<[1], [0], [0], [1], [0, 0, 1, 1], [], []>} : vector<64x16xf32>, vector<16x512xf32>, vector<64x512xf32> -> vector<64x512xf32>
    %97 = arith.addf %9, %96 : vector<64x512xf32>
    %c0_60 = arith.constant 0 : index
    %c0_61 = arith.constant 0 : index
    %c0_62 = arith.constant 0 : index
    %98 = vector.load %arg2[%c0_60, %c0_61, %c0_62] : memref<2x64x1xf32, #tpu.memory_space<vmem>>, vector<1x64x1xf32>
    %99 = vector.shape_cast %98 : vector<1x64x1xf32> to vector<64x1xf32>
    %100 = vector.broadcast %99 : vector<64x1xf32> to vector<64x512xf32>
    %101 = arith.addf %97, %100 : vector<64x512xf32>
    %cst_63 = arith.constant 0.000000e+00 : f32
    %102 = vector.broadcast %cst_63 : f32 to vector<64x512xf32>
    %103 = arith.maximumf %101, %102 : vector<64x512xf32>
    %cst_64 = arith.constant dense<0.000000e+00> : vector<64x512xf32>
    %104 = tpu.matmul %5, %103, %cst_64 {dimension_numbers = #tpu.dot_dimension_numbers<[1], [0], [0], [1], [0, 0, 1, 1], [], []>} : vector<64x64xf32>, vector<64x512xf32>, vector<64x512xf32> -> vector<64x512xf32>
    %105 = vector.broadcast %6 : vector<64x1xf32> to vector<64x512xf32>
    %106 = arith.addf %104, %105 : vector<64x512xf32>
    %cst_65 = arith.constant 0.000000e+00 : f32
    %107 = vector.broadcast %cst_65 : f32 to vector<64x512xf32>
    %108 = arith.maximumf %106, %107 : vector<64x512xf32>
    %cst_66 = arith.constant dense<0.000000e+00> : vector<3x512xf32>
    %109 = tpu.matmul %7, %108, %cst_66 {dimension_numbers = #tpu.dot_dimension_numbers<[1], [0], [0], [1], [0, 0, 1, 1], [], []>} : vector<3x64xf32>, vector<64x512xf32>, vector<3x512xf32> -> vector<3x512xf32>
    %110 = vector.broadcast %8 : vector<3x1xf32> to vector<3x512xf32>
    %111 = arith.addf %109, %110 : vector<3x512xf32>
    %cst_67 = arith.constant 1.000000e-07 : f32
    %cst_68 = arith.constant 0.99999988 : f32
    %112 = vector.broadcast %cst_67 : f32 to vector<3x512xf32>
    %113 = arith.maximumf %112, %111 : vector<3x512xf32>
    %114 = vector.broadcast %cst_68 : f32 to vector<3x512xf32>
    %115 = arith.minimumf %114, %113 : vector<3x512xf32>
    %cst_69 = arith.constant 1.000000e+00 : f32
    %116 = vector.broadcast %cst_69 : f32 to vector<3x512xf32>
    %117 = arith.subf %116, %115 : vector<3x512xf32>
    %118 = arith.mulf %12, %117 : vector<3x512xf32>
    %119 = arith.addf %115, %118 : vector<3x512xf32>
    %120 = arith.divf %115, %119 : vector<3x512xf32>
    %c0_70 = arith.constant 0 : index
    %c0_71 = arith.constant 0 : index
    %c0_72 = arith.constant 0 : index
    %121 = vector.load %arg12[%c0_70, %c0_71, %c0_72] : memref<2x3x512xf32, #tpu.memory_space<vmem>>, vector<1x3x512xf32>
    %122 = vector.shape_cast %121 : vector<1x3x512xf32> to vector<3x512xf32>
    %123 = vector.shape_cast %120 : vector<3x512xf32> to vector<1x3x512xf32>
    tpu.vector_store %arg12[%c0_70, %c0_71, %c0_72], %123 {strides = array<i32>} : memref<2x3x512xf32, #tpu.memory_space<vmem>>, vector<1x3x512xf32>,
    %c1_73 = arith.constant 1 : index
    %c0_74 = arith.constant 0 : index
    %c0_75 = arith.constant 0 : index
    %124 = vector.load %arg1[%c1_73, %c0_74, %c0_75] : memref<2x3x1xf32, #tpu.memory_space<vmem>>, vector<1x3x1xf32>
    %125 = vector.shape_cast %124 : vector<1x3x1xf32> to vector<3x1xf32>
    %126 = vector.broadcast %125 : vector<3x1xf32> to vector<3x512xf32>
    %127 = arith.subf %1, %126 : vector<3x512xf32>
    %128 = arith.mulf %127, %127 : vector<3x512xf32>
    %cst_76 = arith.constant dense<0.000000e+00> : vector<512xf32>
    %129 = vector.multi_reduction <add>, %128, %cst_76 [0] : vector<3x512xf32> to vector<512xf32>
    %130 = vector.shape_cast %129 : vector<512xf32> to vector<1x512xf32>
    %cst_77 = arith.constant 1.000000e-24 : f32
    %131 = vector.broadcast %cst_77 : f32 to vector<1x512xf32>
    %132 = arith.maximumf %130, %131 : vector<1x512xf32>
    %133 = math.rsqrt %132 : vector<1x512xf32>
    %134 = vector.broadcast %133 : vector<1x512xf32> to vector<3x512xf32>
    %135 = arith.mulf %127, %134 : vector<3x512xf32>
    %136 = vector.extract_strided_slice %135 {offsets = [0, 0], sizes = [1, 512], strides = [1, 1]} : vector<3x512xf32> to vector<1x512xf32>
    %137 = vector.extract_strided_slice %135 {offsets = [1, 0], sizes = [1, 512], strides = [1, 1]} : vector<3x512xf32> to vector<1x512xf32>
    %138 = vector.extract_strided_slice %135 {offsets = [2, 0], sizes = [1, 512], strides = [1, 1]} : vector<3x512xf32> to vector<1x512xf32>
    %cst_78 = arith.constant -0.488602519 : f32
    %139 = vector.broadcast %cst_78 : f32 to vector<1x512xf32>
    %140 = arith.mulf %139, %137 : vector<1x512xf32>
    %c0_79 = arith.constant 0 : index
    %c0_80 = arith.constant 0 : index
    %141 = vector.load %arg13[%c0_79, %c0_80] : memref<16x512xf32, #tpu.memory_space<vmem>>, vector<1x512xf32>
    tpu.vector_store %arg13[%c0_79, %c0_80], %140 {strides = array<i32>} : memref<16x512xf32, #tpu.memory_space<vmem>>, vector<1x512xf32>,
    %cst_81 = arith.constant 0.488602519 : f32
    %142 = vector.broadcast %cst_81 : f32 to vector<1x512xf32>
    %143 = arith.mulf %142, %138 : vector<1x512xf32>
    %c1_82 = arith.constant 1 : index
    %c0_83 = arith.constant 0 : index
    %144 = vector.load %arg13[%c1_82, %c0_83] : memref<16x512xf32, #tpu.memory_space<vmem>>, vector<1x512xf32>
    tpu.vector_store %arg13[%c1_82, %c0_83], %143 {strides = array<i32>} : memref<16x512xf32, #tpu.memory_space<vmem>>, vector<1x512xf32>,
    %cst_84 = arith.constant -0.488602519 : f32
    %145 = vector.broadcast %cst_84 : f32 to vector<1x512xf32>
    %146 = arith.mulf %145, %136 : vector<1x512xf32>
    %c2_85 = arith.constant 2 : index
    %c0_86 = arith.constant 0 : index
    %147 = vector.load %arg13[%c2_85, %c0_86] : memref<16x512xf32, #tpu.memory_space<vmem>>, vector<1x512xf32>
    tpu.vector_store %arg13[%c2_85, %c0_86], %146 {strides = array<i32>} : memref<16x512xf32, #tpu.memory_space<vmem>>, vector<1x512xf32>,
    %148 = arith.mulf %138, %138 : vector<1x512xf32>
    %cst_87 = arith.constant -1.09254849 : f32
    %149 = vector.broadcast %cst_87 : f32 to vector<1x512xf32>
    %150 = arith.mulf %149, %138 : vector<1x512xf32>
    %151 = arith.mulf %136, %136 : vector<1x512xf32>
    %152 = arith.mulf %137, %137 : vector<1x512xf32>
    %153 = arith.subf %151, %152 : vector<1x512xf32>
    %cst_88 = arith.constant 2.000000e+00 : f32
    %154 = vector.broadcast %cst_88 : f32 to vector<1x512xf32>
    %155 = arith.mulf %154, %136 : vector<1x512xf32>
    %156 = arith.mulf %155, %137 : vector<1x512xf32>
    %cst_89 = arith.constant 0.546274245 : f32
    %157 = vector.broadcast %cst_89 : f32 to vector<1x512xf32>
    %158 = arith.mulf %157, %156 : vector<1x512xf32>
    %c3_90 = arith.constant 3 : index
    %c0_91 = arith.constant 0 : index
    %159 = vector.load %arg13[%c3_90, %c0_91] : memref<16x512xf32, #tpu.memory_space<vmem>>, vector<1x512xf32>
    tpu.vector_store %arg13[%c3_90, %c0_91], %158 {strides = array<i32>} : memref<16x512xf32, #tpu.memory_space<vmem>>, vector<1x512xf32>,
    %160 = arith.mulf %150, %137 : vector<1x512xf32>
    %c4_92 = arith.constant 4 : index
    %c0_93 = arith.constant 0 : index
    %161 = vector.load %arg13[%c4_92, %c0_93] : memref<16x512xf32, #tpu.memory_space<vmem>>, vector<1x512xf32>
    tpu.vector_store %arg13[%c4_92, %c0_93], %160 {strides = array<i32>} : memref<16x512xf32, #tpu.memory_space<vmem>>, vector<1x512xf32>,
    %cst_94 = arith.constant 0.946174681 : f32
    %162 = vector.broadcast %cst_94 : f32 to vector<1x512xf32>
    %163 = arith.mulf %162, %148 : vector<1x512xf32>
    %cst_95 = arith.constant 0.31539157 : f32
    %164 = vector.broadcast %cst_95 : f32 to vector<1x512xf32>
    %165 = arith.subf %163, %164 : vector<1x512xf32>
    %c5_96 = arith.constant 5 : index
    %c0_97 = arith.constant 0 : index
    %166 = vector.load %arg13[%c5_96, %c0_97] : memref<16x512xf32, #tpu.memory_space<vmem>>, vector<1x512xf32>
    tpu.vector_store %arg13[%c5_96, %c0_97], %165 {strides = array<i32>} : memref<16x512xf32, #tpu.memory_space<vmem>>, vector<1x512xf32>,
    %167 = arith.mulf %150, %136 : vector<1x512xf32>
    %c6_98 = arith.constant 6 : index
    %c0_99 = arith.constant 0 : index
    %168 = vector.load %arg13[%c6_98, %c0_99] : memref<16x512xf32, #tpu.memory_space<vmem>>, vector<1x512xf32>
    tpu.vector_store %arg13[%c6_98, %c0_99], %167 {strides = array<i32>} : memref<16x512xf32, #tpu.memory_space<vmem>>, vector<1x512xf32>,
    %cst_100 = arith.constant 0.546274245 : f32
    %169 = vector.broadcast %cst_100 : f32 to vector<1x512xf32>
    %170 = arith.mulf %169, %153 : vector<1x512xf32>
    %c7_101 = arith.constant 7 : index
    %c0_102 = arith.constant 0 : index
    %171 = vector.load %arg13[%c7_101, %c0_102] : memref<16x512xf32, #tpu.memory_space<vmem>>, vector<1x512xf32>
    tpu.vector_store %arg13[%c7_101, %c0_102], %170 {strides = array<i32>} : memref<16x512xf32, #tpu.memory_space<vmem>>, vector<1x512xf32>,
    %cst_103 = arith.constant -2.28522897 : f32
    %172 = vector.broadcast %cst_103 : f32 to vector<1x512xf32>
    %173 = arith.mulf %172, %148 : vector<1x512xf32>
    %cst_104 = arith.constant 0.457045794 : f32
    %174 = vector.broadcast %cst_104 : f32 to vector<1x512xf32>
    %175 = arith.addf %173, %174 : vector<1x512xf32>
    %cst_105 = arith.constant 1.44530571 : f32
    %176 = vector.broadcast %cst_105 : f32 to vector<1x512xf32>
    %177 = arith.mulf %176, %138 : vector<1x512xf32>
    %178 = arith.mulf %136, %153 : vector<1x512xf32>
    %179 = arith.mulf %137, %156 : vector<1x512xf32>
    %180 = arith.subf %178, %179 : vector<1x512xf32>
    %181 = arith.mulf %136, %156 : vector<1x512xf32>
    %182 = arith.mulf %137, %153 : vector<1x512xf32>
    %183 = arith.addf %181, %182 : vector<1x512xf32>
    %cst_106 = arith.constant -0.590043604 : f32
    %184 = vector.broadcast %cst_106 : f32 to vector<1x512xf32>
    %185 = arith.mulf %184, %183 : vector<1x512xf32>
    %c8_107 = arith.constant 8 : index
    %c0_108 = arith.constant 0 : index
    %186 = vector.load %arg13[%c8_107, %c0_108] : memref<16x512xf32, #tpu.memory_space<vmem>>, vector<1x512xf32>
    tpu.vector_store %arg13[%c8_107, %c0_108], %185 {strides = array<i32>} : memref<16x512xf32, #tpu.memory_space<vmem>>, vector<1x512xf32>,
    %187 = arith.mulf %177, %156 : vector<1x512xf32>
    %c9_109 = arith.constant 9 : index
    %c0_110 = arith.constant 0 : index
    %188 = vector.load %arg13[%c9_109, %c0_110] : memref<16x512xf32, #tpu.memory_space<vmem>>, vector<1x512xf32>
    tpu.vector_store %arg13[%c9_109, %c0_110], %187 {strides = array<i32>} : memref<16x512xf32, #tpu.memory_space<vmem>>, vector<1x512xf32>,
    %189 = arith.mulf %175, %137 : vector<1x512xf32>
    %c10_111 = arith.constant 10 : index
    %c0_112 = arith.constant 0 : index
    %190 = vector.load %arg13[%c10_111, %c0_112] : memref<16x512xf32, #tpu.memory_space<vmem>>, vector<1x512xf32>
    tpu.vector_store %arg13[%c10_111, %c0_112], %189 {strides = array<i32>} : memref<16x512xf32, #tpu.memory_space<vmem>>, vector<1x512xf32>,
    %cst_113 = arith.constant 1.86588168 : f32
    %191 = vector.broadcast %cst_113 : f32 to vector<1x512xf32>
    %192 = arith.mulf %191, %148 : vector<1x512xf32>
    %cst_114 = arith.constant 1.11952901 : f32
    %193 = vector.broadcast %cst_114 : f32 to vector<1x512xf32>
    %194 = arith.subf %192, %193 : vector<1x512xf32>
    %195 = arith.mulf %138, %194 : vector<1x512xf32>
    %c11_115 = arith.constant 11 : index
    %c0_116 = arith.constant 0 : index
    %196 = vector.load %arg13[%c11_115, %c0_116] : memref<16x512xf32, #tpu.memory_space<vmem>>, vector<1x512xf32>
    tpu.vector_store %arg13[%c11_115, %c0_116], %195 {strides = array<i32>} : memref<16x512xf32, #tpu.memory_space<vmem>>, vector<1x512xf32>,
    %197 = arith.mulf %175, %136 : vector<1x512xf32>
    %c12_117 = arith.constant 12 : index
    %c0_118 = arith.constant 0 : index
    %198 = vector.load %arg13[%c12_117, %c0_118] : memref<16x512xf32, #tpu.memory_space<vmem>>, vector<1x512xf32>
    tpu.vector_store %arg13[%c12_117, %c0_118], %197 {strides = array<i32>} : memref<16x512xf32, #tpu.memory_space<vmem>>, vector<1x512xf32>,
    %199 = arith.mulf %177, %153 : vector<1x512xf32>
    %c13_119 = arith.constant 13 : index
    %c0_120 = arith.constant 0 : index
    %200 = vector.load %arg13[%c13_119, %c0_120] : memref<16x512xf32, #tpu.memory_space<vmem>>, vector<1x512xf32>
    tpu.vector_store %arg13[%c13_119, %c0_120], %199 {strides = array<i32>} : memref<16x512xf32, #tpu.memory_space<vmem>>, vector<1x512xf32>,
    %cst_121 = arith.constant -0.590043604 : f32
    %201 = vector.broadcast %cst_121 : f32 to vector<1x512xf32>
    %202 = arith.mulf %201, %180 : vector<1x512xf32>
    %c14_122 = arith.constant 14 : index
    %c0_123 = arith.constant 0 : index
    %203 = vector.load %arg13[%c14_122, %c0_123] : memref<16x512xf32, #tpu.memory_space<vmem>>, vector<1x512xf32>
    tpu.vector_store %arg13[%c14_122, %c0_123], %202 {strides = array<i32>} : memref<16x512xf32, #tpu.memory_space<vmem>>, vector<1x512xf32>,
    %c0_124 = arith.constant 0 : index
    %c0_125 = arith.constant 0 : index
    %204 = vector.load %arg13[%c0_124, %c0_125] : memref<16x512xf32, #tpu.memory_space<vmem>>, vector<16x512xf32>
    %cst_126 = arith.constant dense<0.000000e+00> : vector<64x512xf32>
    %205 = tpu.matmul %4, %204, %cst_126 {dimension_numbers = #tpu.dot_dimension_numbers<[1], [0], [0], [1], [0, 0, 1, 1], [], []>} : vector<64x16xf32>, vector<16x512xf32>, vector<64x512xf32> -> vector<64x512xf32>
    %206 = arith.addf %9, %205 : vector<64x512xf32>
    %c1_127 = arith.constant 1 : index
    %c0_128 = arith.constant 0 : index
    %c0_129 = arith.constant 0 : index
    %207 = vector.load %arg2[%c1_127, %c0_128, %c0_129] : memref<2x64x1xf32, #tpu.memory_space<vmem>>, vector<1x64x1xf32>
    %208 = vector.shape_cast %207 : vector<1x64x1xf32> to vector<64x1xf32>
    %209 = vector.broadcast %208 : vector<64x1xf32> to vector<64x512xf32>
    %210 = arith.addf %206, %209 : vector<64x512xf32>
    %cst_130 = arith.constant 0.000000e+00 : f32
    %211 = vector.broadcast %cst_130 : f32 to vector<64x512xf32>
    %212 = arith.maximumf %210, %211 : vector<64x512xf32>
    %cst_131 = arith.constant dense<0.000000e+00> : vector<64x512xf32>
    %213 = tpu.matmul %5, %212, %cst_131 {dimension_numbers = #tpu.dot_dimension_numbers<[1], [0], [0], [1], [0, 0, 1, 1], [], []>} : vector<64x64xf32>, vector<64x512xf32>, vector<64x512xf32> -> vector<64x512xf32>
    %214 = vector.broadcast %6 : vector<64x1xf32> to vector<64x512xf32>
    %215 = arith.addf %213, %214 : vector<64x512xf32>
    %cst_132 = arith.constant 0.000000e+00 : f32
    %216 = vector.broadcast %cst_132 : f32 to vector<64x512xf32>
    %217 = arith.maximumf %215, %216 : vector<64x512xf32>
    %cst_133 = arith.constant dense<0.000000e+00> : vector<3x512xf32>
    %218 = tpu.matmul %7, %217, %cst_133 {dimension_numbers = #tpu.dot_dimension_numbers<[1], [0], [0], [1], [0, 0, 1, 1], [], []>} : vector<3x64xf32>, vector<64x512xf32>, vector<3x512xf32> -> vector<3x512xf32>
    %219 = vector.broadcast %8 : vector<3x1xf32> to vector<3x512xf32>
    %220 = arith.addf %218, %219 : vector<3x512xf32>
    %cst_134 = arith.constant 1.000000e-07 : f32
    %cst_135 = arith.constant 0.99999988 : f32
    %221 = vector.broadcast %cst_134 : f32 to vector<3x512xf32>
    %222 = arith.maximumf %221, %220 : vector<3x512xf32>
    %223 = vector.broadcast %cst_135 : f32 to vector<3x512xf32>
    %224 = arith.minimumf %223, %222 : vector<3x512xf32>
    %cst_136 = arith.constant 1.000000e+00 : f32
    %225 = vector.broadcast %cst_136 : f32 to vector<3x512xf32>
    %226 = arith.subf %225, %224 : vector<3x512xf32>
    %227 = arith.mulf %12, %226 : vector<3x512xf32>
    %228 = arith.addf %224, %227 : vector<3x512xf32>
    %229 = arith.divf %224, %228 : vector<3x512xf32>
    %c1_137 = arith.constant 1 : index
    %c0_138 = arith.constant 0 : index
    %c0_139 = arith.constant 0 : index
    %230 = vector.load %arg12[%c1_137, %c0_138, %c0_139] : memref<2x3x512xf32, #tpu.memory_space<vmem>>, vector<1x3x512xf32>
    %231 = vector.shape_cast %230 : vector<1x3x512xf32> to vector<3x512xf32>
    %232 = vector.shape_cast %229 : vector<3x512xf32> to vector<1x3x512xf32>
    tpu.vector_store %arg12[%c1_137, %c0_138, %c0_139], %232 {strides = array<i32>} : memref<2x3x512xf32, #tpu.memory_space<vmem>>, vector<1x3x512xf32>,
    return
  }
  func.func @transform_0(%arg0: i32) -> (i32, i32, i32) {
    %c0_i32 = arith.constant 0 : i32
    %c0_i32_0 = arith.constant 0 : i32
    %c0_i32_1 = arith.constant 0 : i32
    %c0_i32_2 = arith.constant 0 : i32
    return %c0_i32, %c0_i32_0, %c0_i32_1 : i32, i32, i32
  }
  func.func @transform_1(%arg0: i32) -> (i32, i32, i32) {
    %c0_i32 = arith.constant 0 : i32
    %c0_i32_0 = arith.constant 0 : i32
    %c0_i32_1 = arith.constant 0 : i32
    %c0_i32_2 = arith.constant 0 : i32
    return %c0_i32, %c0_i32_0, %c0_i32_1 : i32, i32, i32
  }
  func.func @transform_2(%arg0: i32) -> (i32, i32) {
    %c0_i32 = arith.constant 0 : i32
    %c0_i32_0 = arith.constant 0 : i32
    return %c0_i32, %arg0 : i32, i32
  }
  func.func @transform_3(%arg0: i32) -> (i32, i32) {
    %c0_i32 = arith.constant 0 : i32
    %c0_i32_0 = arith.constant 0 : i32
    return %c0_i32, %arg0 : i32, i32
  }
  func.func @transform_4(%arg0: i32) -> (i32, i32) {
    %c0_i32 = arith.constant 0 : i32
    %c0_i32_0 = arith.constant 0 : i32
    return %c0_i32, %arg0 : i32, i32
  }
  func.func @transform_5(%arg0: i32) -> (i32, i32) {
    %c0_i32 = arith.constant 0 : i32
    %c0_i32_0 = arith.constant 0 : i32
    %c0_i32_1 = arith.constant 0 : i32
    return %c0_i32, %c0_i32_0 : i32, i32
  }
  func.func @transform_6(%arg0: i32) -> (i32, i32) {
    %c0_i32 = arith.constant 0 : i32
    %c0_i32_0 = arith.constant 0 : i32
    %c0_i32_1 = arith.constant 0 : i32
    return %c0_i32, %c0_i32_0 : i32, i32
  }
  func.func @transform_7(%arg0: i32) -> (i32, i32) {
    %c0_i32 = arith.constant 0 : i32
    %c0_i32_0 = arith.constant 0 : i32
    %c0_i32_1 = arith.constant 0 : i32
    return %c0_i32, %c0_i32_0 : i32, i32
  }
  func.func @transform_8(%arg0: i32) -> (i32, i32) {
    %c0_i32 = arith.constant 0 : i32
    %c0_i32_0 = arith.constant 0 : i32
    %c0_i32_1 = arith.constant 0 : i32
    return %c0_i32, %c0_i32_0 : i32, i32
  }
  func.func @transform_9(%arg0: i32) -> (i32, i32) {
    %c0_i32 = arith.constant 0 : i32
    %c0_i32_0 = arith.constant 0 : i32
    %c0_i32_1 = arith.constant 0 : i32
    return %c0_i32, %c0_i32_0 : i32, i32
  }
  func.func @transform_10(%arg0: i32) -> (i32, i32) {
    %c0_i32 = arith.constant 0 : i32
    %c0_i32_0 = arith.constant 0 : i32
    %c0_i32_1 = arith.constant 0 : i32
    return %c0_i32, %c0_i32_0 : i32, i32
  }
  func.func @transform_11(%arg0: i32) -> (i32, i32, i32) {
    %c0_i32 = arith.constant 0 : i32
    %c0_i32_0 = arith.constant 0 : i32
    %c0_i32_1 = arith.constant 0 : i32
    return %c0_i32, %c0_i32_0, %arg0 : i32, i32, i32
  }
}

</mosaic_0001>

<llo_original>
// kernel: tpu_custom_call.1
$region0: #{tpu_custom_call.1}
  #allocation0 [shape = 'u32[]', space=smem, size = 0x4, offset = 0x4, fixed_abs, tag = 'smem constant byte address 0x4 - core index']
  #allocation1 [shape = 'u32[72,128]{1,0:T(1,128)}', space=vmem, size = 0x9000, scoped, tag = 'internal scratch']
  #allocation2 [shape = 'f32[16,512]{1,0:T(8,128)}', space=vmem, size = 0x8000, scoped, tag = 'scratch operand']
  %s0 = inlined_call_operand.vmem [shape: f32[2,3,1], index: 0, kind: input, shape index: {}]
  %s1 = inlined_call_operand.vmem [shape: f32[2,64,1], index: 1, kind: input, shape index: {}]
  %s2 = inlined_call_operand.hbm [shape: f32[32,1024], index: 2, kind: input, shape index: {}]
  %s3 = inlined_call_operand.vmem [shape: f32[3,1024], index: 3, kind: input, shape index: {}]
  %s4 = inlined_call_operand.vmem [shape: f32[3,1024], index: 4, kind: input, shape index: {}]
  %s5 = inlined_call_operand.vmem [shape: f32[64,32], index: 5, kind: input, shape index: {}]
  %s6 = inlined_call_operand.vmem [shape: f32[64,16], index: 6, kind: input, shape index: {}]
  %s7 = inlined_call_operand.vmem [shape: f32[64,64], index: 7, kind: input, shape index: {}]
  %s8 = inlined_call_operand.vmem [shape: f32[64,1], index: 8, kind: input, shape index: {}]
  %s9 = inlined_call_operand.vmem [shape: f32[3,64], index: 9, kind: input, shape index: {}]
  %s10 = inlined_call_operand.vmem [shape: f32[3,1], index: 10, kind: input, shape index: {}]
  %s11 = inlined_call_operand.vmem [shape: f32[2,3,1024], index: 11, kind: output, shape index: {}]
  %s12 = sld [smem:[#allocation0]]
  $region100: #{tpu_custom_call.1} parent=0
    _
  %s14 = ssub.s32 1, %s12
  %s15 = scalar_select 0, %s14, %s12
  $region1: #{tpu_custom_call.1} parent=0
    #allocation3 [shape = 'u8[131072]{0}', space=vmem, size = 0x20000, scoped, tag = 'input window, operand 2']
    #allocation4 [shape = 's32[2]{0}', space=sflag, size = 0x8, scoped, tag = 'scoped memory for tpu_custom_call.1']
    #allocation5 [shape = 'u8[32768]{0}', space=vmem, size = 0x8000, scoped, tag = 'output window, operand 0']
    %16 = vsyncpa [#allocation4], 0
    %s17 = scalar_lea.sflag [#allocation4], 1
    %18 = vsyncpa %s17, 0
    loop: start=0, step=1, limit=4
    $region2: #{tpu_custom_call.1} parent=1 // loop_pre_header
      _
    $region3: #{tpu_custom_call.1} parent=1 // loop_header
      %s20 = sphi 0, %s24
      %p21 = scmp.ge.s32.totalorder %s20, 4
      %s28 = sphi 0, %s28
      %s30 = sphi 0, %s28
      %s31 = sphi 0, %s30
      %s45 = sphi 0, %s31
      %s49 = sphi 0, %s49
      %s51 = sphi 0, %s49
      %s52 = sphi 0, %s51
      %s66 = sphi 0, %s52
      %s72 = sphi 0, %s74
      %s75 = sphi 0, %s72
      %s76 = sphi 0, %s75
      %s92 = sphi 0, %s76
      %s98 = sphi 0, %s100
      %s101 = sphi 0, %s98
      %s102 = sphi 0, %s101
      %s118 = sphi 0, %s102
      %s124 = sphi 0, %s126
      %s127 = sphi 0, %s124
      %s128 = sphi 0, %s127
      %s144 = sphi 0, %s128
      %s148 = sphi 0, %s148
      %s150 = sphi 0, %s148
      %s151 = sphi 0, %s150
      %s165 = sphi 0, %s151
      %s169 = sphi 0, %s169
      %s171 = sphi 0, %s169
      %s172 = sphi 0, %s171
      %s186 = sphi 0, %s172
      %s190 = sphi 0, %s190
      %s192 = sphi 0, %s190
      %s193 = sphi 0, %s192
      %s207 = sphi 0, %s193
      %s211 = sphi 0, %s211
      %s213 = sphi 0, %s211
      %s214 = sphi 0, %s213
      %s228 = sphi 0, %s214
      %s232 = sphi 0, %s232
      %s234 = sphi 0, %s232
      %s235 = sphi 0, %s234
      %s249 = sphi 0, %s235
      %s253 = sphi 0, %s253
      %s255 = sphi 0, %s253
      %s256 = sphi 0, %s255
      %s270 = sphi 0, %s256
      %s276 = sphi 0, %s278
      %s279 = sphi 0, %s276
      %s280 = sphi 0, %s279
      %s296 = sphi 0, %s280
    $region4: #{tpu_custom_call.1} parent=1 // loop_header_branch
      %23 = sbr.rel (%p21) target = $region8
    $region5: #{tpu_custom_call.1} parent=1 // loop_body
      %s25 = ssub.s32 %s20, 1
      %s26 = ssub.s32 %s20, 2
      %s27 = sadd.s32 %s20, 1
      %s29 = sadd.s32 %s28, 1
      %p32 = scmp.eq.s32.totalorder %s20, 1
      %p33 = scmp.ne.s32.totalorder %s28, %s30
      %p34 = scmp.eq.s32.totalorder %s20, 0
      %p35 = por %p33, %p34
      %p36 = scmp.ne.s32.totalorder %s28, %s30
      %p37 = scmp.eq.s32.totalorder %s25, 1
      %p38 = por %p36, %p37
      %p39 = scmp.ne.s32.totalorder %s30, %s31
      %p40 = scmp.eq.s32.totalorder %s25, 0
      %p41 = por %p39, %p40
      %p42 = scmp.ne.s32.totalorder %s30, %s31
      %p43 = scmp.eq.s32.totalorder %s26, 1
      %p44 = por %p42, %p43
      %p46 = scmp.ne.s32.totalorder %s31, %s45
      %p47 = scmp.eq.s32.totalorder %s26, 0
      %p48 = por %p46, %p47
      %s50 = sadd.s32 %s49, 1
      %p53 = scmp.eq.s32.totalorder %s20, 1
      %p54 = scmp.ne.s32.totalorder %s49, %s51
      %p55 = scmp.eq.s32.totalorder %s20, 0
      %p56 = por %p54, %p55
      %p57 = scmp.ne.s32.totalorder %s49, %s51
      %p58 = scmp.eq.s32.totalorder %s25, 1
      %p59 = por %p57, %p58
      %p60 = scmp.ne.s32.totalorder %s51, %s52
      %p61 = scmp.eq.s32.totalorder %s25, 0
      %p62 = por %p60, %p61
      %p63 = scmp.ne.s32.totalorder %s51, %s52
      %p64 = scmp.eq.s32.totalorder %s26, 1
      %p65 = por %p63, %p64
      %p67 = scmp.ne.s32.totalorder %s52, %s66
      %p68 = scmp.eq.s32.totalorder %s26, 0
      %p69 = por %p67, %p68
      %s70 = ssub.s32 %s20, %s27
      %p71 = scmp.eq.s32.totalorder %s70, 0
      %s73 = sadd.s32 %s72, 1
      %s74 = scalar_select %p71, %s72, %s73
      %p77 = pneg %p71
      %p78 = scmp.eq.s32.totalorder %s20, 1
      %p79 = por %p77, %p78
      %p80 = scmp.ne.s32.totalorder %s72, %s75
      %p81 = scmp.eq.s32.totalorder %s20, 0
      %p82 = por %p80, %p81
      %p83 = scmp.ne.s32.totalorder %s72, %s75
      %p84 = scmp.eq.s32.totalorder %s25, 1
      %p85 = por %p83, %p84
      %p86 = scmp.ne.s32.totalorder %s75, %s76
      %p87 = scmp.eq.s32.totalorder %s25, 0
      %p88 = por %p86, %p87
      %p89 = scmp.ne.s32.totalorder %s75, %s76
      %p90 = scmp.eq.s32.totalorder %s26, 1
      %p91 = por %p89, %p90
      %p93 = scmp.ne.s32.totalorder %s76, %s92
      %p94 = scmp.eq.s32.totalorder %s26, 0
      %p95 = por %p93, %p94
      %s96 = ssub.s32 %s20, %s27
      %p97 = scmp.eq.s32.totalorder %s96, 0
      %s99 = sadd.s32 %s98, 1
      %s100 = scalar_select %p97, %s98, %s99
      %p103 = pneg %p97
      %p104 = scmp.eq.s32.totalorder %s20, 1
      %p105 = por %p103, %p104
      %p106 = scmp.ne.s32.totalorder %s98, %s101
      %p107 = scmp.eq.s32.totalorder %s20, 0
      %p108 = por %p106, %p107
      %p109 = scmp.ne.s32.totalorder %s98, %s101
      %p110 = scmp.eq.s32.totalorder %s25, 1
      %p111 = por %p109, %p110
      %p112 = scmp.ne.s32.totalorder %s101, %s102
      %p113 = scmp.eq.s32.totalorder %s25, 0
      %p114 = por %p112, %p113
      %p115 = scmp.ne.s32.totalorder %s101, %s102
      %p116 = scmp.eq.s32.totalorder %s26, 1
      %p117 = por %p115, %p116
      %p119 = scmp.ne.s32.totalorder %s102, %s118
      %p120 = scmp.eq.s32.totalorder %s26, 0
      %p121 = por %p119, %p120
      %s122 = ssub.s32 %s20, %s27
      %p123 = scmp.eq.s32.totalorder %s122, 0
      %s125 = sadd.s32 %s124, 1
      %s126 = scalar_select %p123, %s124, %s125
      %p129 = pneg %p123
      %p130 = scmp.eq.s32.totalorder %s20, 1
      %p131 = por %p129, %p130
      %p132 = scmp.ne.s32.totalorder %s124, %s127
      %p133 = scmp.eq.s32.totalorder %s20, 0
      %p134 = por %p132, %p133
      %p135 = scmp.ne.s32.totalorder %s124, %s127
      %p136 = scmp.eq.s32.totalorder %s25, 1
      %p137 = por %p135, %p136
      %p138 = scmp.ne.s32.totalorder %s127, %s128
      %p139 = scmp.eq.s32.totalorder %s25, 0
      %p140 = por %p138, %p139
      %p141 = scmp.ne.s32.totalorder %s127, %s128
      %p142 = scmp.eq.s32.totalorder %s26, 1
      %p143 = por %p141, %p142
      %p145 = scmp.ne.s32.totalorder %s128, %s144
      %p146 = scmp.eq.s32.totalorder %s26, 0
      %p147 = por %p145, %p146
      %s149 = sadd.s32 %s148, 1
      %p152 = scmp.eq.s32.totalorder %s20, 1
      %p153 = scmp.ne.s32.totalorder %s148, %s150
      %p154 = scmp.eq.s32.totalorder %s20, 0
      %p155 = por %p153, %p154
      %p156 = scmp.ne.s32.totalorder %s148, %s150
      %p157 = scmp.eq.s32.totalorder %s25, 1
      %p158 = por %p156, %p157
      %p159 = scmp.ne.s32.totalorder %s150, %s151
      %p160 = scmp.eq.s32.totalorder %s25, 0
      %p161 = por %p159, %p160
      %p162 = scmp.ne.s32.totalorder %s150, %s151
      %p163 = scmp.eq.s32.totalorder %s26, 1
      %p164 = por %p162, %p163
      %p166 = scmp.ne.s32.totalorder %s151, %s165
      %p167 = scmp.eq.s32.totalorder %s26, 0
      %p168 = por %p166, %p167
      %s170 = sadd.s32 %s169, 1
      %p173 = scmp.eq.s32.totalorder %s20, 1
      %p174 = scmp.ne.s32.totalorder %s169, %s171
      %p175 = scmp.eq.s32.totalorder %s20, 0
      %p176 = por %p174, %p175
      %p177 = scmp.ne.s32.totalorder %s169, %s171
      %p178 = scmp.eq.s32.totalorder %s25, 1
      %p179 = por %p177, %p178
      %p180 = scmp.ne.s32.totalorder %s171, %s172
      %p181 = scmp.eq.s32.totalorder %s25, 0
      %p182 = por %p180, %p181
      %p183 = scmp.ne.s32.totalorder %s171, %s172
      %p184 = scmp.eq.s32.totalorder %s26, 1
      %p185 = por %p183, %p184
      %p187 = scmp.ne.s32.totalorder %s172, %s186
      %p188 = scmp.eq.s32.totalorder %s26, 0
      %p189 = por %p187, %p188
      %s191 = sadd.s32 %s190, 1
      %p194 = scmp.eq.s32.totalorder %s20, 1
      %p195 = scmp.ne.s32.totalorder %s190, %s192
      %p196 = scmp.eq.s32.totalorder %s20, 0
      %p197 = por %p195, %p196
      %p198 = scmp.ne.s32.totalorder %s190, %s192
      %p199 = scmp.eq.s32.totalorder %s25, 1
      %p200 = por %p198, %p199
      %p201 = scmp.ne.s32.totalorder %s192, %s193
      %p202 = scmp.eq.s32.totalorder %s25, 0
      %p203 = por %p201, %p202
      %p204 = scmp.ne.s32.totalorder %s192, %s193
      %p205 = scmp.eq.s32.totalorder %s26, 1
      %p206 = por %p204, %p205
      %p208 = scmp.ne.s32.totalorder %s193, %s207
      %p209 = scmp.eq.s32.totalorder %s26, 0
      %p210 = por %p208, %p209
      %s212 = sadd.s32 %s211, 1
      %p215 = scmp.eq.s32.totalorder %s20, 1
      %p216 = scmp.ne.s32.totalorder %s211, %s213
      %p217 = scmp.eq.s32.totalorder %s20, 0
      %p218 = por %p216, %p217
      %p219 = scmp.ne.s32.totalorder %s211, %s213
      %p220 = scmp.eq.s32.totalorder %s25, 1
      %p221 = por %p219, %p220
      %p222 = scmp.ne.s32.totalorder %s213, %s214
      %p223 = scmp.eq.s32.totalorder %s25, 0
      %p224 = por %p222, %p223
      %p225 = scmp.ne.s32.totalorder %s213, %s214
      %p226 = scmp.eq.s32.totalorder %s26, 1
      %p227 = por %p225, %p226
      %p229 = scmp.ne.s32.totalorder %s214, %s228
      %p230 = scmp.eq.s32.totalorder %s26, 0
      %p231 = por %p229, %p230
      %s233 = sadd.s32 %s232, 1
      %p236 = scmp.eq.s32.totalorder %s20, 1
      %p237 = scmp.ne.s32.totalorder %s232, %s234
      %p238 = scmp.eq.s32.totalorder %s20, 0
      %p239 = por %p237, %p238
      %p240 = scmp.ne.s32.totalorder %s232, %s234
      %p241 = scmp.eq.s32.totalorder %s25, 1
      %p242 = por %p240, %p241
      %p243 = scmp.ne.s32.totalorder %s234, %s235
      %p244 = scmp.eq.s32.totalorder %s25, 0
      %p245 = por %p243, %p244
      %p246 = scmp.ne.s32.totalorder %s234, %s235
      %p247 = scmp.eq.s32.totalorder %s26, 1
      %p248 = por %p246, %p247
      %p250 = scmp.ne.s32.totalorder %s235, %s249
      %p251 = scmp.eq.s32.totalorder %s26, 0
      %p252 = por %p250, %p251
      %s254 = sadd.s32 %s253, 1
      %p257 = scmp.eq.s32.totalorder %s20, 1
      %p258 = scmp.ne.s32.totalorder %s253, %s255
      %p259 = scmp.eq.s32.totalorder %s20, 0
      %p260 = por %p258, %p259
      %p261 = scmp.ne.s32.totalorder %s253, %s255
      %p262 = scmp.eq.s32.totalorder %s25, 1
      %p263 = por %p261, %p262
      %p264 = scmp.ne.s32.totalorder %s255, %s256
      %p265 = scmp.eq.s32.totalorder %s25, 0
      %p266 = por %p264, %p265
      %p267 = scmp.ne.s32.totalorder %s255, %s256
      %p268 = scmp.eq.s32.totalorder %s26, 1
      %p269 = por %p267, %p268
      %p271 = scmp.ne.s32.totalorder %s256, %s270
      %p272 = scmp.eq.s32.totalorder %s26, 0
      %p273 = por %p271, %p272
      %s274 = ssub.s32 %s20, %s27
      %p275 = scmp.eq.s32.totalorder %s274, 0
      %s277 = sadd.s32 %s276, 1
      %s278 = scalar_select %p275, %s276, %s277
      %p281 = pneg %p275
      %p282 = scmp.eq.s32.totalorder %s20, 1
      %p283 = por %p281, %p282
      %p284 = scmp.ne.s32.totalorder %s276, %s279
      %p285 = scmp.eq.s32.totalorder %s20, 0
      %p286 = por %p284, %p285
      %p287 = scmp.ne.s32.totalorder %s276, %s279
      %p288 = scmp.eq.s32.totalorder %s25, 1
      %p289 = por %p287, %p288
      %p290 = scmp.ne.s32.totalorder %s279, %s280
      %p291 = scmp.eq.s32.totalorder %s25, 0
      %p292 = por %p290, %p291
      %p293 = scmp.ne.s32.totalorder %s279, %s280
      %p294 = scmp.eq.s32.totalorder %s26, 1
      %p295 = por %p293, %p294
      %p297 = scmp.ne.s32.totalorder %s280, %s296
      %p298 = scmp.eq.s32.totalorder %s26, 0
      %p299 = por %p297, %p298
      %p300 = scmp.le.s32.totalorder 1, %s20
      %p301 = scmp.lt.s32.totalorder %s20, 3
      %p302 = pnand %p300, %p301
      %p303 = pneg %p302
      // Predicated region
      $region9: #{tpu_custom_call.1} parent=5 // pred_check
        _
      $region10: #{tpu_custom_call.1} parent=5 // pred_check_branch
        %305 = sbr.rel (%p302) target = $region12
      $region11: #{tpu_custom_call.1} parent=5 // pred_region
        %s306 = ssub.s32 %s20, 1
        // Predicated region
        $region13: #{tpu_custom_call.1} parent=11 // pred_check
          %p307 = pneg %p41
        $region14: #{tpu_custom_call.1} parent=11 // pred_check_branch
          %309 = sbr.rel (%p307) target = $region16
        $region15: #{tpu_custom_call.1} parent=11 // pred_region
          _
        $region16: #{tpu_custom_call.1} parent=11 // pred_fallthru
          _
        // Predicated region
        $region17: #{tpu_custom_call.1} parent=11 // pred_check
          %p310 = pneg %p62
        $region18: #{tpu_custom_call.1} parent=11 // pred_check_branch
          %312 = sbr.rel (%p310) target = $region20
        $region19: #{tpu_custom_call.1} parent=11 // pred_region
          _
        $region20: #{tpu_custom_call.1} parent=11 // pred_fallthru
          _
        // Predicated region
        $region21: #{tpu_custom_call.1} parent=11 // pred_check
          %p313 = pneg %p161
        $region22: #{tpu_custom_call.1} parent=11 // pred_check_branch
          %315 = sbr.rel (%p313) target = $region24
        $region23: #{tpu_custom_call.1} parent=11 // pred_region
          _
        $region24: #{tpu_custom_call.1} parent=11 // pred_fallthru
          _
        // Predicated region
        $region25: #{tpu_custom_call.1} parent=11 // pred_check
          %p316 = pneg %p182
        $region26: #{tpu_custom_call.1} parent=11 // pred_check_branch
          %318 = sbr.rel (%p316) target = $region28
        $region27: #{tpu_custom_call.1} parent=11 // pred_region
          _
        $region28: #{tpu_custom_call.1} parent=11 // pred_fallthru
          _
        // Predicated region
        $region29: #{tpu_custom_call.1} parent=11 // pred_check
          %p319 = pneg %p203
        $region30: #{tpu_custom_call.1} parent=11 // pred_check_branch
          %321 = sbr.rel (%p319) target = $region32
        $region31: #{tpu_custom_call.1} parent=11 // pred_region
          _
        $region32: #{tpu_custom_call.1} parent=11 // pred_fallthru
          _
        // Predicated region
        $region33: #{tpu_custom_call.1} parent=11 // pred_check
          %p322 = pneg %p224
        $region34: #{tpu_custom_call.1} parent=11 // pred_check_branch
          %324 = sbr.rel (%p322) target = $region36
        $region35: #{tpu_custom_call.1} parent=11 // pred_region
          _
        $region36: #{tpu_custom_call.1} parent=11 // pred_fallthru
          _
        // Predicated region
        $region37: #{tpu_custom_call.1} parent=11 // pred_check
          %p325 = pneg %p245
        $region38: #{tpu_custom_call.1} parent=11 // pred_check_branch
          %327 = sbr.rel (%p325) target = $region40
        $region39: #{tpu_custom_call.1} parent=11 // pred_region
          _
        $region40: #{tpu_custom_call.1} parent=11 // pred_fallthru
          _
        // Predicated region
        $region41: #{tpu_custom_call.1} parent=11 // pred_check
          %p328 = pneg %p266
        $region42: #{tpu_custom_call.1} parent=11 // pred_check_branch
          %330 = sbr.rel (%p328) target = $region44
        $region43: #{tpu_custom_call.1} parent=11 // pred_region
          _
        $region44: #{tpu_custom_call.1} parent=11 // pred_fallthru
          _
      $region12: #{tpu_custom_call.1} parent=5 // pred_fallthru
        _
      %p331 = scmp.lt.s32.totalorder %s20, 2
      // Predicated region
      $region45: #{tpu_custom_call.1} parent=5 // pred_check
        %p332 = pneg %p331
      $region46: #{tpu_custom_call.1} parent=5 // pred_check_branch
        %334 = sbr.rel (%p332) target = $region48
      $region47: #{tpu_custom_call.1} parent=5 // pred_region
        // Predicated region
        $region49: #{tpu_custom_call.1} parent=47 // pred_check
          %p335 = pneg %p82
        $region50: #{tpu_custom_call.1} parent=47 // pred_check_branch
          %337 = sbr.rel (%p335) target = $region52
        $region51: #{tpu_custom_call.1} parent=47 // pred_region
          %s338 = sand.u32 %s72, 1
          %s339 = scalar_lea.sflag [#allocation4], %s338
          %s340 = sand.u32 %s72, 1
          %s341 = smul.addr %s340, 128
          %s342 = scalar_lea.vmem [#allocation3], %s341
          %s343 = smul.u32 4, %s20
          %345 = vsyncadd %s339, 0
          %s346 = smul.addr %s343, 8
          %s347 = scalar_lea.hbm %s2, %s346
          %s348 = sshll.u32 %s347, 4
          %s349 = int_to_ptr.hbm [resolvable:$true] %s348
          %s350 = sshll.u32 %s342, 4
          %s351 = int_to_ptr.vmem [resolvable:$true] %s350
          %356 = dma.hbm_to_vmem [thread:$0]  %s349, 2048, %s351, %s339, 1024, 512, 32
        $region52: #{tpu_custom_call.1} parent=47 // pred_fallthru
          _
        // Predicated region
        $region53: #{tpu_custom_call.1} parent=47 // pred_check
          %p357 = pneg %p108
        $region54: #{tpu_custom_call.1} parent=47 // pred_check_branch
          %359 = sbr.rel (%p357) target = $region56
        $region55: #{tpu_custom_call.1} parent=47 // pred_region
          %s360 = smul.u32 4, %s20
          %p361 = scmp.lt.s32.totalorder %s360, 7
          %s362 = scalar_select %p361, %s360, 7
          %s363 = smul.addr %s362, 4
          %s364 = scalar_lea.vmem %s3, %s363
          %s365 = smul.u32 4, %s20
        $region56: #{tpu_custom_call.1} parent=47 // pred_fallthru
          _
        // Predicated region
        $region57: #{tpu_custom_call.1} parent=47 // pred_check
          %p366 = pneg %p134
        $region58: #{tpu_custom_call.1} parent=47 // pred_check_branch
          %368 = sbr.rel (%p366) target = $region60
        $region59: #{tpu_custom_call.1} parent=47 // pred_region
          %s369 = smul.u32 4, %s20
          %p370 = scmp.lt.s32.totalorder %s369, 7
          %s371 = scalar_select %p370, %s369, 7
          %s372 = smul.addr %s371, 4
          %s373 = scalar_lea.vmem %s4, %s372
          %s374 = smul.u32 4, %s20
        $region60: #{tpu_custom_call.1} parent=47 // pred_fallthru
          _
      $region48: #{tpu_custom_call.1} parent=5 // pred_fallthru
        _
      %p375 = scmp.le.s32.totalorder 1, %s20
      %p376 = scmp.lt.s32.totalorder %s20, 3
      %p377 = pnand %p375, %p376
      %p378 = pneg %p377
      // Predicated region
      $region61: #{tpu_custom_call.1} parent=5 // pred_check
        _
      $region62: #{tpu_custom_call.1} parent=5 // pred_check_branch
        %380 = sbr.rel (%p377) target = $region64
      $region63: #{tpu_custom_call.1} parent=5 // pred_region
        %s381 = ssub.s32 %s20, 1
        %s382 = sand.u32 %s75, 1
        %s383 = scalar_lea.sflag [#allocation4], %s382
        %s384 = sand.u32 %s75, 1
        %s385 = smul.addr %s384, 128
        %s386 = scalar_lea.vmem [#allocation3], %s385
        // Predicated region
        $region65: #{tpu_custom_call.1} parent=63 // pred_check
          %p387 = pneg %p88
        $region66: #{tpu_custom_call.1} parent=63 // pred_check_branch
          %389 = sbr.rel (%p387) target = $region68
        $region67: #{tpu_custom_call.1} parent=63 // pred_region
          %391 = dma.done %s383, 2048
        $region68: #{tpu_custom_call.1} parent=63 // pred_fallthru
          _
        %p392 = pneg %p41
        %p393 = pneg %p38
        %p394 = pneg %p62
        %p395 = pneg %p59
        %s396 = sand.u32 %s75, 1
        %s397 = scalar_lea.sflag [#allocation4], %s396
        %s398 = sand.u32 %s75, 1
        %s399 = smul.addr %s398, 128
        %s400 = scalar_lea.vmem [#allocation3], %s399
        %p401 = pneg %p88
        %p402 = pneg %p85
        %s403 = smul.u32 4, %s25
        %p404 = scmp.lt.s32.totalorder %s403, 7
        %s405 = scalar_select %p404, %s403, 7
        %s406 = smul.addr %s405, 4
        %s407 = scalar_lea.vmem %s3, %s406
        %p408 = pneg %p114
        %p409 = pneg %p111
        %s410 = smul.u32 4, %s25
        %p411 = scmp.lt.s32.totalorder %s410, 7
        %s412 = scalar_select %p411, %s410, 7
        %s413 = smul.addr %s412, 4
        %s414 = scalar_lea.vmem %s4, %s413
        %p415 = pneg %p140
        %p416 = pneg %p137
        %p417 = pneg %p161
        %p418 = pneg %p158
        %p419 = pneg %p182
        %p420 = pneg %p179
        %p421 = pneg %p203
        %p422 = pneg %p200
        %p423 = pneg %p224
        %p424 = pneg %p221
        %p425 = pneg %p245
        %p426 = pneg %p242
        %p427 = pneg %p266
        %p428 = pneg %p263
        %p429 = pneg %p292
        %p430 = pneg %p289
        %s431 = sand.u32 %s279, 1
        %s432 = sand.u32 %s279, 1
        %s433 = smul.addr %s432, 32
        %s434 = scalar_lea.vmem [#allocation5], %s433
        %s435 = smul.u32 4, %s25
        %s436 = smul.u32 4, %s25
        %p437 = scmp.lt.s32.totalorder %s436, 7
        %s438 = scalar_select %p437, %s436, 7
        %s439 = smul.addr %s438, 4
        %s440 = scalar_lea.vmem %s3, %s439
        %s441 = smul.u32 4, %s25
        %s442 = smul.u32 4, %s25
        %p443 = scmp.lt.s32.totalorder %s442, 7
        %s444 = scalar_select %p443, %s442, 7
        %s445 = smul.addr %s444, 4
        %s446 = scalar_lea.vmem %s4, %s445
        %s447 = smul.u32 4, %s25
        %s448 = smul.u32 4, %s25
        %v449 = vld [vmem:[%s386] sm:$0xff]
        %v450 = vld [vmem:[%s386 + $0x8] sm:$0xff]
        %v451 = vld [vmem:[%s386 + $0x10] sm:$0xff]
        %v452 = vld [vmem:[%s386 + $0x18] sm:$0xff]
        %v453 = vld [vmem:[%s386 + $0x20] sm:$0xff]
        %v454 = vld [vmem:[%s386 + $0x28] sm:$0xff]
        %v455 = vld [vmem:[%s386 + $0x30] sm:$0xff]
        %v456 = vld [vmem:[%s386 + $0x38] sm:$0xff]
        %v457 = vld [vmem:[%s386 + $0x40] sm:$0xff]
        %v458 = vld [vmem:[%s386 + $0x48] sm:$0xff]
        %v459 = vld [vmem:[%s386 + $0x50] sm:$0xff]
        %v460 = vld [vmem:[%s386 + $0x58] sm:$0xff]
        %v461 = vld [vmem:[%s386 + $0x60] sm:$0xff]
        %v462 = vld [vmem:[%s386 + $0x68] sm:$0xff]
        %v463 = vld [vmem:[%s386 + $0x70] sm:$0xff]
        %v464 = vld [vmem:[%s386 + $0x78] sm:$0xff]
        %v465 = vld [vmem:[%s440] sm:$0x77]
        %v466 = vld [vmem:[%s440 + $0x8] sm:$0x77]
        %v467 = vld [vmem:[%s446] sm:$0x77]
        %v468 = vld [vmem:[%s446 + $0x8] sm:$0x77]
        %v469 = vld [vmem:[%s5] sm:$0xff]
        %v470 = vld [vmem:[%s5 + $0x8] sm:$0xff]
        %v471 = vld [vmem:[%s5 + $0x10] sm:$0xff]
        %v472 = vld [vmem:[%s5 + $0x18] sm:$0xff]
        %v473 = vld [vmem:[%s5 + $0x20] sm:$0xff]
        %v474 = vld [vmem:[%s5 + $0x28] sm:$0xff]
        %v475 = vld [vmem:[%s5 + $0x30] sm:$0xff]
        %v476 = vld [vmem:[%s5 + $0x38] sm:$0xff]
        %v477 = vld [vmem:[%s6] sm:$0xff]
        %v478 = vld [vmem:[%s6 + $0x8] sm:$0xff]
        %v479 = vld [vmem:[%s6 + $0x10] sm:$0xff]
        %v480 = vld [vmem:[%s6 + $0x18] sm:$0xff]
        %v481 = vld [vmem:[%s6 + $0x20] sm:$0xff]
        %v482 = vld [vmem:[%s6 + $0x28] sm:$0xff]
        %v483 = vld [vmem:[%s6 + $0x30] sm:$0xff]
        %v484 = vld [vmem:[%s6 + $0x38] sm:$0xff]
        %v485 = vld [vmem:[%s7] sm:$0xff]
        %v486 = vld [vmem:[%s7 + $0x8] sm:$0xff]
        %v487 = vld [vmem:[%s7 + $0x10] sm:$0xff]
        %v488 = vld [vmem:[%s7 + $0x18] sm:$0xff]
        %v489 = vld [vmem:[%s7 + $0x20] sm:$0xff]
        %v490 = vld [vmem:[%s7 + $0x28] sm:$0xff]
        %v491 = vld [vmem:[%s7 + $0x30] sm:$0xff]
        %v492 = vld [vmem:[%s7 + $0x38] sm:$0xff]
        %v493 = vld [vmem:[%s8] sm:$0xff]
        %v494 = vld [vmem:[%s8 + $0x8] sm:$0xff]
        %v495 = vld [vmem:[%s8 + $0x10] sm:$0xff]
        %v496 = vld [vmem:[%s8 + $0x18] sm:$0xff]
        %v497 = vld [vmem:[%s8 + $0x20] sm:$0xff]
        %v498 = vld [vmem:[%s8 + $0x28] sm:$0xff]
        %v499 = vld [vmem:[%s8 + $0x30] sm:$0xff]
        %v500 = vld [vmem:[%s8 + $0x38] sm:$0xff]
        %v501 = vld [vmem:[%s9] sm:$0x7]
        %v502 = vld [vmem:[%s10] sm:$0x7]
        %vm503 = vcmask 261120
        %v505 = vsel %vm503, %v469, 0
        %v508 = vsel %vm503, %v470, 0
        %v511 = vsel %vm503, %v471, 0
        %v514 = vsel %vm503, %v472, 0
        %v517 = vsel %vm503, %v473, 0
        %v520 = vsel %vm503, %v474, 0
        %v523 = vsel %vm503, %v475, 0
        %v526 = vsel %vm503, %v476, 0
        %528 = vmatpush.msra.mxu0 0.0
        %529 = vmatpush.msra.mxu0 0.0
        %530 = vmatpush.msra.mxu0 0.0
        %531 = vmatpush.msra.mxu0 0.0
        %532 = vmatpush.msra.mxu0 0.0
        %533 = vmatpush.msra.mxu0 0.0
        %534 = vmatpush.msra.mxu0 0.0
        %535 = vmatpush.msra.mxu0 0.0
        %536 = vmatpush.msra.mxu0 0.0
        %537 = vmatpush.msra.mxu0 0.0
        %538 = vmatpush.msra.mxu0 0.0
        %539 = vmatpush.msra.mxu0 0.0
        %540 = vmatpush.msra.mxu0 %v461
        %541 = vmatpush.msra.mxu0 %v457
        %542 = vmatpush.msra.mxu0 %v453
        %543 = vmatpush.msra.mxu0 %v449
        %544 = vmatmul.f32.gmra.mxu0 %v505
        %v545 = vpop.f32.mrf.mxu0
        %v546 = vadd.f32 0.0, %v545
        %547 = vmatmul.f32.gmra.mxu0 %v508
        %v548 = vpop.f32.mrf.mxu0
        %v549 = vadd.f32 0.0, %v548
        %550 = vmatmul.f32.gmra.mxu0 %v511
        %v551 = vpop.f32.mrf.mxu0
        %v552 = vadd.f32 0.0, %v551
        %553 = vmatmul.f32.gmra.mxu0 %v514
        %v554 = vpop.f32.mrf.mxu0
        %v555 = vadd.f32 0.0, %v554
        %556 = vmatmul.f32.gmra.mxu0 %v517
        %v557 = vpop.f32.mrf.mxu0
        %v558 = vadd.f32 0.0, %v557
        %559 = vmatmul.f32.gmra.mxu0 %v520
        %v560 = vpop.f32.mrf.mxu0
        %v561 = vadd.f32 0.0, %v560
        %562 = vmatmul.f32.gmra.mxu0 %v523
        %v563 = vpop.f32.mrf.mxu0
        %v564 = vadd.f32 0.0, %v563
        %565 = vmatmul.f32.gmra.mxu0 %v526
        %v566 = vpop.f32.mrf.mxu0
        %v567 = vadd.f32 0.0, %v566
        %568 = vdwg.mxu0
        %569 = vmatpush.msra.mxu0 0.0
        %570 = vmatpush.msra.mxu0 0.0
        %571 = vmatpush.msra.mxu0 0.0
        %572 = vmatpush.msra.mxu0 0.0
        %573 = vmatpush.msra.mxu0 0.0
        %574 = vmatpush.msra.mxu0 0.0
        %575 = vmatpush.msra.mxu0 0.0
        %576 = vmatpush.msra.mxu0 0.0
        %577 = vmatpush.msra.mxu0 0.0
        %578 = vmatpush.msra.mxu0 0.0
        %579 = vmatpush.msra.mxu0 0.0
        %580 = vmatpush.msra.mxu0 0.0
        %581 = vmatpush.msra.mxu0 %v462
        %582 = vmatpush.msra.mxu0 %v458
        %583 = vmatpush.msra.mxu0 %v454
        %584 = vmatpush.msra.mxu0 %v450
        %585 = vmatmul.f32.gmra.mxu0 %v505
        %v586 = vpop.f32.mrf.mxu0
        %v587 = vadd.f32 0.0, %v586
        %588 = vmatmul.f32.gmra.mxu0 %v508
        %v589 = vpop.f32.mrf.mxu0
        %v590 = vadd.f32 0.0, %v589
        %591 = vmatmul.f32.gmra.mxu0 %v511
        %v592 = vpop.f32.mrf.mxu0
        %v593 = vadd.f32 0.0, %v592
        %594 = vmatmul.f32.gmra.mxu0 %v514
        %v595 = vpop.f32.mrf.mxu0
        %v596 = vadd.f32 0.0, %v595
        %597 = vmatmul.f32.gmra.mxu0 %v517
        %v598 = vpop.f32.mrf.mxu0
        %v599 = vadd.f32 0.0, %v598
        %600 = vmatmul.f32.gmra.mxu0 %v520
        %v601 = vpop.f32.mrf.mxu0
        %v602 = vadd.f32 0.0, %v601
        %603 = vmatmul.f32.gmra.mxu0 %v523
        %v604 = vpop.f32.mrf.mxu0
        %v605 = vadd.f32 0.0, %v604
        %606 = vmatmul.f32.gmra.mxu0 %v526
        %v607 = vpop.f32.mrf.mxu0
        %v608 = vadd.f32 0.0, %v607
        %609 = vdwg.mxu0
        %610 = vmatpush.msra.mxu0 0.0
        %611 = vmatpush.msra.mxu0 0.0
        %612 = vmatpush.msra.mxu0 0.0
        %613 = vmatpush.msra.mxu0 0.0
        %614 = vmatpush.msra.mxu0 0.0
        %615 = vmatpush.msra.mxu0 0.0
        %616 = vmatpush.msra.mxu0 0.0
        %617 = vmatpush.msra.mxu0 0.0
        %618 = vmatpush.msra.mxu0 0.0
        %619 = vmatpush.msra.mxu0 0.0
        %620 = vmatpush.msra.mxu0 0.0
        %621 = vmatpush.msra.mxu0 0.0
        %622 = vmatpush.msra.mxu0 %v463
        %623 = vmatpush.msra.mxu0 %v459
        %624 = vmatpush.msra.mxu0 %v455
        %625 = vmatpush.msra.mxu0 %v451
        %626 = vmatmul.f32.gmra.mxu0 %v505
        %v627 = vpop.f32.mrf.mxu0
        %v628 = vadd.f32 0.0, %v627
        %629 = vmatmul.f32.gmra.mxu0 %v508
        %v630 = vpop.f32.mrf.mxu0
        %v631 = vadd.f32 0.0, %v630
        %632 = vmatmul.f32.gmra.mxu0 %v511
        %v633 = vpop.f32.mrf.mxu0
        %v634 = vadd.f32 0.0, %v633
        %635 = vmatmul.f32.gmra.mxu0 %v514
        %v636 = vpop.f32.mrf.mxu0
        %v637 = vadd.f32 0.0, %v636
        %638 = vmatmul.f32.gmra.mxu0 %v517
        %v639 = vpop.f32.mrf.mxu0
        %v640 = vadd.f32 0.0, %v639
        %641 = vmatmul.f32.gmra.mxu0 %v520
        %v642 = vpop.f32.mrf.mxu0
        %v643 = vadd.f32 0.0, %v642
        %644 = vmatmul.f32.gmra.mxu0 %v523
        %v645 = vpop.f32.mrf.mxu0
        %v646 = vadd.f32 0.0, %v645
        %647 = vmatmul.f32.gmra.mxu0 %v526
        %v648 = vpop.f32.mrf.mxu0
        %v649 = vadd.f32 0.0, %v648
        %650 = vdwg.mxu0
        %651 = vmatpush.msra.mxu0 0.0
        %652 = vmatpush.msra.mxu0 0.0
        %653 = vmatpush.msra.mxu0 0.0
        %654 = vmatpush.msra.mxu0 0.0
        %655 = vmatpush.msra.mxu0 0.0
        %656 = vmatpush.msra.mxu0 0.0
        %657 = vmatpush.msra.mxu0 0.0
        %658 = vmatpush.msra.mxu0 0.0
        %659 = vmatpush.msra.mxu0 0.0
        %660 = vmatpush.msra.mxu0 0.0
        %661 = vmatpush.msra.mxu0 0.0
        %662 = vmatpush.msra.mxu0 0.0
        %663 = vmatpush.msra.mxu0 %v464
        %664 = vmatpush.msra.mxu0 %v460
        %665 = vmatpush.msra.mxu0 %v456
        %666 = vmatpush.msra.mxu0 %v452
        %667 = vmatmul.f32.gmra.mxu0 %v505
        %v668 = vpop.f32.mrf.mxu0
        %v669 = vadd.f32 0.0, %v668
        %670 = vmatmul.f32.gmra.mxu0 %v508
        %v671 = vpop.f32.mrf.mxu0
        %v672 = vadd.f32 0.0, %v671
        %673 = vmatmul.f32.gmra.mxu0 %v511
        %v674 = vpop.f32.mrf.mxu0
        %v675 = vadd.f32 0.0, %v674
        %676 = vmatmul.f32.gmra.mxu0 %v514
        %v677 = vpop.f32.mrf.mxu0
        %v678 = vadd.f32 0.0, %v677
        %679 = vmatmul.f32.gmra.mxu0 %v517
        %v680 = vpop.f32.mrf.mxu0
        %v681 = vadd.f32 0.0, %v680
        %682 = vmatmul.f32.gmra.mxu0 %v520
        %v683 = vpop.f32.mrf.mxu0
        %v684 = vadd.f32 0.0, %v683
        %685 = vmatmul.f32.gmra.mxu0 %v523
        %v686 = vpop.f32.mrf.mxu0
        %v687 = vadd.f32 0.0, %v686
        %688 = vmatmul.f32.gmra.mxu0 %v526
        %v689 = vpop.f32.mrf.mxu0
        %v690 = vadd.f32 0.0, %v689
        %691 = vdwg.mxu0
        %v692 = vsub.f32 0.0, %v467
        %v693 = vsub.f32 0.0, %v468
        %v694 = vmul.f32 %v692, 1.442695
        %v695 = vpow.pop %v694
        %v696 = vmul.f32 %v693, 1.442695
        %v697 = vpow.pop %v696
        %v698 = vlaneseq
        %vm699 = vcmp.ge.s32.totalorder %v698, 0
        %vm700 = vcmp.lt.s32.totalorder %v698, 512
        %vm701 = vmand %vm699, %vm700
        %s702 = scalar_lea.vmem [#allocation2], 39
        %703 = vst.msk [vmem:[%s702] ss:$8 sm:$0xf] %vm701, 0.0
        %704 = vst.msk [vmem:[%s702] ss:$8 sm:$0x0] %vm701, 0.0
        %v705 = vld [vmem:[%s0] sm:$0x7]
        %707 = vset.pattern.permute.xlu0 0
        %708 = vperm.xlu0 %707, %v705
        %v709 = vpop.permute.xlu0 %708
        %v711 = vunpack.c.l.s4 839922192
        %v712 = vunpack.c.0.s8 %v711
        %v713 = vperm.slane %v709, %v712
        %v715 = vsub.f32 %v465, %v713
        %v716 = vsub.f32 %v466, %v713
        %v717 = vmul.f32 %v715, %v715
        %v718 = vmul.f32 %v716, %v716
        %721 = vst [vmem:[#allocation1] ss:$2 sm:$0xff] %v717
        %s722 = scalar_lea.vmem [#allocation1], 16
        %723 = vst [vmem:[%s722] ss:$2 sm:$0xff] %v718
        %v724 = vld.sshfl [vmem:[#allocation1] sm:$0xff pattern:$0x75316420]
        %v725 = vld.sshfl [vmem:[#allocation1 + $0x8] sm:$0xff pattern:$0x75316420]
        %v726 = vld.sshfl [vmem:[#allocation1 + $0x10] sm:$0xff pattern:$0x75316420]
        %v727 = vld.sshfl [vmem:[#allocation1 + $0x18] sm:$0xff pattern:$0x75316420]
        %vm732 = vcmask 1042432
        %v733 = vsel %vm732, %v724, 0.0
        %v734 = vrot.slane %v733, 4
        %v735 = vadd.f32 %v733, %v734
        %v736 = vrot.slane %v735, 2
        %v737 = vadd.f32 %v735, %v736
        %v738 = vrot.slane %v737, 1
        %v739 = vadd.f32 %v737, %v738
        %v740 = vsel %vm732, %v725, 0.0
        %v741 = vrot.slane %v740, 4
        %v742 = vadd.f32 %v740, %v741
        %v743 = vrot.slane %v742, 2
        %v744 = vadd.f32 %v742, %v743
        %v745 = vrot.slane %v744, 1
        %v746 = vadd.f32 %v744, %v745
        %v747 = vsel %vm732, %v726, 0.0
        %v748 = vrot.slane %v747, 4
        %v749 = vadd.f32 %v747, %v748
        %v750 = vrot.slane %v749, 2
        %v751 = vadd.f32 %v749, %v750
        %v752 = vrot.slane %v751, 1
        %v753 = vadd.f32 %v751, %v752
        %v754 = vsel %vm732, %v727, 0.0
        %v755 = vrot.slane %v754, 4
        %v756 = vadd.f32 %v754, %v755
        %v757 = vrot.slane %v756, 2
        %v758 = vadd.f32 %v756, %v757
        %v759 = vrot.slane %v758, 1
        %v760 = vadd.f32 %v758, %v759
        %v761 = vmax.f32 %v739, 1e-24
        %v762 = vmax.f32 %v746, 1e-24
        %v763 = vmax.f32 %v753, 1e-24
        %v764 = vmax.f32 %v760, 1e-24
        %v765 = vrsqrt.pop %v761
        %v766 = vmul.f32 %v765, %v761
        %v767 = vmul.f32 %v766, %v765
        %v768 = vmul.f32 0.5, %v767
        %v769 = vsub.f32 1.5, %v768
        %v770 = vmul.f32 %v765, %v769
        %vm771 = vweird.f32 %v761
        %vm772 = vweird.f32 %v765
        %vm773 = vmor %vm771, %vm772
        %v774 = vsel %vm773, %v765, %v770
        %v775 = vrsqrt.pop %v762
        %v776 = vmul.f32 %v775, %v762
        %v777 = vmul.f32 %v776, %v775
        %v778 = vmul.f32 0.5, %v777
        %v779 = vsub.f32 1.5, %v778
        %v780 = vmul.f32 %v775, %v779
        %vm781 = vweird.f32 %v762
        %vm782 = vweird.f32 %v775
        %vm783 = vmor %vm781, %vm782
        %v784 = vsel %vm783, %v775, %v780
        %v785 = vrsqrt.pop %v763
        %v786 = vmul.f32 %v785, %v763
        %v787 = vmul.f32 %v786, %v785
        %v788 = vmul.f32 0.5, %v787
        %v789 = vsub.f32 1.5, %v788
        %v790 = vmul.f32 %v785, %v789
        %vm791 = vweird.f32 %v763
        %vm792 = vweird.f32 %v785
        %vm793 = vmor %vm791, %vm792
        %v794 = vsel %vm793, %v785, %v790
        %v795 = vrsqrt.pop %v764
        %v796 = vmul.f32 %v795, %v764
        %v797 = vmul.f32 %v796, %v795
        %v798 = vmul.f32 0.5, %v797
        %v799 = vsub.f32 1.5, %v798
        %v800 = vmul.f32 %v795, %v799
        %vm801 = vweird.f32 %v764
        %vm802 = vweird.f32 %v795
        %vm803 = vmor %vm801, %vm802
        %v804 = vsel %vm803, %v795, %v800
        %v809 = vrot.slane %v784, 4
        %v810 = vrot.slane %v804, 4
        %vm811 = vcmask 1043456
        %v812 = vsel %vm811, %v774, %v809
        %v813 = vsel %vm811, %v794, %v810
        %v816 = vmul.f32 %v715, %v812
        %v817 = vmul.f32 %v716, %v813
        %v818 = vmul.f32 %v816, -0.48860252
        %v819 = vmul.f32 %v817, -0.48860252
        %822 = vst [vmem:[#allocation1] sm:$0xff] %v818
        %823 = vst [vmem:[#allocation1 + $0x8] sm:$0xff] %v819
        %s824 = scalar_lea.vmem [#allocation1], 1
        %v825 = vld [vmem:[%s824] ss:$4 sm:$0xff]
        %827 = vst.msk [vmem:[#allocation2] ss:$8 sm:$0xf] %vm701, %v825
        %828 = vst.msk [vmem:[#allocation2] ss:$8 sm:$0x0] %vm701, %v825
        %v829 = vmul.f32 %v816, 0.48860252
        %v830 = vmul.f32 %v817, 0.48860252
        %833 = vst [vmem:[#allocation1] sm:$0xff] %v829
        %834 = vst [vmem:[#allocation1 + $0x8] sm:$0xff] %v830
        %s835 = scalar_lea.vmem [#allocation1], 2
        %v836 = vld [vmem:[%s835] ss:$4 sm:$0xff]
        %s838 = scalar_lea.vmem [#allocation2], 1
        %839 = vst.msk [vmem:[%s838] ss:$8 sm:$0xf] %vm701, %v836
        %840 = vst.msk [vmem:[%s838] ss:$8 sm:$0x0] %vm701, %v836
        %v841 = vrot.slane %v818, 3
        %v842 = vrot.slane %v819, 6
        %v843 = vrot.slane %v819, 1
        %vm844 = vcmask 1040384
        %v845 = vsel %vm844, %v818, %v841
        %vm846 = vcmask 1042434
        %v847 = vsel %vm846, %v842, %v843
        %vm848 = vcmask 1041408
        %v849 = vsel %vm848, %v845, %v847
        %s851 = scalar_lea.vmem [#allocation2], 2
        %852 = vst.msk [vmem:[%s851] ss:$8 sm:$0xf] %vm701, %v849
        %853 = vst.msk [vmem:[%s851] ss:$8 sm:$0x0] %vm701, %v849
        %v854 = vmul.f32 %v816, %v816
        %v855 = vmul.f32 %v817, %v817
        %v856 = vmul.f32 %v816, -1.0925485
        %v857 = vmul.f32 %v817, -1.0925485
        %v860 = vrot.slane %v854, 5
        %v861 = vrot.slane %v860, 4
        %v862 = vrot.slane %v855, 5
        %v863 = vrot.slane %v862, 4
        %v866 = vsub.f32 %v854, %v861
        %v867 = vsub.f32 %v855, %v863
        %v868 = vmul.f32 %v816, 2.0
        %v869 = vmul.f32 %v817, 2.0
        %v872 = vrot.slane %v816, 5
        %v873 = vrot.slane %v872, 4
        %v874 = vrot.slane %v817, 5
        %v875 = vrot.slane %v874, 4
        %v878 = vmul.f32 %v868, %v873
        %v879 = vmul.f32 %v869, %v875
        %v880 = vmul.f32 %v878, 0.54627424
        %v881 = vmul.f32 %v879, 0.54627424
        %v884 = vrot.slane %v880, 3
        %v885 = vrot.slane %v881, 6
        %v886 = vrot.slane %v881, 1
        %v887 = vsel %vm844, %v880, %v884
        %v888 = vsel %vm846, %v885, %v886
        %v889 = vsel %vm848, %v887, %v888
        %s891 = scalar_lea.vmem [#allocation2], 3
        %892 = vst.msk [vmem:[%s891] ss:$8 sm:$0xf] %vm701, %v889
        %893 = vst.msk [vmem:[%s891] ss:$8 sm:$0x0] %vm701, %v889
        %v894 = vrot.slane %v816, 7
        %v895 = vrot.slane %v817, 7
        %v898 = vmul.f32 %v856, %v894
        %v899 = vmul.f32 %v857, %v895
        %902 = vst [vmem:[#allocation1] sm:$0xff] %v898
        %903 = vst [vmem:[#allocation1 + $0x8] sm:$0xff] %v899
        %s904 = scalar_lea.vmem [#allocation1], 2
        %v905 = vld [vmem:[%s904] ss:$4 sm:$0xff]
        %s907 = scalar_lea.vmem [#allocation2], 4
        %908 = vst.msk [vmem:[%s907] ss:$8 sm:$0xf] %vm701, %v905
        %909 = vst.msk [vmem:[%s907] ss:$8 sm:$0x0] %vm701, %v905
        %v910 = vmul.f32 %v854, 0.9461747
        %v911 = vmul.f32 %v855, 0.9461747
        %v912 = vsub.f32 %v910, 0.31539157
        %v913 = vsub.f32 %v911, 0.31539157
        %916 = vst [vmem:[#allocation1] sm:$0xff] %v912
        %917 = vst [vmem:[#allocation1 + $0x8] sm:$0xff] %v913
        %s918 = scalar_lea.vmem [#allocation1], 2
        %v919 = vld [vmem:[%s918] ss:$4 sm:$0xff]
        %s921 = scalar_lea.vmem [#allocation2], 5
        %922 = vst.msk [vmem:[%s921] ss:$8 sm:$0xf] %vm701, %v919
        %923 = vst.msk [vmem:[%s921] ss:$8 sm:$0x0] %vm701, %v919
        %v924 = vrot.slane %v816, 6
        %v925 = vrot.slane %v817, 6
        %v928 = vmul.f32 %v856, %v924
        %v929 = vmul.f32 %v857, %v925
        %932 = vst [vmem:[#allocation1] sm:$0xff] %v928
        %933 = vst [vmem:[#allocation1 + $0x8] sm:$0xff] %v929
        %s934 = scalar_lea.vmem [#allocation1], 2
        %v935 = vld [vmem:[%s934] ss:$4 sm:$0xff]
        %s937 = scalar_lea.vmem [#allocation2], 6
        %938 = vst.msk [vmem:[%s937] ss:$8 sm:$0xf] %vm701, %v935
        %939 = vst.msk [vmem:[%s937] ss:$8 sm:$0x0] %vm701, %v935
        %v940 = vmul.f32 %v866, 0.54627424
        %v941 = vmul.f32 %v867, 0.54627424
        %v944 = vrot.slane %v940, 3
        %v945 = vrot.slane %v941, 6
        %v946 = vrot.slane %v941, 1
        %v947 = vsel %vm844, %v940, %v944
        %v948 = vsel %vm846, %v945, %v946
        %v949 = vsel %vm848, %v947, %v948
        %s951 = scalar_lea.vmem [#allocation2], 7
        %952 = vst.msk [vmem:[%s951] ss:$8 sm:$0xf] %vm701, %v949
        %953 = vst.msk [vmem:[%s951] ss:$8 sm:$0x0] %vm701, %v949
        %v954 = vmul.f32 %v854, -2.285229
        %v955 = vmul.f32 %v855, -2.285229
        %v956 = vadd.f32 %v954, 0.4570458
        %v957 = vadd.f32 %v955, 0.4570458
        %v958 = vmul.f32 %v816, 1.4453057
        %v959 = vmul.f32 %v817, 1.4453057
        %v960 = vmul.f32 %v816, %v866
        %v961 = vmul.f32 %v817, %v867
        %v964 = vrot.slane %v878, 7
        %v965 = vrot.slane %v879, 7
        %v968 = vmul.f32 %v816, %v964
        %v969 = vmul.f32 %v817, %v965
        %v972 = vrot.slane %v968, 5
        %v973 = vrot.slane %v972, 4
        %v974 = vrot.slane %v969, 5
        %v975 = vrot.slane %v974, 4
        %v978 = vsub.f32 %v960, %v973
        %v979 = vsub.f32 %v961, %v975
        %v980 = vmul.f32 %v816, %v878
        %v981 = vmul.f32 %v817, %v879
        %v984 = vrot.slane %v866, 7
        %v985 = vrot.slane %v867, 7
        %v988 = vmul.f32 %v816, %v984
        %v989 = vmul.f32 %v817, %v985
        %v992 = vrot.slane %v988, 5
        %v993 = vrot.slane %v992, 4
        %v994 = vrot.slane %v989, 5
        %v995 = vrot.slane %v994, 4
        %v998 = vadd.f32 %v980, %v993
        %v999 = vadd.f32 %v981, %v995
        %v1000 = vmul.f32 %v998, -0.5900436
        %v1001 = vmul.f32 %v999, -0.5900436
        %v1004 = vrot.slane %v1000, 3
        %v1005 = vrot.slane %v1001, 6
        %v1006 = vrot.slane %v1001, 1
        %v1007 = vsel %vm844, %v1000, %v1004
        %v1008 = vsel %vm846, %v1005, %v1006
        %v1009 = vsel %vm848, %v1007, %v1008
        %s1011 = scalar_lea.vmem [#allocation2], 32
        %1012 = vst.msk [vmem:[%s1011] ss:$8 sm:$0xf] %vm701, %v1009
        %1013 = vst.msk [vmem:[%s1011] ss:$8 sm:$0x0] %vm701, %v1009
        %v1014 = vrot.slane %v878, 6
        %v1015 = vrot.slane %v879, 6
        %v1018 = vmul.f32 %v958, %v1014
        %v1019 = vmul.f32 %v959, %v1015
        %1022 = vst [vmem:[#allocation1] sm:$0xff] %v1018
        %1023 = vst [vmem:[#allocation1 + $0x8] sm:$0xff] %v1019
        %s1024 = scalar_lea.vmem [#allocation1], 2
        %v1025 = vld [vmem:[%s1024] ss:$4 sm:$0xff]
        %s1027 = scalar_lea.vmem [#allocation2], 33
        %1028 = vst.msk [vmem:[%s1027] ss:$8 sm:$0xf] %vm701, %v1025
        %1029 = vst.msk [vmem:[%s1027] ss:$8 sm:$0x0] %vm701, %v1025
        %v1030 = vmul.f32 %v956, %v894
        %v1031 = vmul.f32 %v957, %v895
        %1034 = vst [vmem:[#allocation1] sm:$0xff] %v1030
        %1035 = vst [vmem:[#allocation1 + $0x8] sm:$0xff] %v1031
        %s1036 = scalar_lea.vmem [#allocation1], 2
        %v1037 = vld [vmem:[%s1036] ss:$4 sm:$0xff]
        %s1039 = scalar_lea.vmem [#allocation2], 34
        %1040 = vst.msk [vmem:[%s1039] ss:$8 sm:$0xf] %vm701, %v1037
        %1041 = vst.msk [vmem:[%s1039] ss:$8 sm:$0x0] %vm701, %v1037
        %v1042 = vmul.f32 %v854, 1.8658817
        %v1043 = vmul.f32 %v855, 1.8658817
        %v1044 = vsub.f32 %v1042, 1.119529
        %v1045 = vsub.f32 %v1043, 1.119529
        %v1046 = vmul.f32 %v816, %v1044
        %v1047 = vmul.f32 %v817, %v1045
        %1050 = vst [vmem:[#allocation1] sm:$0xff] %v1046
        %1051 = vst [vmem:[#allocation1 + $0x8] sm:$0xff] %v1047
        %s1052 = scalar_lea.vmem [#allocation1], 2
        %v1053 = vld [vmem:[%s1052] ss:$4 sm:$0xff]
        %s1055 = scalar_lea.vmem [#allocation2], 35
        %1056 = vst.msk [vmem:[%s1055] ss:$8 sm:$0xf] %vm701, %v1053
        %1057 = vst.msk [vmem:[%s1055] ss:$8 sm:$0x0] %vm701, %v1053
        %v1058 = vmul.f32 %v956, %v924
        %v1059 = vmul.f32 %v957, %v925
        %1062 = vst [vmem:[#allocation1] sm:$0xff] %v1058
        %1063 = vst [vmem:[#allocation1 + $0x8] sm:$0xff] %v1059
        %s1064 = scalar_lea.vmem [#allocation1], 2
        %v1065 = vld [vmem:[%s1064] ss:$4 sm:$0xff]
        %s1067 = scalar_lea.vmem [#allocation2], 36
        %1068 = vst.msk [vmem:[%s1067] ss:$8 sm:$0xf] %vm701, %v1065
        %1069 = vst.msk [vmem:[%s1067] ss:$8 sm:$0x0] %vm701, %v1065
        %v1070 = vrot.slane %v866, 6
        %v1071 = vrot.slane %v867, 6
        %v1074 = vmul.f32 %v958, %v1070
        %v1075 = vmul.f32 %v959, %v1071
        %1078 = vst [vmem:[#allocation1] sm:$0xff] %v1074
        %1079 = vst [vmem:[#allocation1 + $0x8] sm:$0xff] %v1075
        %s1080 = scalar_lea.vmem [#allocation1], 2
        %v1081 = vld [vmem:[%s1080] ss:$4 sm:$0xff]
        %s1083 = scalar_lea.vmem [#allocation2], 37
        %1084 = vst.msk [vmem:[%s1083] ss:$8 sm:$0xf] %vm701, %v1081
        %1085 = vst.msk [vmem:[%s1083] ss:$8 sm:$0x0] %vm701, %v1081
        %v1086 = vmul.f32 %v978, -0.5900436
        %v1087 = vmul.f32 %v979, -0.5900436
        %v1090 = vrot.slane %v1086, 3
        %v1091 = vrot.slane %v1087, 6
        %v1092 = vrot.slane %v1087, 1
        %v1093 = vsel %vm844, %v1086, %v1090
        %v1094 = vsel %vm846, %v1091, %v1092
        %v1095 = vsel %vm848, %v1093, %v1094
        %s1097 = scalar_lea.vmem [#allocation2], 38
        %1098 = vst.msk [vmem:[%s1097] ss:$8 sm:$0xf] %vm701, %v1095
        %1099 = vst.msk [vmem:[%s1097] ss:$8 sm:$0x0] %vm701, %v1095
        %v1100 = vld [vmem:[#allocation2] sm:$0xff]
        %v1101 = vld [vmem:[#allocation2 + $0x8] sm:$0xff]
        %v1102 = vld [vmem:[#allocation2 + $0x10] sm:$0xff]
        %v1103 = vld [vmem:[#allocation2 + $0x18] sm:$0xff]
        %v1104 = vld [vmem:[#allocation2 + $0x20] sm:$0xff]
        %v1105 = vld [vmem:[#allocation2 + $0x28] sm:$0xff]
        %v1106 = vld [vmem:[#allocation2 + $0x30] sm:$0xff]
        %v1107 = vld [vmem:[#allocation2 + $0x38] sm:$0xff]
        %vm1108 = vcmask 130048
        %v1110 = vsel %vm1108, %v477, 0
        %v1113 = vsel %vm1108, %v478, 0
        %v1116 = vsel %vm1108, %v479, 0
        %v1119 = vsel %vm1108, %v480, 0
        %v1122 = vsel %vm1108, %v481, 0
        %v1125 = vsel %vm1108, %v482, 0
        %v1128 = vsel %vm1108, %v483, 0
        %v1131 = vsel %vm1108, %v484, 0
        %1133 = vmatpush.msra.mxu0 0.0
        %1134 = vmatpush.msra.mxu0 0.0
        %1135 = vmatpush.msra.mxu0 0.0
        %1136 = vmatpush.msra.mxu0 0.0
        %1137 = vmatpush.msra.mxu0 0.0
        %1138 = vmatpush.msra.mxu0 0.0
        %1139 = vmatpush.msra.mxu0 0.0
        %1140 = vmatpush.msra.mxu0 0.0
        %1141 = vmatpush.msra.mxu0 0.0
        %1142 = vmatpush.msra.mxu0 0.0
        %1143 = vmatpush.msra.mxu0 0.0
        %1144 = vmatpush.msra.mxu0 0.0
        %1145 = vmatpush.msra.mxu0 0.0
        %1146 = vmatpush.msra.mxu0 0.0
        %1147 = vmatpush.msra.mxu0 %v1104
        %1148 = vmatpush.msra.mxu0 %v1100
        %1149 = vmatmul.f32.gmra.mxu0 %v1110
        %v1150 = vpop.f32.mrf.mxu0
        %v1151 = vadd.f32 0.0, %v1150
        %1152 = vmatmul.f32.gmra.mxu0 %v1113
        %v1153 = vpop.f32.mrf.mxu0
        %v1154 = vadd.f32 0.0, %v1153
        %1155 = vmatmul.f32.gmra.mxu0 %v1116
        %v1156 = vpop.f32.mrf.mxu0
        %v1157 = vadd.f32 0.0, %v1156
        %1158 = vmatmul.f32.gmra.mxu0 %v1119
        %v1159 = vpop.f32.mrf.mxu0
        %v1160 = vadd.f32 0.0, %v1159
        %1161 = vmatmul.f32.gmra.mxu0 %v1122
        %v1162 = vpop.f32.mrf.mxu0
        %v1163 = vadd.f32 0.0, %v1162
        %1164 = vmatmul.f32.gmra.mxu0 %v1125
        %v1165 = vpop.f32.mrf.mxu0
        %v1166 = vadd.f32 0.0, %v1165
        %1167 = vmatmul.f32.gmra.mxu0 %v1128
        %v1168 = vpop.f32.mrf.mxu0
        %v1169 = vadd.f32 0.0, %v1168
        %1170 = vmatmul.f32.gmra.mxu0 %v1131
        %v1171 = vpop.f32.mrf.mxu0
        %v1172 = vadd.f32 0.0, %v1171
        %1173 = vdwg.mxu0
        %1174 = vmatpush.msra.mxu0 0.0
        %1175 = vmatpush.msra.mxu0 0.0
        %1176 = vmatpush.msra.mxu0 0.0
        %1177 = vmatpush.msra.mxu0 0.0
        %1178 = vmatpush.msra.mxu0 0.0
        %1179 = vmatpush.msra.mxu0 0.0
        %1180 = vmatpush.msra.mxu0 0.0
        %1181 = vmatpush.msra.mxu0 0.0
        %1182 = vmatpush.msra.mxu0 0.0
        %1183 = vmatpush.msra.mxu0 0.0
        %1184 = vmatpush.msra.mxu0 0.0
        %1185 = vmatpush.msra.mxu0 0.0
        %1186 = vmatpush.msra.mxu0 0.0
        %1187 = vmatpush.msra.mxu0 0.0
        %1188 = vmatpush.msra.mxu0 %v1105
        %1189 = vmatpush.msra.mxu0 %v1101
        %1190 = vmatmul.f32.gmra.mxu0 %v1110
        %v1191 = vpop.f32.mrf.mxu0
        %v1192 = vadd.f32 0.0, %v1191
        %1193 = vmatmul.f32.gmra.mxu0 %v1113
        %v1194 = vpop.f32.mrf.mxu0
        %v1195 = vadd.f32 0.0, %v1194
        %1196 = vmatmul.f32.gmra.mxu0 %v1116
        %v1197 = vpop.f32.mrf.mxu0
        %v1198 = vadd.f32 0.0, %v1197
        %1199 = vmatmul.f32.gmra.mxu0 %v1119
        %v1200 = vpop.f32.mrf.mxu0
        %v1201 = vadd.f32 0.0, %v1200
        %1202 = vmatmul.f32.gmra.mxu0 %v1122
        %v1203 = vpop.f32.mrf.mxu0
        %v1204 = vadd.f32 0.0, %v1203
        %1205 = vmatmul.f32.gmra.mxu0 %v1125
        %v1206 = vpop.f32.mrf.mxu0
        %v1207 = vadd.f32 0.0, %v1206
        %1208 = vmatmul.f32.gmra.mxu0 %v1128
        %v1209 = vpop.f32.mrf.mxu0
        %v1210 = vadd.f32 0.0, %v1209
        %1211 = vmatmul.f32.gmra.mxu0 %v1131
        %v1212 = vpop.f32.mrf.mxu0
        %v1213 = vadd.f32 0.0, %v1212
        %1214 = vdwg.mxu0
        %1215 = vmatpush.msra.mxu0 0.0
        %1216 = vmatpush.msra.mxu0 0.0
        %1217 = vmatpush.msra.mxu0 0.0
        %1218 = vmatpush.msra.mxu0 0.0
        %1219 = vmatpush.msra.mxu0 0.0
        %1220 = vmatpush.msra.mxu0 0.0
        %1221 = vmatpush.msra.mxu0 0.0
        %1222 = vmatpush.msra.mxu0 0.0
        %1223 = vmatpush.msra.mxu0 0.0
        %1224 = vmatpush.msra.mxu0 0.0
        %1225 = vmatpush.msra.mxu0 0.0
        %1226 = vmatpush.msra.mxu0 0.0
        %1227 = vmatpush.msra.mxu0 0.0
        %1228 = vmatpush.msra.mxu0 0.0
        %1229 = vmatpush.msra.mxu0 %v1106
        %1230 = vmatpush.msra.mxu0 %v1102
        %1231 = vmatmul.f32.gmra.mxu0 %v1110
        %v1232 = vpop.f32.mrf.mxu0
        %v1233 = vadd.f32 0.0, %v1232
        %1234 = vmatmul.f32.gmra.mxu0 %v1113
        %v1235 = vpop.f32.mrf.mxu0
        %v1236 = vadd.f32 0.0, %v1235
        %1237 = vmatmul.f32.gmra.mxu0 %v1116
        %v1238 = vpop.f32.mrf.mxu0
        %v1239 = vadd.f32 0.0, %v1238
        %1240 = vmatmul.f32.gmra.mxu0 %v1119
        %v1241 = vpop.f32.mrf.mxu0
        %v1242 = vadd.f32 0.0, %v1241
        %1243 = vmatmul.f32.gmra.mxu0 %v1122
        %v1244 = vpop.f32.mrf.mxu0
        %v1245 = vadd.f32 0.0, %v1244
        %1246 = vmatmul.f32.gmra.mxu0 %v1125
        %v1247 = vpop.f32.mrf.mxu0
        %v1248 = vadd.f32 0.0, %v1247
        %1249 = vmatmul.f32.gmra.mxu0 %v1128
        %v1250 = vpop.f32.mrf.mxu0
        %v1251 = vadd.f32 0.0, %v1250
        %1252 = vmatmul.f32.gmra.mxu0 %v1131
        %v1253 = vpop.f32.mrf.mxu0
        %v1254 = vadd.f32 0.0, %v1253
        %1255 = vdwg.mxu0
        %1256 = vmatpush.msra.mxu0 0.0
        %1257 = vmatpush.msra.mxu0 0.0
        %1258 = vmatpush.msra.mxu0 0.0
        %1259 = vmatpush.msra.mxu0 0.0
        %1260 = vmatpush.msra.mxu0 0.0
        %1261 = vmatpush.msra.mxu0 0.0
        %1262 = vmatpush.msra.mxu0 0.0
        %1263 = vmatpush.msra.mxu0 0.0
        %1264 = vmatpush.msra.mxu0 0.0
        %1265 = vmatpush.msra.mxu0 0.0
        %1266 = vmatpush.msra.mxu0 0.0
        %1267 = vmatpush.msra.mxu0 0.0
        %1268 = vmatpush.msra.mxu0 0.0
        %1269 = vmatpush.msra.mxu0 0.0
        %1270 = vmatpush.msra.mxu0 %v1107
        %1271 = vmatpush.msra.mxu0 %v1103
        %1272 = vmatmul.f32.gmra.mxu0 %v1110
        %v1273 = vpop.f32.mrf.mxu0
        %v1274 = vadd.f32 0.0, %v1273
        %1275 = vmatmul.f32.gmra.mxu0 %v1113
        %v1276 = vpop.f32.mrf.mxu0
        %v1277 = vadd.f32 0.0, %v1276
        %1278 = vmatmul.f32.gmra.mxu0 %v1116
        %v1279 = vpop.f32.mrf.mxu0
        %v1280 = vadd.f32 0.0, %v1279
        %1281 = vmatmul.f32.gmra.mxu0 %v1119
        %v1282 = vpop.f32.mrf.mxu0
        %v1283 = vadd.f32 0.0, %v1282
        %1284 = vmatmul.f32.gmra.mxu0 %v1122
        %v1285 = vpop.f32.mrf.mxu0
        %v1286 = vadd.f32 0.0, %v1285
        %1287 = vmatmul.f32.gmra.mxu0 %v1125
        %v1288 = vpop.f32.mrf.mxu0
        %v1289 = vadd.f32 0.0, %v1288
        %1290 = vmatmul.f32.gmra.mxu0 %v1128
        %v1291 = vpop.f32.mrf.mxu0
        %v1292 = vadd.f32 0.0, %v1291
        %1293 = vmatmul.f32.gmra.mxu0 %v1131
        %v1294 = vpop.f32.mrf.mxu0
        %v1295 = vadd.f32 0.0, %v1294
        %1296 = vdwg.mxu0
        %v1297 = vadd.f32 %v546, %v1151
        %v1298 = vadd.f32 %v587, %v1192
        %v1299 = vadd.f32 %v628, %v1233
        %v1300 = vadd.f32 %v669, %v1274
        %v1301 = vadd.f32 %v549, %v1154
        %v1302 = vadd.f32 %v590, %v1195
        %v1303 = vadd.f32 %v631, %v1236
        %v1304 = vadd.f32 %v672, %v1277
        %v1305 = vadd.f32 %v552, %v1157
        %v1306 = vadd.f32 %v593, %v1198
        %v1307 = vadd.f32 %v634, %v1239
        %v1308 = vadd.f32 %v675, %v1280
        %v1309 = vadd.f32 %v555, %v1160
        %v1310 = vadd.f32 %v596, %v1201
        %v1311 = vadd.f32 %v637, %v1242
        %v1312 = vadd.f32 %v678, %v1283
        %v1313 = vadd.f32 %v558, %v1163
        %v1314 = vadd.f32 %v599, %v1204
        %v1315 = vadd.f32 %v640, %v1245
        %v1316 = vadd.f32 %v681, %v1286
        %v1317 = vadd.f32 %v561, %v1166
        %v1318 = vadd.f32 %v602, %v1207
        %v1319 = vadd.f32 %v643, %v1248
        %v1320 = vadd.f32 %v684, %v1289
        %v1321 = vadd.f32 %v564, %v1169
        %v1322 = vadd.f32 %v605, %v1210
        %v1323 = vadd.f32 %v646, %v1251
        %v1324 = vadd.f32 %v687, %v1292
        %v1325 = vadd.f32 %v567, %v1172
        %v1326 = vadd.f32 %v608, %v1213
        %v1327 = vadd.f32 %v649, %v1254
        %v1328 = vadd.f32 %v690, %v1295
        %v1329 = vld [vmem:[%s1] sm:$0xff]
        %v1330 = vld [vmem:[%s1 + $0x8] sm:$0xff]
        %v1331 = vld [vmem:[%s1 + $0x10] sm:$0xff]
        %v1332 = vld [vmem:[%s1 + $0x18] sm:$0xff]
        %v1333 = vld [vmem:[%s1 + $0x20] sm:$0xff]
        %v1334 = vld [vmem:[%s1 + $0x28] sm:$0xff]
        %v1335 = vld [vmem:[%s1 + $0x30] sm:$0xff]
        %v1336 = vld [vmem:[%s1 + $0x38] sm:$0xff]
        %1338 = vset.pattern.permute.xlu0 0
        %1339 = vperm.xlu0 %1338, %v1329
        %v1340 = vpop.permute.xlu0 %1339
        %1343 = vset.pattern.permute.xlu0 0
        %1344 = vperm.xlu0 %1343, %v1330
        %v1345 = vpop.permute.xlu0 %1344
        %1348 = vset.pattern.permute.xlu0 0
        %1349 = vperm.xlu0 %1348, %v1331
        %v1350 = vpop.permute.xlu0 %1349
        %1353 = vset.pattern.permute.xlu0 0
        %1354 = vperm.xlu0 %1353, %v1332
        %v1355 = vpop.permute.xlu0 %1354
        %1358 = vset.pattern.permute.xlu0 0
        %1359 = vperm.xlu0 %1358, %v1333
        %v1360 = vpop.permute.xlu0 %1359
        %1363 = vset.pattern.permute.xlu0 0
        %1364 = vperm.xlu0 %1363, %v1334
        %v1365 = vpop.permute.xlu0 %1364
        %1368 = vset.pattern.permute.xlu0 0
        %1369 = vperm.xlu0 %1368, %v1335
        %v1370 = vpop.permute.xlu0 %1369
        %1373 = vset.pattern.permute.xlu0 0
        %1374 = vperm.xlu0 %1373, %v1336
        %v1375 = vpop.permute.xlu0 %1374
        %v1377 = vadd.f32 %v1297, %v1340
        %v1378 = vadd.f32 %v1298, %v1340
        %v1379 = vadd.f32 %v1299, %v1340
        %v1380 = vadd.f32 %v1300, %v1340
        %v1381 = vadd.f32 %v1301, %v1345
        %v1382 = vadd.f32 %v1302, %v1345
        %v1383 = vadd.f32 %v1303, %v1345
        %v1384 = vadd.f32 %v1304, %v1345
        %v1385 = vadd.f32 %v1305, %v1350
        %v1386 = vadd.f32 %v1306, %v1350
        %v1387 = vadd.f32 %v1307, %v1350
        %v1388 = vadd.f32 %v1308, %v1350
        %v1389 = vadd.f32 %v1309, %v1355
        %v1390 = vadd.f32 %v1310, %v1355
        %v1391 = vadd.f32 %v1311, %v1355
        %v1392 = vadd.f32 %v1312, %v1355
        %v1393 = vadd.f32 %v1313, %v1360
        %v1394 = vadd.f32 %v1314, %v1360
        %v1395 = vadd.f32 %v1315, %v1360
        %v1396 = vadd.f32 %v1316, %v1360
        %v1397 = vadd.f32 %v1317, %v1365
        %v1398 = vadd.f32 %v1318, %v1365
        %v1399 = vadd.f32 %v1319, %v1365
        %v1400 = vadd.f32 %v1320, %v1365
        %v1401 = vadd.f32 %v1321, %v1370
        %v1402 = vadd.f32 %v1322, %v1370
        %v1403 = vadd.f32 %v1323, %v1370
        %v1404 = vadd.f32 %v1324, %v1370
        %v1405 = vadd.f32 %v1325, %v1375
        %v1406 = vadd.f32 %v1326, %v1375
        %v1407 = vadd.f32 %v1327, %v1375
        %v1408 = vadd.f32 %v1328, %v1375
        %v1409 = vmax.f32 %v1377, 0.0
        %v1410 = vmax.f32 %v1378, 0.0
        %v1411 = vmax.f32 %v1379, 0.0
        %v1412 = vmax.f32 %v1380, 0.0
        %v1413 = vmax.f32 %v1381, 0.0
        %v1414 = vmax.f32 %v1382, 0.0
        %v1415 = vmax.f32 %v1383, 0.0
        %v1416 = vmax.f32 %v1384, 0.0
        %v1417 = vmax.f32 %v1385, 0.0
        %v1418 = vmax.f32 %v1386, 0.0
        %v1419 = vmax.f32 %v1387, 0.0
        %v1420 = vmax.f32 %v1388, 0.0
        %v1421 = vmax.f32 %v1389, 0.0
        %v1422 = vmax.f32 %v1390, 0.0
        %v1423 = vmax.f32 %v1391, 0.0
        %v1424 = vmax.f32 %v1392, 0.0
        %v1425 = vmax.f32 %v1393, 0.0
        %v1426 = vmax.f32 %v1394, 0.0
        %v1427 = vmax.f32 %v1395, 0.0
        %v1428 = vmax.f32 %v1396, 0.0
        %v1429 = vmax.f32 %v1397, 0.0
        %v1430 = vmax.f32 %v1398, 0.0
        %v1431 = vmax.f32 %v1399, 0.0
        %v1432 = vmax.f32 %v1400, 0.0
        %v1433 = vmax.f32 %v1401, 0.0
        %v1434 = vmax.f32 %v1402, 0.0
        %v1435 = vmax.f32 %v1403, 0.0
        %v1436 = vmax.f32 %v1404, 0.0
        %v1437 = vmax.f32 %v1405, 0.0
        %v1438 = vmax.f32 %v1406, 0.0
        %v1439 = vmax.f32 %v1407, 0.0
        %v1440 = vmax.f32 %v1408, 0.0
        %1442 = vset.pattern.permute.xlu0 0
        %1443 = vperm.xlu0 %1442, %v493
        %v1444 = vpop.permute.xlu0 %1443
        %1447 = vset.pattern.permute.xlu0 0
        %1448 = vperm.xlu0 %1447, %v494
        %v1449 = vpop.permute.xlu0 %1448
        %1452 = vset.pattern.permute.xlu0 0
        %1453 = vperm.xlu0 %1452, %v495
        %v1454 = vpop.permute.xlu0 %1453
        %1457 = vset.pattern.permute.xlu0 0
        %1458 = vperm.xlu0 %1457, %v496
        %v1459 = vpop.permute.xlu0 %1458
        %1462 = vset.pattern.permute.xlu0 0
        %1463 = vperm.xlu0 %1462, %v497
        %v1464 = vpop.permute.xlu0 %1463
        %1467 = vset.pattern.permute.xlu0 0
        %1468 = vperm.xlu0 %1467, %v498
        %v1469 = vpop.permute.xlu0 %1468
        %1472 = vset.pattern.permute.xlu0 0
        %1473 = vperm.xlu0 %1472, %v499
        %v1474 = vpop.permute.xlu0 %1473
        %1477 = vset.pattern.permute.xlu0 0
        %1478 = vperm.xlu0 %1477, %v500
        %v1479 = vpop.permute.xlu0 %1478
        %vm1481 = vcmask 523264
        %v1483 = vsel %vm1481, %v485, 0
        %v1486 = vsel %vm1481, %v486, 0
        %v1489 = vsel %vm1481, %v487, 0
        %v1492 = vsel %vm1481, %v488, 0
        %v1495 = vsel %vm1481, %v489, 0
        %v1498 = vsel %vm1481, %v490, 0
        %v1501 = vsel %vm1481, %v491, 0
        %v1504 = vsel %vm1481, %v492, 0
        %1506 = vmatpush.msra.mxu0 0.0
        %1507 = vmatpush.msra.mxu0 0.0
        %1508 = vmatpush.msra.mxu0 0.0
        %1509 = vmatpush.msra.mxu0 0.0
        %1510 = vmatpush.msra.mxu0 0.0
        %1511 = vmatpush.msra.mxu0 0.0
        %1512 = vmatpush.msra.mxu0 0.0
        %1513 = vmatpush.msra.mxu0 0.0
        %1514 = vmatpush.msra.mxu0 %v1437
        %1515 = vmatpush.msra.mxu0 %v1433
        %1516 = vmatpush.msra.mxu0 %v1429
        %1517 = vmatpush.msra.mxu0 %v1425
        %1518 = vmatpush.msra.mxu0 %v1421
        %1519 = vmatpush.msra.mxu0 %v1417
        %1520 = vmatpush.msra.mxu0 %v1413
        %1521 = vmatpush.msra.mxu0 %v1409
        %1522 = vmatmul.f32.gmra.mxu0 %v1483
        %v1523 = vpop.f32.mrf.mxu0
        %v1524 = vadd.f32 %v1444, %v1523
        %1525 = vmatmul.f32.gmra.mxu0 %v1486
        %v1526 = vpop.f32.mrf.mxu0
        %v1527 = vadd.f32 %v1449, %v1526
        %1528 = vmatmul.f32.gmra.mxu0 %v1489
        %v1529 = vpop.f32.mrf.mxu0
        %v1530 = vadd.f32 %v1454, %v1529
        %1531 = vmatmul.f32.gmra.mxu0 %v1492
        %v1532 = vpop.f32.mrf.mxu0
        %v1533 = vadd.f32 %v1459, %v1532
        %1534 = vmatmul.f32.gmra.mxu0 %v1495
        %v1535 = vpop.f32.mrf.mxu0
        %v1536 = vadd.f32 %v1464, %v1535
        %1537 = vmatmul.f32.gmra.mxu0 %v1498
        %v1538 = vpop.f32.mrf.mxu0
        %v1539 = vadd.f32 %v1469, %v1538
        %1540 = vmatmul.f32.gmra.mxu0 %v1501
        %v1541 = vpop.f32.mrf.mxu0
        %v1542 = vadd.f32 %v1474, %v1541
        %1543 = vmatmul.f32.gmra.mxu0 %v1504
        %v1544 = vpop.f32.mrf.mxu0
        %v1545 = vadd.f32 %v1479, %v1544
        %1546 = vdwg.mxu0
        %1547 = vmatpush.msra.mxu0 0.0
        %1548 = vmatpush.msra.mxu0 0.0
        %1549 = vmatpush.msra.mxu0 0.0
        %1550 = vmatpush.msra.mxu0 0.0
        %1551 = vmatpush.msra.mxu0 0.0
        %1552 = vmatpush.msra.mxu0 0.0
        %1553 = vmatpush.msra.mxu0 0.0
        %1554 = vmatpush.msra.mxu0 0.0
        %1555 = vmatpush.msra.mxu0 %v1438
        %1556 = vmatpush.msra.mxu0 %v1434
        %1557 = vmatpush.msra.mxu0 %v1430
        %1558 = vmatpush.msra.mxu0 %v1426
        %1559 = vmatpush.msra.mxu0 %v1422
        %1560 = vmatpush.msra.mxu0 %v1418
        %1561 = vmatpush.msra.mxu0 %v1414
        %1562 = vmatpush.msra.mxu0 %v1410
        %1563 = vmatmul.f32.gmra.mxu0 %v1483
        %v1564 = vpop.f32.mrf.mxu0
        %v1565 = vadd.f32 %v1444, %v1564
        %1566 = vmatmul.f32.gmra.mxu0 %v1486
        %v1567 = vpop.f32.mrf.mxu0
        %v1568 = vadd.f32 %v1449, %v1567
        %1569 = vmatmul.f32.gmra.mxu0 %v1489
        %v1570 = vpop.f32.mrf.mxu0
        %v1571 = vadd.f32 %v1454, %v1570
        %1572 = vmatmul.f32.gmra.mxu0 %v1492
        %v1573 = vpop.f32.mrf.mxu0
        %v1574 = vadd.f32 %v1459, %v1573
        %1575 = vmatmul.f32.gmra.mxu0 %v1495
        %v1576 = vpop.f32.mrf.mxu0
        %v1577 = vadd.f32 %v1464, %v1576
        %1578 = vmatmul.f32.gmra.mxu0 %v1498
        %v1579 = vpop.f32.mrf.mxu0
        %v1580 = vadd.f32 %v1469, %v1579
        %1581 = vmatmul.f32.gmra.mxu0 %v1501
        %v1582 = vpop.f32.mrf.mxu0
        %v1583 = vadd.f32 %v1474, %v1582
        %1584 = vmatmul.f32.gmra.mxu0 %v1504
        %v1585 = vpop.f32.mrf.mxu0
        %v1586 = vadd.f32 %v1479, %v1585
        %1587 = vdwg.mxu0
        %1588 = vmatpush.msra.mxu0 0.0
        %1589 = vmatpush.msra.mxu0 0.0
        %1590 = vmatpush.msra.mxu0 0.0
        %1591 = vmatpush.msra.mxu0 0.0
        %1592 = vmatpush.msra.mxu0 0.0
        %1593 = vmatpush.msra.mxu0 0.0
        %1594 = vmatpush.msra.mxu0 0.0
        %1595 = vmatpush.msra.mxu0 0.0
        %1596 = vmatpush.msra.mxu0 %v1439
        %1597 = vmatpush.msra.mxu0 %v1435
        %1598 = vmatpush.msra.mxu0 %v1431
        %1599 = vmatpush.msra.mxu0 %v1427
        %1600 = vmatpush.msra.mxu0 %v1423
        %1601 = vmatpush.msra.mxu0 %v1419
        %1602 = vmatpush.msra.mxu0 %v1415
        %1603 = vmatpush.msra.mxu0 %v1411
        %1604 = vmatmul.f32.gmra.mxu0 %v1483
        %v1605 = vpop.f32.mrf.mxu0
        %v1606 = vadd.f32 %v1444, %v1605
        %1607 = vmatmul.f32.gmra.mxu0 %v1486
        %v1608 = vpop.f32.mrf.mxu0
        %v1609 = vadd.f32 %v1449, %v1608
        %1610 = vmatmul.f32.gmra.mxu0 %v1489
        %v1611 = vpop.f32.mrf.mxu0
        %v1612 = vadd.f32 %v1454, %v1611
        %1613 = vmatmul.f32.gmra.mxu0 %v1492
        %v1614 = vpop.f32.mrf.mxu0
        %v1615 = vadd.f32 %v1459, %v1614
        %1616 = vmatmul.f32.gmra.mxu0 %v1495
        %v1617 = vpop.f32.mrf.mxu0
        %v1618 = vadd.f32 %v1464, %v1617
        %1619 = vmatmul.f32.gmra.mxu0 %v1498
        %v1620 = vpop.f32.mrf.mxu0
        %v1621 = vadd.f32 %v1469, %v1620
        %1622 = vmatmul.f32.gmra.mxu0 %v1501
        %v1623 = vpop.f32.mrf.mxu0
        %v1624 = vadd.f32 %v1474, %v1623
        %1625 = vmatmul.f32.gmra.mxu0 %v1504
        %v1626 = vpop.f32.mrf.mxu0
        %v1627 = vadd.f32 %v1479, %v1626
        %1628 = vdwg.mxu0
        %1629 = vmatpush.msra.mxu0 0.0
        %1630 = vmatpush.msra.mxu0 0.0
        %1631 = vmatpush.msra.mxu0 0.0
        %1632 = vmatpush.msra.mxu0 0.0
        %1633 = vmatpush.msra.mxu0 0.0
        %1634 = vmatpush.msra.mxu0 0.0
        %1635 = vmatpush.msra.mxu0 0.0
        %1636 = vmatpush.msra.mxu0 0.0
        %1637 = vmatpush.msra.mxu0 %v1440
        %1638 = vmatpush.msra.mxu0 %v1436
        %1639 = vmatpush.msra.mxu0 %v1432
        %1640 = vmatpush.msra.mxu0 %v1428
        %1641 = vmatpush.msra.mxu0 %v1424
        %1642 = vmatpush.msra.mxu0 %v1420
        %1643 = vmatpush.msra.mxu0 %v1416
        %1644 = vmatpush.msra.mxu0 %v1412
        %1645 = vmatmul.f32.gmra.mxu0 %v1483
        %v1646 = vpop.f32.mrf.mxu0
        %v1647 = vadd.f32 %v1444, %v1646
        %1648 = vmatmul.f32.gmra.mxu0 %v1486
        %v1649 = vpop.f32.mrf.mxu0
        %v1650 = vadd.f32 %v1449, %v1649
        %1651 = vmatmul.f32.gmra.mxu0 %v1489
        %v1652 = vpop.f32.mrf.mxu0
        %v1653 = vadd.f32 %v1454, %v1652
        %1654 = vmatmul.f32.gmra.mxu0 %v1492
        %v1655 = vpop.f32.mrf.mxu0
        %v1656 = vadd.f32 %v1459, %v1655
        %1657 = vmatmul.f32.gmra.mxu0 %v1495
        %v1658 = vpop.f32.mrf.mxu0
        %v1659 = vadd.f32 %v1464, %v1658
        %1660 = vmatmul.f32.gmra.mxu0 %v1498
        %v1661 = vpop.f32.mrf.mxu0
        %v1662 = vadd.f32 %v1469, %v1661
        %1663 = vmatmul.f32.gmra.mxu0 %v1501
        %v1664 = vpop.f32.mrf.mxu0
        %v1665 = vadd.f32 %v1474, %v1664
        %1666 = vmatmul.f32.gmra.mxu0 %v1504
        %v1667 = vpop.f32.mrf.mxu0
        %v1668 = vadd.f32 %v1479, %v1667
        %1669 = vdwg.mxu0
        %v1670 = vmax.f32 %v1524, 0.0
        %v1671 = vmax.f32 %v1565, 0.0
        %v1672 = vmax.f32 %v1606, 0.0
        %v1673 = vmax.f32 %v1647, 0.0
        %v1674 = vmax.f32 %v1527, 0.0
        %v1675 = vmax.f32 %v1568, 0.0
        %v1676 = vmax.f32 %v1609, 0.0
        %v1677 = vmax.f32 %v1650, 0.0
        %v1678 = vmax.f32 %v1530, 0.0
        %v1679 = vmax.f32 %v1571, 0.0
        %v1680 = vmax.f32 %v1612, 0.0
        %v1681 = vmax.f32 %v1653, 0.0
        %v1682 = vmax.f32 %v1533, 0.0
        %v1683 = vmax.f32 %v1574, 0.0
        %v1684 = vmax.f32 %v1615, 0.0
        %v1685 = vmax.f32 %v1656, 0.0
        %v1686 = vmax.f32 %v1536, 0.0
        %v1687 = vmax.f32 %v1577, 0.0
        %v1688 = vmax.f32 %v1618, 0.0
        %v1689 = vmax.f32 %v1659, 0.0
        %v1690 = vmax.f32 %v1539, 0.0
        %v1691 = vmax.f32 %v1580, 0.0
        %v1692 = vmax.f32 %v1621, 0.0
        %v1693 = vmax.f32 %v1662, 0.0
        %v1694 = vmax.f32 %v1542, 0.0
        %v1695 = vmax.f32 %v1583, 0.0
        %v1696 = vmax.f32 %v1624, 0.0
        %v1697 = vmax.f32 %v1665, 0.0
        %v1698 = vmax.f32 %v1545, 0.0
        %v1699 = vmax.f32 %v1586, 0.0
        %v1700 = vmax.f32 %v1627, 0.0
        %v1701 = vmax.f32 %v1668, 0.0
        %1703 = vset.pattern.permute.xlu0 0
        %1704 = vperm.xlu0 %1703, %v502
        %v1705 = vpop.permute.xlu0 %1704
        %v1708 = vsel %vm1481, %v501, 0
        %1710 = vmatpush.msra.mxu0 0.0
        %1711 = vmatpush.msra.mxu0 0.0
        %1712 = vmatpush.msra.mxu0 0.0
        %1713 = vmatpush.msra.mxu0 0.0
        %1714 = vmatpush.msra.mxu0 0.0
        %1715 = vmatpush.msra.mxu0 0.0
        %1716 = vmatpush.msra.mxu0 0.0
        %1717 = vmatpush.msra.mxu0 0.0
        %1718 = vmatpush.msra.mxu0 %v1698
        %1719 = vmatpush.msra.mxu0 %v1694
        %1720 = vmatpush.msra.mxu0 %v1690
        %1721 = vmatpush.msra.mxu0 %v1686
        %1722 = vmatpush.msra.mxu0 %v1682
        %1723 = vmatpush.msra.mxu0 %v1678
        %1724 = vmatpush.msra.mxu0 %v1674
        %1725 = vmatpush.msra.mxu0 %v1670
        %1726 = vmatmul.f32.gmra.mxu0 %v1708
        %v1727 = vpop.f32.mrf.mxu0
        %v1728 = vadd.f32 %v1705, %v1727
        %1729 = vdwg.mxu0
        %1730 = vmatpush.msra.mxu0 0.0
        %1731 = vmatpush.msra.mxu0 0.0
        %1732 = vmatpush.msra.mxu0 0.0
        %1733 = vmatpush.msra.mxu0 0.0
        %1734 = vmatpush.msra.mxu0 0.0
        %1735 = vmatpush.msra.mxu0 0.0
        %1736 = vmatpush.msra.mxu0 0.0
        %1737 = vmatpush.msra.mxu0 0.0
        %1738 = vmatpush.msra.mxu0 %v1699
        %1739 = vmatpush.msra.mxu0 %v1695
        %1740 = vmatpush.msra.mxu0 %v1691
        %1741 = vmatpush.msra.mxu0 %v1687
        %1742 = vmatpush.msra.mxu0 %v1683
        %1743 = vmatpush.msra.mxu0 %v1679
        %1744 = vmatpush.msra.mxu0 %v1675
        %1745 = vmatpush.msra.mxu0 %v1671
        %1746 = vmatmul.f32.gmra.mxu0 %v1708
        %v1747 = vpop.f32.mrf.mxu0
        %v1748 = vadd.f32 %v1705, %v1747
        %1749 = vdwg.mxu0
        %1750 = vmatpush.msra.mxu0 0.0
        %1751 = vmatpush.msra.mxu0 0.0
        %1752 = vmatpush.msra.mxu0 0.0
        %1753 = vmatpush.msra.mxu0 0.0
        %1754 = vmatpush.msra.mxu0 0.0
        %1755 = vmatpush.msra.mxu0 0.0
        %1756 = vmatpush.msra.mxu0 0.0
        %1757 = vmatpush.msra.mxu0 0.0
        %1758 = vmatpush.msra.mxu0 %v1700
        %1759 = vmatpush.msra.mxu0 %v1696
        %1760 = vmatpush.msra.mxu0 %v1692
        %1761 = vmatpush.msra.mxu0 %v1688
        %1762 = vmatpush.msra.mxu0 %v1684
        %1763 = vmatpush.msra.mxu0 %v1680
        %1764 = vmatpush.msra.mxu0 %v1676
        %1765 = vmatpush.msra.mxu0 %v1672
        %1766 = vmatmul.f32.gmra.mxu0 %v1708
        %v1767 = vpop.f32.mrf.mxu0
        %v1768 = vadd.f32 %v1705, %v1767
        %1769 = vdwg.mxu0
        %1770 = vmatpush.msra.mxu0 0.0
        %1771 = vmatpush.msra.mxu0 0.0
        %1772 = vmatpush.msra.mxu0 0.0
        %1773 = vmatpush.msra.mxu0 0.0
        %1774 = vmatpush.msra.mxu0 0.0
        %1775 = vmatpush.msra.mxu0 0.0
        %1776 = vmatpush.msra.mxu0 0.0
        %1777 = vmatpush.msra.mxu0 0.0
        %1778 = vmatpush.msra.mxu0 %v1701
        %1779 = vmatpush.msra.mxu0 %v1697
        %1780 = vmatpush.msra.mxu0 %v1693
        %1781 = vmatpush.msra.mxu0 %v1689
        %1782 = vmatpush.msra.mxu0 %v1685
        %1783 = vmatpush.msra.mxu0 %v1681
        %1784 = vmatpush.msra.mxu0 %v1677
        %1785 = vmatpush.msra.mxu0 %v1673
        %1786 = vmatmul.f32.gmra.mxu0 %v1708
        %v1787 = vpop.f32.mrf.mxu0
        %v1788 = vadd.f32 %v1705, %v1787
        %1789 = vdwg.mxu0
        %v1790 = vmax.f32 %v1728, 1e-07
        %v1791 = vmax.f32 %v1748, 1e-07
        %v1792 = vmax.f32 %v1768, 1e-07
        %v1793 = vmax.f32 %v1788, 1e-07
        %v1794 = vmin.f32 %v1790, 0.9999999
        %v1795 = vmin.f32 %v1791, 0.9999999
        %v1796 = vmin.f32 %v1792, 0.9999999
        %v1797 = vmin.f32 %v1793, 0.9999999
        %v1798 = vsub.f32 1.0, %v1794
        %v1799 = vsub.f32 1.0, %v1795
        %v1800 = vsub.f32 1.0, %v1796
        %v1801 = vsub.f32 1.0, %v1797
        %v1806 = vrot.slane %v1799, 4
        %v1807 = vrot.slane %v1801, 4
        %v1808 = vsel %vm811, %v1798, %v1806
        %v1809 = vsel %vm811, %v1800, %v1807
        %v1812 = vmul.f32 %v695, %v1808
        %v1813 = vmul.f32 %v697, %v1809
        %1816 = vst [vmem:[#allocation1] ss:$2 sm:$0xff] %v1812
        %s1817 = scalar_lea.vmem [#allocation1], 16
        %1818 = vst [vmem:[%s1817] ss:$2 sm:$0xff] %v1813
        %v1819 = vld.sshfl [vmem:[#allocation1] sm:$0xff pattern:$0x75316420]
        %v1820 = vld.sshfl [vmem:[#allocation1 + $0x8] sm:$0xff pattern:$0x75316420]
        %v1821 = vld.sshfl [vmem:[#allocation1 + $0x10] sm:$0xff pattern:$0x75316420]
        %v1822 = vld.sshfl [vmem:[#allocation1 + $0x18] sm:$0xff pattern:$0x75316420]
        %v1827 = vadd.f32 %v1794, %v1819
        %v1828 = vadd.f32 %v1795, %v1820
        %v1829 = vadd.f32 %v1796, %v1821
        %v1830 = vadd.f32 %v1797, %v1822
        %v1831 = vrcp.pop %v1827
        %v1832 = vmul.f32 %v1827, %v1831
        %v1833 = vsub.f32 1.0, %v1832
        %v1834 = vmul.f32 %v1831, %v1833
        %v1835 = vadd.f32 %v1831, %v1834
        %vm1836 = vweird.f32 %v1827
        %vm1837 = vweird.f32 %v1831
        %vm1838 = vmor %vm1836, %vm1837
        %v1839 = vsel %vm1838, %v1831, %v1835
        %v1840 = vand.u32 2147483647, %v1827
        %vm1841 = vcmp.eq.f32.partialorder %v1840, 8.507059e+37
        %v1842 = vand.u32 %v1827, 2147483648
        %v1843 = vor.u32 1.1754944e-38, %v1842
        %v1844 = vsel %vm1841, %v1843, %v1839
        %v1845 = vmul.f32 %v1794, %v1844
        %v1846 = vrcp.pop %v1828
        %v1847 = vmul.f32 %v1828, %v1846
        %v1848 = vsub.f32 1.0, %v1847
        %v1849 = vmul.f32 %v1846, %v1848
        %v1850 = vadd.f32 %v1846, %v1849
        %vm1851 = vweird.f32 %v1828
        %vm1852 = vweird.f32 %v1846
        %vm1853 = vmor %vm1851, %vm1852
        %v1854 = vsel %vm1853, %v1846, %v1850
        %v1855 = vand.u32 2147483647, %v1828
        %vm1856 = vcmp.eq.f32.partialorder %v1855, 8.507059e+37
        %v1857 = vand.u32 %v1828, 2147483648
        %v1858 = vor.u32 1.1754944e-38, %v1857
        %v1859 = vsel %vm1856, %v1858, %v1854
        %v1860 = vmul.f32 %v1795, %v1859
        %v1861 = vrcp.pop %v1829
        %v1862 = vmul.f32 %v1829, %v1861
        %v1863 = vsub.f32 1.0, %v1862
        %v1864 = vmul.f32 %v1861, %v1863
        %v1865 = vadd.f32 %v1861, %v1864
        %vm1866 = vweird.f32 %v1829
        %vm1867 = vweird.f32 %v1861
        %vm1868 = vmor %vm1866, %vm1867
        %v1869 = vsel %vm1868, %v1861, %v1865
        %v1870 = vand.u32 2147483647, %v1829
        %vm1871 = vcmp.eq.f32.partialorder %v1870, 8.507059e+37
        %v1872 = vand.u32 %v1829, 2147483648
        %v1873 = vor.u32 1.1754944e-38, %v1872
        %v1874 = vsel %vm1871, %v1873, %v1869
        %v1875 = vmul.f32 %v1796, %v1874
        %v1876 = vrcp.pop %v1830
        %v1877 = vmul.f32 %v1830, %v1876
        %v1878 = vsub.f32 1.0, %v1877
        %v1879 = vmul.f32 %v1876, %v1878
        %v1880 = vadd.f32 %v1876, %v1879
        %vm1881 = vweird.f32 %v1830
        %vm1882 = vweird.f32 %v1876
        %vm1883 = vmor %vm1881, %vm1882
        %v1884 = vsel %vm1883, %v1876, %v1880
        %v1885 = vand.u32 2147483647, %v1830
        %vm1886 = vcmp.eq.f32.partialorder %v1885, 8.507059e+37
        %v1887 = vand.u32 %v1830, 2147483648
        %v1888 = vor.u32 1.1754944e-38, %v1887
        %v1889 = vsel %vm1886, %v1888, %v1884
        %v1890 = vmul.f32 %v1797, %v1889
        %v1895 = vrot.slane %v1860, 4
        %v1896 = vrot.slane %v1890, 4
        %v1897 = vsel %vm811, %v1845, %v1895
        %v1898 = vsel %vm811, %v1875, %v1896
        %1901 = vst [vmem:[%s434] sm:$0x77] %v1897
        %1902 = vst [vmem:[%s434 + $0x8] sm:$0x77] %v1898
        %s1903 = scalar_lea.vmem %s0, 4
        %v1904 = vld [vmem:[%s1903] sm:$0x7]
        %1906 = vset.pattern.permute.xlu0 0
        %1907 = vperm.xlu0 %1906, %v1904
        %v1908 = vpop.permute.xlu0 %1907
        %v1910 = vunpack.c.l.s4 839922192
        %v1911 = vunpack.c.0.s8 %v1910
        %v1912 = vperm.slane %v1908, %v1911
        %v1914 = vsub.f32 %v465, %v1912
        %v1915 = vsub.f32 %v466, %v1912
        %v1916 = vmul.f32 %v1914, %v1914
        %v1917 = vmul.f32 %v1915, %v1915
        %1920 = vst [vmem:[#allocation1] ss:$2 sm:$0xff] %v1916
        %s1921 = scalar_lea.vmem [#allocation1], 16
        %1922 = vst [vmem:[%s1921] ss:$2 sm:$0xff] %v1917
        %v1923 = vld.sshfl [vmem:[#allocation1] sm:$0xff pattern:$0x75316420]
        %v1924 = vld.sshfl [vmem:[#allocation1 + $0x8] sm:$0xff pattern:$0x75316420]
        %v1925 = vld.sshfl [vmem:[#allocation1 + $0x10] sm:$0xff pattern:$0x75316420]
        %v1926 = vld.sshfl [vmem:[#allocation1 + $0x18] sm:$0xff pattern:$0x75316420]
        %v1931 = vsel %vm732, %v1923, 0.0
        %v1932 = vrot.slane %v1931, 4
        %v1933 = vadd.f32 %v1931, %v1932
        %v1934 = vrot.slane %v1933, 2
        %v1935 = vadd.f32 %v1933, %v1934
        %v1936 = vrot.slane %v1935, 1
        %v1937 = vadd.f32 %v1935, %v1936
        %v1938 = vsel %vm732, %v1924, 0.0
        %v1939 = vrot.slane %v1938, 4
        %v1940 = vadd.f32 %v1938, %v1939
        %v1941 = vrot.slane %v1940, 2
        %v1942 = vadd.f32 %v1940, %v1941
        %v1943 = vrot.slane %v1942, 1
        %v1944 = vadd.f32 %v1942, %v1943
        %v1945 = vsel %vm732, %v1925, 0.0
        %v1946 = vrot.slane %v1945, 4
        %v1947 = vadd.f32 %v1945, %v1946
        %v1948 = vrot.slane %v1947, 2
        %v1949 = vadd.f32 %v1947, %v1948
        %v1950 = vrot.slane %v1949, 1
        %v1951 = vadd.f32 %v1949, %v1950
        %v1952 = vsel %vm732, %v1926, 0.0
        %v1953 = vrot.slane %v1952, 4
        %v1954 = vadd.f32 %v1952, %v1953
        %v1955 = vrot.slane %v1954, 2
        %v1956 = vadd.f32 %v1954, %v1955
        %v1957 = vrot.slane %v1956, 1
        %v1958 = vadd.f32 %v1956, %v1957
        %v1959 = vmax.f32 %v1937, 1e-24
        %v1960 = vmax.f32 %v1944, 1e-24
        %v1961 = vmax.f32 %v1951, 1e-24
        %v1962 = vmax.f32 %v1958, 1e-24
        %v1963 = vrsqrt.pop %v1959
        %v1964 = vmul.f32 %v1963, %v1959
        %v1965 = vmul.f32 %v1964, %v1963
        %v1966 = vmul.f32 0.5, %v1965
        %v1967 = vsub.f32 1.5, %v1966
        %v1968 = vmul.f32 %v1963, %v1967
        %vm1969 = vweird.f32 %v1959
        %vm1970 = vweird.f32 %v1963
        %vm1971 = vmor %vm1969, %vm1970
        %v1972 = vsel %vm1971, %v1963, %v1968
        %v1973 = vrsqrt.pop %v1960
        %v1974 = vmul.f32 %v1973, %v1960
        %v1975 = vmul.f32 %v1974, %v1973
        %v1976 = vmul.f32 0.5, %v1975
        %v1977 = vsub.f32 1.5, %v1976
        %v1978 = vmul.f32 %v1973, %v1977
        %vm1979 = vweird.f32 %v1960
        %vm1980 = vweird.f32 %v1973
        %vm1981 = vmor %vm1979, %vm1980
        %v1982 = vsel %vm1981, %v1973, %v1978
        %v1983 = vrsqrt.pop %v1961
        %v1984 = vmul.f32 %v1983, %v1961
        %v1985 = vmul.f32 %v1984, %v1983
        %v1986 = vmul.f32 0.5, %v1985
        %v1987 = vsub.f32 1.5, %v1986
        %v1988 = vmul.f32 %v1983, %v1987
        %vm1989 = vweird.f32 %v1961
        %vm1990 = vweird.f32 %v1983
        %vm1991 = vmor %vm1989, %vm1990
        %v1992 = vsel %vm1991, %v1983, %v1988
        %v1993 = vrsqrt.pop %v1962
        %v1994 = vmul.f32 %v1993, %v1962
        %v1995 = vmul.f32 %v1994, %v1993
        %v1996 = vmul.f32 0.5, %v1995
        %v1997 = vsub.f32 1.5, %v1996
        %v1998 = vmul.f32 %v1993, %v1997
        %vm1999 = vweird.f32 %v1962
        %vm2000 = vweird.f32 %v1993
        %vm2001 = vmor %vm1999, %vm2000
        %v2002 = vsel %vm2001, %v1993, %v1998
        %v2007 = vrot.slane %v1982, 4
        %v2008 = vrot.slane %v2002, 4
        %v2009 = vsel %vm811, %v1972, %v2007
        %v2010 = vsel %vm811, %v1992, %v2008
        %v2013 = vmul.f32 %v1914, %v2009
        %v2014 = vmul.f32 %v1915, %v2010
        %v2015 = vmul.f32 %v2013, -0.48860252
        %v2016 = vmul.f32 %v2014, -0.48860252
        %2019 = vst [vmem:[#allocation1] sm:$0xff] %v2015
        %2020 = vst [vmem:[#allocation1 + $0x8] sm:$0xff] %v2016
        %s2021 = scalar_lea.vmem [#allocation1], 1
        %v2022 = vld [vmem:[%s2021] ss:$4 sm:$0xff]
        %2024 = vst.msk [vmem:[#allocation2] ss:$8 sm:$0xf] %vm701, %v2022
        %2025 = vst.msk [vmem:[#allocation2] ss:$8 sm:$0x0] %vm701, %v2022
        %v2026 = vmul.f32 %v2013, 0.48860252
        %v2027 = vmul.f32 %v2014, 0.48860252
        %2030 = vst [vmem:[#allocation1] sm:$0xff] %v2026
        %2031 = vst [vmem:[#allocation1 + $0x8] sm:$0xff] %v2027
        %s2032 = scalar_lea.vmem [#allocation1], 2
        %v2033 = vld [vmem:[%s2032] ss:$4 sm:$0xff]
        %2035 = vst.msk [vmem:[%s838] ss:$8 sm:$0xf] %vm701, %v2033
        %2036 = vst.msk [vmem:[%s838] ss:$8 sm:$0x0] %vm701, %v2033
        %v2037 = vrot.slane %v2015, 3
        %v2038 = vrot.slane %v2016, 6
        %v2039 = vrot.slane %v2016, 1
        %v2040 = vsel %vm844, %v2015, %v2037
        %v2041 = vsel %vm846, %v2038, %v2039
        %v2042 = vsel %vm848, %v2040, %v2041
        %2044 = vst.msk [vmem:[%s851] ss:$8 sm:$0xf] %vm701, %v2042
        %2045 = vst.msk [vmem:[%s851] ss:$8 sm:$0x0] %vm701, %v2042
        %v2046 = vmul.f32 %v2013, %v2013
        %v2047 = vmul.f32 %v2014, %v2014
        %v2048 = vmul.f32 %v2013, -1.0925485
        %v2049 = vmul.f32 %v2014, -1.0925485
        %v2052 = vrot.slane %v2046, 5
        %v2053 = vrot.slane %v2052, 4
        %v2054 = vrot.slane %v2047, 5
        %v2055 = vrot.slane %v2054, 4
        %v2058 = vsub.f32 %v2046, %v2053
        %v2059 = vsub.f32 %v2047, %v2055
        %v2060 = vmul.f32 %v2013, 2.0
        %v2061 = vmul.f32 %v2014, 2.0
        %v2064 = vrot.slane %v2013, 5
        %v2065 = vrot.slane %v2064, 4
        %v2066 = vrot.slane %v2014, 5
        %v2067 = vrot.slane %v2066, 4
        %v2070 = vmul.f32 %v2060, %v2065
        %v2071 = vmul.f32 %v2061, %v2067
        %v2072 = vmul.f32 %v2070, 0.54627424
        %v2073 = vmul.f32 %v2071, 0.54627424
        %v2076 = vrot.slane %v2072, 3
        %v2077 = vrot.slane %v2073, 6
        %v2078 = vrot.slane %v2073, 1
        %v2079 = vsel %vm844, %v2072, %v2076
        %v2080 = vsel %vm846, %v2077, %v2078
        %v2081 = vsel %vm848, %v2079, %v2080
        %2083 = vst.msk [vmem:[%s891] ss:$8 sm:$0xf] %vm701, %v2081
        %2084 = vst.msk [vmem:[%s891] ss:$8 sm:$0x0] %vm701, %v2081
        %v2085 = vrot.slane %v2013, 7
        %v2086 = vrot.slane %v2014, 7
        %v2089 = vmul.f32 %v2048, %v2085
        %v2090 = vmul.f32 %v2049, %v2086
        %2093 = vst [vmem:[#allocation1] sm:$0xff] %v2089
        %2094 = vst [vmem:[#allocation1 + $0x8] sm:$0xff] %v2090
        %s2095 = scalar_lea.vmem [#allocation1], 2
        %v2096 = vld [vmem:[%s2095] ss:$4 sm:$0xff]
        %2098 = vst.msk [vmem:[%s907] ss:$8 sm:$0xf] %vm701, %v2096
        %2099 = vst.msk [vmem:[%s907] ss:$8 sm:$0x0] %vm701, %v2096
        %v2100 = vmul.f32 %v2046, 0.9461747
        %v2101 = vmul.f32 %v2047, 0.9461747
        %v2102 = vsub.f32 %v2100, 0.31539157
        %v2103 = vsub.f32 %v2101, 0.31539157
        %2106 = vst [vmem:[#allocation1] sm:$0xff] %v2102
        %2107 = vst [vmem:[#allocation1 + $0x8] sm:$0xff] %v2103
        %s2108 = scalar_lea.vmem [#allocation1], 2
        %v2109 = vld [vmem:[%s2108] ss:$4 sm:$0xff]
        %2111 = vst.msk [vmem:[%s921] ss:$8 sm:$0xf] %vm701, %v2109
        %2112 = vst.msk [vmem:[%s921] ss:$8 sm:$0x0] %vm701, %v2109
        %v2113 = vrot.slane %v2013, 6
        %v2114 = vrot.slane %v2014, 6
        %v2117 = vmul.f32 %v2048, %v2113
        %v2118 = vmul.f32 %v2049, %v2114
        %2121 = vst [vmem:[#allocation1] sm:$0xff] %v2117
        %2122 = vst [vmem:[#allocation1 + $0x8] sm:$0xff] %v2118
        %s2123 = scalar_lea.vmem [#allocation1], 2
        %v2124 = vld [vmem:[%s2123] ss:$4 sm:$0xff]
        %2126 = vst.msk [vmem:[%s937] ss:$8 sm:$0xf] %vm701, %v2124
        %2127 = vst.msk [vmem:[%s937] ss:$8 sm:$0x0] %vm701, %v2124
        %v2128 = vmul.f32 %v2058, 0.54627424
        %v2129 = vmul.f32 %v2059, 0.54627424
        %v2132 = vrot.slane %v2128, 3
        %v2133 = vrot.slane %v2129, 6
        %v2134 = vrot.slane %v2129, 1
        %v2135 = vsel %vm844, %v2128, %v2132
        %v2136 = vsel %vm846, %v2133, %v2134
        %v2137 = vsel %vm848, %v2135, %v2136
        %2139 = vst.msk [vmem:[%s951] ss:$8 sm:$0xf] %vm701, %v2137
        %2140 = vst.msk [vmem:[%s951] ss:$8 sm:$0x0] %vm701, %v2137
        %v2141 = vmul.f32 %v2046, -2.285229
        %v2142 = vmul.f32 %v2047, -2.285229
        %v2143 = vadd.f32 %v2141, 0.4570458
        %v2144 = vadd.f32 %v2142, 0.4570458
        %v2145 = vmul.f32 %v2013, 1.4453057
        %v2146 = vmul.f32 %v2014, 1.4453057
        %v2147 = vmul.f32 %v2013, %v2058
        %v2148 = vmul.f32 %v2014, %v2059
        %v2151 = vrot.slane %v2070, 7
        %v2152 = vrot.slane %v2071, 7
        %v2155 = vmul.f32 %v2013, %v2151
        %v2156 = vmul.f32 %v2014, %v2152
        %v2159 = vrot.slane %v2155, 5
        %v2160 = vrot.slane %v2159, 4
        %v2161 = vrot.slane %v2156, 5
        %v2162 = vrot.slane %v2161, 4
        %v2165 = vsub.f32 %v2147, %v2160
        %v2166 = vsub.f32 %v2148, %v2162
        %v2167 = vmul.f32 %v2013, %v2070
        %v2168 = vmul.f32 %v2014, %v2071
        %v2171 = vrot.slane %v2058, 7
        %v2172 = vrot.slane %v2059, 7
        %v2175 = vmul.f32 %v2013, %v2171
        %v2176 = vmul.f32 %v2014, %v2172
        %v2179 = vrot.slane %v2175, 5
        %v2180 = vrot.slane %v2179, 4
        %v2181 = vrot.slane %v2176, 5
        %v2182 = vrot.slane %v2181, 4
        %v2185 = vadd.f32 %v2167, %v2180
        %v2186 = vadd.f32 %v2168, %v2182
        %v2187 = vmul.f32 %v2185, -0.5900436
        %v2188 = vmul.f32 %v2186, -0.5900436
        %v2191 = vrot.slane %v2187, 3
        %v2192 = vrot.slane %v2188, 6
        %v2193 = vrot.slane %v2188, 1
        %v2194 = vsel %vm844, %v2187, %v2191
        %v2195 = vsel %vm846, %v2192, %v2193
        %v2196 = vsel %vm848, %v2194, %v2195
        %2198 = vst.msk [vmem:[%s1011] ss:$8 sm:$0xf] %vm701, %v2196
        %2199 = vst.msk [vmem:[%s1011] ss:$8 sm:$0x0] %vm701, %v2196
        %v2200 = vrot.slane %v2070, 6
        %v2201 = vrot.slane %v2071, 6
        %v2204 = vmul.f32 %v2145, %v2200
        %v2205 = vmul.f32 %v2146, %v2201
        %2208 = vst [vmem:[#allocation1] sm:$0xff] %v2204
        %2209 = vst [vmem:[#allocation1 + $0x8] sm:$0xff] %v2205
        %s2210 = scalar_lea.vmem [#allocation1], 2
        %v2211 = vld [vmem:[%s2210] ss:$4 sm:$0xff]
        %2213 = vst.msk [vmem:[%s1027] ss:$8 sm:$0xf] %vm701, %v2211
        %2214 = vst.msk [vmem:[%s1027] ss:$8 sm:$0x0] %vm701, %v2211
        %v2215 = vmul.f32 %v2143, %v2085
        %v2216 = vmul.f32 %v2144, %v2086
        %2219 = vst [vmem:[#allocation1] sm:$0xff] %v2215
        %2220 = vst [vmem:[#allocation1 + $0x8] sm:$0xff] %v2216
        %s2221 = scalar_lea.vmem [#allocation1], 2
        %v2222 = vld [vmem:[%s2221] ss:$4 sm:$0xff]
        %2224 = vst.msk [vmem:[%s1039] ss:$8 sm:$0xf] %vm701, %v2222
        %2225 = vst.msk [vmem:[%s1039] ss:$8 sm:$0x0] %vm701, %v2222
        %v2226 = vmul.f32 %v2046, 1.8658817
        %v2227 = vmul.f32 %v2047, 1.8658817
        %v2228 = vsub.f32 %v2226, 1.119529
        %v2229 = vsub.f32 %v2227, 1.119529
        %v2230 = vmul.f32 %v2013, %v2228
        %v2231 = vmul.f32 %v2014, %v2229
        %2234 = vst [vmem:[#allocation1] sm:$0xff] %v2230
        %2235 = vst [vmem:[#allocation1 + $0x8] sm:$0xff] %v2231
        %s2236 = scalar_lea.vmem [#allocation1], 2
        %v2237 = vld [vmem:[%s2236] ss:$4 sm:$0xff]
        %2239 = vst.msk [vmem:[%s1055] ss:$8 sm:$0xf] %vm701, %v2237
        %2240 = vst.msk [vmem:[%s1055] ss:$8 sm:$0x0] %vm701, %v2237
        %v2241 = vmul.f32 %v2143, %v2113
        %v2242 = vmul.f32 %v2144, %v2114
        %2245 = vst [vmem:[#allocation1] sm:$0xff] %v2241
        %2246 = vst [vmem:[#allocation1 + $0x8] sm:$0xff] %v2242
        %s2247 = scalar_lea.vmem [#allocation1], 2
        %v2248 = vld [vmem:[%s2247] ss:$4 sm:$0xff]
        %2250 = vst.msk [vmem:[%s1067] ss:$8 sm:$0xf] %vm701, %v2248
        %2251 = vst.msk [vmem:[%s1067] ss:$8 sm:$0x0] %vm701, %v2248
        %v2252 = vrot.slane %v2058, 6
        %v2253 = vrot.slane %v2059, 6
        %v2256 = vmul.f32 %v2145, %v2252
        %v2257 = vmul.f32 %v2146, %v2253
        %2260 = vst [vmem:[#allocation1] sm:$0xff] %v2256
        %2261 = vst [vmem:[#allocation1 + $0x8] sm:$0xff] %v2257
        %s2262 = scalar_lea.vmem [#allocation1], 2
        %v2263 = vld [vmem:[%s2262] ss:$4 sm:$0xff]
        %2265 = vst.msk [vmem:[%s1083] ss:$8 sm:$0xf] %vm701, %v2263
        %2266 = vst.msk [vmem:[%s1083] ss:$8 sm:$0x0] %vm701, %v2263
        %v2267 = vmul.f32 %v2165, -0.5900436
        %v2268 = vmul.f32 %v2166, -0.5900436
        %v2271 = vrot.slane %v2267, 3
        %v2272 = vrot.slane %v2268, 6
        %v2273 = vrot.slane %v2268, 1
        %v2274 = vsel %vm844, %v2267, %v2271
        %v2275 = vsel %vm846, %v2272, %v2273
        %v2276 = vsel %vm848, %v2274, %v2275
        %2278 = vst.msk [vmem:[%s1097] ss:$8 sm:$0xf] %vm701, %v2276
        %2279 = vst.msk [vmem:[%s1097] ss:$8 sm:$0x0] %vm701, %v2276
        %v2280 = vld [vmem:[#allocation2] sm:$0xff]
        %v2281 = vld [vmem:[#allocation2 + $0x8] sm:$0xff]
        %v2282 = vld [vmem:[#allocation2 + $0x10] sm:$0xff]
        %v2283 = vld [vmem:[#allocation2 + $0x18] sm:$0xff]
        %v2284 = vld [vmem:[#allocation2 + $0x20] sm:$0xff]
        %v2285 = vld [vmem:[#allocation2 + $0x28] sm:$0xff]
        %v2286 = vld [vmem:[#allocation2 + $0x30] sm:$0xff]
        %v2287 = vld [vmem:[#allocation2 + $0x38] sm:$0xff]
        %2288 = vmatpush.msra.mxu0 0.0
        %2289 = vmatpush.msra.mxu0 0.0
        %2290 = vmatpush.msra.mxu0 0.0
        %2291 = vmatpush.msra.mxu0 0.0
        %2292 = vmatpush.msra.mxu0 0.0
        %2293 = vmatpush.msra.mxu0 0.0
        %2294 = vmatpush.msra.mxu0 0.0
        %2295 = vmatpush.msra.mxu0 0.0
        %2296 = vmatpush.msra.mxu0 0.0
        %2297 = vmatpush.msra.mxu0 0.0
        %2298 = vmatpush.msra.mxu0 0.0
        %2299 = vmatpush.msra.mxu0 0.0
        %2300 = vmatpush.msra.mxu0 0.0
        %2301 = vmatpush.msra.mxu0 0.0
        %2302 = vmatpush.msra.mxu0 %v2284
        %2303 = vmatpush.msra.mxu0 %v2280
        %2304 = vmatmul.f32.gmra.mxu0 %v1110
        %v2305 = vpop.f32.mrf.mxu0
        %v2306 = vadd.f32 0.0, %v2305
        %2307 = vmatmul.f32.gmra.mxu0 %v1113
        %v2308 = vpop.f32.mrf.mxu0
        %v2309 = vadd.f32 0.0, %v2308
        %2310 = vmatmul.f32.gmra.mxu0 %v1116
        %v2311 = vpop.f32.mrf.mxu0
        %v2312 = vadd.f32 0.0, %v2311
        %2313 = vmatmul.f32.gmra.mxu0 %v1119
        %v2314 = vpop.f32.mrf.mxu0
        %v2315 = vadd.f32 0.0, %v2314
        %2316 = vmatmul.f32.gmra.mxu0 %v1122
        %v2317 = vpop.f32.mrf.mxu0
        %v2318 = vadd.f32 0.0, %v2317
        %2319 = vmatmul.f32.gmra.mxu0 %v1125
        %v2320 = vpop.f32.mrf.mxu0
        %v2321 = vadd.f32 0.0, %v2320
        %2322 = vmatmul.f32.gmra.mxu0 %v1128
        %v2323 = vpop.f32.mrf.mxu0
        %v2324 = vadd.f32 0.0, %v2323
        %2325 = vmatmul.f32.gmra.mxu0 %v1131
        %v2326 = vpop.f32.mrf.mxu0
        %v2327 = vadd.f32 0.0, %v2326
        %2328 = vdwg.mxu0
        %2329 = vmatpush.msra.mxu0 0.0
        %2330 = vmatpush.msra.mxu0 0.0
        %2331 = vmatpush.msra.mxu0 0.0
        %2332 = vmatpush.msra.mxu0 0.0
        %2333 = vmatpush.msra.mxu0 0.0
        %2334 = vmatpush.msra.mxu0 0.0
        %2335 = vmatpush.msra.mxu0 0.0
        %2336 = vmatpush.msra.mxu0 0.0
        %2337 = vmatpush.msra.mxu0 0.0
        %2338 = vmatpush.msra.mxu0 0.0
        %2339 = vmatpush.msra.mxu0 0.0
        %2340 = vmatpush.msra.mxu0 0.0
        %2341 = vmatpush.msra.mxu0 0.0
        %2342 = vmatpush.msra.mxu0 0.0
        %2343 = vmatpush.msra.mxu0 %v2285
        %2344 = vmatpush.msra.mxu0 %v2281
        %2345 = vmatmul.f32.gmra.mxu0 %v1110
        %v2346 = vpop.f32.mrf.mxu0
        %v2347 = vadd.f32 0.0, %v2346
        %2348 = vmatmul.f32.gmra.mxu0 %v1113
        %v2349 = vpop.f32.mrf.mxu0
        %v2350 = vadd.f32 0.0, %v2349
        %2351 = vmatmul.f32.gmra.mxu0 %v1116
        %v2352 = vpop.f32.mrf.mxu0
        %v2353 = vadd.f32 0.0, %v2352
        %2354 = vmatmul.f32.gmra.mxu0 %v1119
        %v2355 = vpop.f32.mrf.mxu0
        %v2356 = vadd.f32 0.0, %v2355
        %2357 = vmatmul.f32.gmra.mxu0 %v1122
        %v2358 = vpop.f32.mrf.mxu0
        %v2359 = vadd.f32 0.0, %v2358
        %2360 = vmatmul.f32.gmra.mxu0 %v1125
        %v2361 = vpop.f32.mrf.mxu0
        %v2362 = vadd.f32 0.0, %v2361
        %2363 = vmatmul.f32.gmra.mxu0 %v1128
        %v2364 = vpop.f32.mrf.mxu0
        %v2365 = vadd.f32 0.0, %v2364
        %2366 = vmatmul.f32.gmra.mxu0 %v1131
        %v2367 = vpop.f32.mrf.mxu0
        %v2368 = vadd.f32 0.0, %v2367
        %2369 = vdwg.mxu0
        %2370 = vmatpush.msra.mxu0 0.0
        %2371 = vmatpush.msra.mxu0 0.0
        %2372 = vmatpush.msra.mxu0 0.0
        %2373 = vmatpush.msra.mxu0 0.0
        %2374 = vmatpush.msra.mxu0 0.0
        %2375 = vmatpush.msra.mxu0 0.0
        %2376 = vmatpush.msra.mxu0 0.0
        %2377 = vmatpush.msra.mxu0 0.0
        %2378 = vmatpush.msra.mxu0 0.0
        %2379 = vmatpush.msra.mxu0 0.0
        %2380 = vmatpush.msra.mxu0 0.0
        %2381 = vmatpush.msra.mxu0 0.0
        %2382 = vmatpush.msra.mxu0 0.0
        %2383 = vmatpush.msra.mxu0 0.0
        %2384 = vmatpush.msra.mxu0 %v2286
        %2385 = vmatpush.msra.mxu0 %v2282
        %2386 = vmatmul.f32.gmra.mxu0 %v1110
        %v2387 = vpop.f32.mrf.mxu0
        %v2388 = vadd.f32 0.0, %v2387
        %2389 = vmatmul.f32.gmra.mxu0 %v1113
        %v2390 = vpop.f32.mrf.mxu0
        %v2391 = vadd.f32 0.0, %v2390
        %2392 = vmatmul.f32.gmra.mxu0 %v1116
        %v2393 = vpop.f32.mrf.mxu0
        %v2394 = vadd.f32 0.0, %v2393
        %2395 = vmatmul.f32.gmra.mxu0 %v1119
        %v2396 = vpop.f32.mrf.mxu0
        %v2397 = vadd.f32 0.0, %v2396
        %2398 = vmatmul.f32.gmra.mxu0 %v1122
        %v2399 = vpop.f32.mrf.mxu0
        %v2400 = vadd.f32 0.0, %v2399
        %2401 = vmatmul.f32.gmra.mxu0 %v1125
        %v2402 = vpop.f32.mrf.mxu0
        %v2403 = vadd.f32 0.0, %v2402
        %2404 = vmatmul.f32.gmra.mxu0 %v1128
        %v2405 = vpop.f32.mrf.mxu0
        %v2406 = vadd.f32 0.0, %v2405
        %2407 = vmatmul.f32.gmra.mxu0 %v1131
        %v2408 = vpop.f32.mrf.mxu0
        %v2409 = vadd.f32 0.0, %v2408
        %2410 = vdwg.mxu0
        %2411 = vmatpush.msra.mxu0 0.0
        %2412 = vmatpush.msra.mxu0 0.0
        %2413 = vmatpush.msra.mxu0 0.0
        %2414 = vmatpush.msra.mxu0 0.0
        %2415 = vmatpush.msra.mxu0 0.0
        %2416 = vmatpush.msra.mxu0 0.0
        %2417 = vmatpush.msra.mxu0 0.0
        %2418 = vmatpush.msra.mxu0 0.0
        %2419 = vmatpush.msra.mxu0 0.0
        %2420 = vmatpush.msra.mxu0 0.0
        %2421 = vmatpush.msra.mxu0 0.0
        %2422 = vmatpush.msra.mxu0 0.0
        %2423 = vmatpush.msra.mxu0 0.0
        %2424 = vmatpush.msra.mxu0 0.0
        %2425 = vmatpush.msra.mxu0 %v2287
        %2426 = vmatpush.msra.mxu0 %v2283
        %2427 = vmatmul.f32.gmra.mxu0 %v1110
        %v2428 = vpop.f32.mrf.mxu0
        %v2429 = vadd.f32 0.0, %v2428
        %2430 = vmatmul.f32.gmra.mxu0 %v1113
        %v2431 = vpop.f32.mrf.mxu0
        %v2432 = vadd.f32 0.0, %v2431
        %2433 = vmatmul.f32.gmra.mxu0 %v1116
        %v2434 = vpop.f32.mrf.mxu0
        %v2435 = vadd.f32 0.0, %v2434
        %2436 = vmatmul.f32.gmra.mxu0 %v1119
        %v2437 = vpop.f32.mrf.mxu0
        %v2438 = vadd.f32 0.0, %v2437
        %2439 = vmatmul.f32.gmra.mxu0 %v1122
        %v2440 = vpop.f32.mrf.mxu0
        %v2441 = vadd.f32 0.0, %v2440
        %2442 = vmatmul.f32.gmra.mxu0 %v1125
        %v2443 = vpop.f32.mrf.mxu0
        %v2444 = vadd.f32 0.0, %v2443
        %2445 = vmatmul.f32.gmra.mxu0 %v1128
        %v2446 = vpop.f32.mrf.mxu0
        %v2447 = vadd.f32 0.0, %v2446
        %2448 = vmatmul.f32.gmra.mxu0 %v1131
        %v2449 = vpop.f32.mrf.mxu0
        %v2450 = vadd.f32 0.0, %v2449
        %2451 = vdwg.mxu0
        %v2452 = vadd.f32 %v546, %v2306
        %v2453 = vadd.f32 %v587, %v2347
        %v2454 = vadd.f32 %v628, %v2388
        %v2455 = vadd.f32 %v669, %v2429
        %v2456 = vadd.f32 %v549, %v2309
        %v2457 = vadd.f32 %v590, %v2350
        %v2458 = vadd.f32 %v631, %v2391
        %v2459 = vadd.f32 %v672, %v2432
        %v2460 = vadd.f32 %v552, %v2312
        %v2461 = vadd.f32 %v593, %v2353
        %v2462 = vadd.f32 %v634, %v2394
        %v2463 = vadd.f32 %v675, %v2435
        %v2464 = vadd.f32 %v555, %v2315
        %v2465 = vadd.f32 %v596, %v2356
        %v2466 = vadd.f32 %v637, %v2397
        %v2467 = vadd.f32 %v678, %v2438
        %v2468 = vadd.f32 %v558, %v2318
        %v2469 = vadd.f32 %v599, %v2359
        %v2470 = vadd.f32 %v640, %v2400
        %v2471 = vadd.f32 %v681, %v2441
        %v2472 = vadd.f32 %v561, %v2321
        %v2473 = vadd.f32 %v602, %v2362
        %v2474 = vadd.f32 %v643, %v2403
        %v2475 = vadd.f32 %v684, %v2444
        %v2476 = vadd.f32 %v564, %v2324
        %v2477 = vadd.f32 %v605, %v2365
        %v2478 = vadd.f32 %v646, %v2406
        %v2479 = vadd.f32 %v687, %v2447
        %v2480 = vadd.f32 %v567, %v2327
        %v2481 = vadd.f32 %v608, %v2368
        %v2482 = vadd.f32 %v649, %v2409
        %v2483 = vadd.f32 %v690, %v2450
        %s2484 = scalar_lea.vmem %s1, 64
        %v2485 = vld [vmem:[%s2484] sm:$0xff]
        %v2486 = vld [vmem:[%s2484 + $0x8] sm:$0xff]
        %v2487 = vld [vmem:[%s2484 + $0x10] sm:$0xff]
        %v2488 = vld [vmem:[%s2484 + $0x18] sm:$0xff]
        %v2489 = vld [vmem:[%s2484 + $0x20] sm:$0xff]
        %v2490 = vld [vmem:[%s2484 + $0x28] sm:$0xff]
        %v2491 = vld [vmem:[%s2484 + $0x30] sm:$0xff]
        %v2492 = vld [vmem:[%s2484 + $0x38] sm:$0xff]
        %2494 = vset.pattern.permute.xlu0 0
        %2495 = vperm.xlu0 %2494, %v2485
        %v2496 = vpop.permute.xlu0 %2495
        %2499 = vset.pattern.permute.xlu0 0
        %2500 = vperm.xlu0 %2499, %v2486
        %v2501 = vpop.permute.xlu0 %2500
        %2504 = vset.pattern.permute.xlu0 0
        %2505 = vperm.xlu0 %2504, %v2487
        %v2506 = vpop.permute.xlu0 %2505
        %2509 = vset.pattern.permute.xlu0 0
        %2510 = vperm.xlu0 %2509, %v2488
        %v2511 = vpop.permute.xlu0 %2510
        %2514 = vset.pattern.permute.xlu0 0
        %2515 = vperm.xlu0 %2514, %v2489
        %v2516 = vpop.permute.xlu0 %2515
        %2519 = vset.pattern.permute.xlu0 0
        %2520 = vperm.xlu0 %2519, %v2490
        %v2521 = vpop.permute.xlu0 %2520
        %2524 = vset.pattern.permute.xlu0 0
        %2525 = vperm.xlu0 %2524, %v2491
        %v2526 = vpop.permute.xlu0 %2525
        %2529 = vset.pattern.permute.xlu0 0
        %2530 = vperm.xlu0 %2529, %v2492
        %v2531 = vpop.permute.xlu0 %2530
        %v2533 = vadd.f32 %v2452, %v2496
        %v2534 = vadd.f32 %v2453, %v2496
        %v2535 = vadd.f32 %v2454, %v2496
        %v2536 = vadd.f32 %v2455, %v2496
        %v2537 = vadd.f32 %v2456, %v2501
        %v2538 = vadd.f32 %v2457, %v2501
        %v2539 = vadd.f32 %v2458, %v2501
        %v2540 = vadd.f32 %v2459, %v2501
        %v2541 = vadd.f32 %v2460, %v2506
        %v2542 = vadd.f32 %v2461, %v2506
        %v2543 = vadd.f32 %v2462, %v2506
        %v2544 = vadd.f32 %v2463, %v2506
        %v2545 = vadd.f32 %v2464, %v2511
        %v2546 = vadd.f32 %v2465, %v2511
        %v2547 = vadd.f32 %v2466, %v2511
        %v2548 = vadd.f32 %v2467, %v2511
        %v2549 = vadd.f32 %v2468, %v2516
        %v2550 = vadd.f32 %v2469, %v2516
        %v2551 = vadd.f32 %v2470, %v2516
        %v2552 = vadd.f32 %v2471, %v2516
        %v2553 = vadd.f32 %v2472, %v2521
        %v2554 = vadd.f32 %v2473, %v2521
        %v2555 = vadd.f32 %v2474, %v2521
        %v2556 = vadd.f32 %v2475, %v2521
        %v2557 = vadd.f32 %v2476, %v2526
        %v2558 = vadd.f32 %v2477, %v2526
        %v2559 = vadd.f32 %v2478, %v2526
        %v2560 = vadd.f32 %v2479, %v2526
        %v2561 = vadd.f32 %v2480, %v2531
        %v2562 = vadd.f32 %v2481, %v2531
        %v2563 = vadd.f32 %v2482, %v2531
        %v2564 = vadd.f32 %v2483, %v2531
        %v2565 = vmax.f32 %v2533, 0.0
        %v2566 = vmax.f32 %v2534, 0.0
        %v2567 = vmax.f32 %v2535, 0.0
        %v2568 = vmax.f32 %v2536, 0.0
        %v2569 = vmax.f32 %v2537, 0.0
        %v2570 = vmax.f32 %v2538, 0.0
        %v2571 = vmax.f32 %v2539, 0.0
        %v2572 = vmax.f32 %v2540, 0.0
        %v2573 = vmax.f32 %v2541, 0.0
        %v2574 = vmax.f32 %v2542, 0.0
        %v2575 = vmax.f32 %v2543, 0.0
        %v2576 = vmax.f32 %v2544, 0.0
        %v2577 = vmax.f32 %v2545, 0.0
        %v2578 = vmax.f32 %v2546, 0.0
        %v2579 = vmax.f32 %v2547, 0.0
        %v2580 = vmax.f32 %v2548, 0.0
        %v2581 = vmax.f32 %v2549, 0.0
        %v2582 = vmax.f32 %v2550, 0.0
        %v2583 = vmax.f32 %v2551, 0.0
        %v2584 = vmax.f32 %v2552, 0.0
        %v2585 = vmax.f32 %v2553, 0.0
        %v2586 = vmax.f32 %v2554, 0.0
        %v2587 = vmax.f32 %v2555, 0.0
        %v2588 = vmax.f32 %v2556, 0.0
        %v2589 = vmax.f32 %v2557, 0.0
        %v2590 = vmax.f32 %v2558, 0.0
        %v2591 = vmax.f32 %v2559, 0.0
        %v2592 = vmax.f32 %v2560, 0.0
        %v2593 = vmax.f32 %v2561, 0.0
        %v2594 = vmax.f32 %v2562, 0.0
        %v2595 = vmax.f32 %v2563, 0.0
        %v2596 = vmax.f32 %v2564, 0.0
        %2597 = vmatpush.msra.mxu0 0.0
        %2598 = vmatpush.msra.mxu0 0.0
        %2599 = vmatpush.msra.mxu0 0.0
        %2600 = vmatpush.msra.mxu0 0.0
        %2601 = vmatpush.msra.mxu0 0.0
        %2602 = vmatpush.msra.mxu0 0.0
        %2603 = vmatpush.msra.mxu0 0.0
        %2604 = vmatpush.msra.mxu0 0.0
        %2605 = vmatpush.msra.mxu0 %v2593
        %2606 = vmatpush.msra.mxu0 %v2589
        %2607 = vmatpush.msra.mxu0 %v2585
        %2608 = vmatpush.msra.mxu0 %v2581
        %2609 = vmatpush.msra.mxu0 %v2577
        %2610 = vmatpush.msra.mxu0 %v2573
        %2611 = vmatpush.msra.mxu0 %v2569
        %2612 = vmatpush.msra.mxu0 %v2565
        %2613 = vmatmul.f32.gmra.mxu0 %v1483
        %v2614 = vpop.f32.mrf.mxu0
        %v2615 = vadd.f32 %v1444, %v2614
        %2616 = vmatmul.f32.gmra.mxu0 %v1486
        %v2617 = vpop.f32.mrf.mxu0
        %v2618 = vadd.f32 %v1449, %v2617
        %2619 = vmatmul.f32.gmra.mxu0 %v1489
        %v2620 = vpop.f32.mrf.mxu0
        %v2621 = vadd.f32 %v1454, %v2620
        %2622 = vmatmul.f32.gmra.mxu0 %v1492
        %v2623 = vpop.f32.mrf.mxu0
        %v2624 = vadd.f32 %v1459, %v2623
        %2625 = vmatmul.f32.gmra.mxu0 %v1495
        %v2626 = vpop.f32.mrf.mxu0
        %v2627 = vadd.f32 %v1464, %v2626
        %2628 = vmatmul.f32.gmra.mxu0 %v1498
        %v2629 = vpop.f32.mrf.mxu0
        %v2630 = vadd.f32 %v1469, %v2629
        %2631 = vmatmul.f32.gmra.mxu0 %v1501
        %v2632 = vpop.f32.mrf.mxu0
        %v2633 = vadd.f32 %v1474, %v2632
        %2634 = vmatmul.f32.gmra.mxu0 %v1504
        %v2635 = vpop.f32.mrf.mxu0
        %v2636 = vadd.f32 %v1479, %v2635
        %2637 = vdwg.mxu0
        %2638 = vmatpush.msra.mxu0 0.0
        %2639 = vmatpush.msra.mxu0 0.0
        %2640 = vmatpush.msra.mxu0 0.0
        %2641 = vmatpush.msra.mxu0 0.0
        %2642 = vmatpush.msra.mxu0 0.0
        %2643 = vmatpush.msra.mxu0 0.0
        %2644 = vmatpush.msra.mxu0 0.0
        %2645 = vmatpush.msra.mxu0 0.0
        %2646 = vmatpush.msra.mxu0 %v2594
        %2647 = vmatpush.msra.mxu0 %v2590
        %2648 = vmatpush.msra.mxu0 %v2586
        %2649 = vmatpush.msra.mxu0 %v2582
        %2650 = vmatpush.msra.mxu0 %v2578
        %2651 = vmatpush.msra.mxu0 %v2574
        %2652 = vmatpush.msra.mxu0 %v2570
        %2653 = vmatpush.msra.mxu0 %v2566
        %2654 = vmatmul.f32.gmra.mxu0 %v1483
        %v2655 = vpop.f32.mrf.mxu0
        %v2656 = vadd.f32 %v1444, %v2655
        %2657 = vmatmul.f32.gmra.mxu0 %v1486
        %v2658 = vpop.f32.mrf.mxu0
        %v2659 = vadd.f32 %v1449, %v2658
        %2660 = vmatmul.f32.gmra.mxu0 %v1489
        %v2661 = vpop.f32.mrf.mxu0
        %v2662 = vadd.f32 %v1454, %v2661
        %2663 = vmatmul.f32.gmra.mxu0 %v1492
        %v2664 = vpop.f32.mrf.mxu0
        %v2665 = vadd.f32 %v1459, %v2664
        %2666 = vmatmul.f32.gmra.mxu0 %v1495
        %v2667 = vpop.f32.mrf.mxu0
        %v2668 = vadd.f32 %v1464, %v2667
        %2669 = vmatmul.f32.gmra.mxu0 %v1498
        %v2670 = vpop.f32.mrf.mxu0
        %v2671 = vadd.f32 %v1469, %v2670
        %2672 = vmatmul.f32.gmra.mxu0 %v1501
        %v2673 = vpop.f32.mrf.mxu0
        %v2674 = vadd.f32 %v1474, %v2673
        %2675 = vmatmul.f32.gmra.mxu0 %v1504
        %v2676 = vpop.f32.mrf.mxu0
        %v2677 = vadd.f32 %v1479, %v2676
        %2678 = vdwg.mxu0
        %2679 = vmatpush.msra.mxu0 0.0
        %2680 = vmatpush.msra.mxu0 0.0
        %2681 = vmatpush.msra.mxu0 0.0
        %2682 = vmatpush.msra.mxu0 0.0
        %2683 = vmatpush.msra.mxu0 0.0
        %2684 = vmatpush.msra.mxu0 0.0
        %2685 = vmatpush.msra.mxu0 0.0
        %2686 = vmatpush.msra.mxu0 0.0
        %2687 = vmatpush.msra.mxu0 %v2595
        %2688 = vmatpush.msra.mxu0 %v2591
        %2689 = vmatpush.msra.mxu0 %v2587
        %2690 = vmatpush.msra.mxu0 %v2583
        %2691 = vmatpush.msra.mxu0 %v2579
        %2692 = vmatpush.msra.mxu0 %v2575
        %2693 = vmatpush.msra.mxu0 %v2571
        %2694 = vmatpush.msra.mxu0 %v2567
        %2695 = vmatmul.f32.gmra.mxu0 %v1483
        %v2696 = vpop.f32.mrf.mxu0
        %v2697 = vadd.f32 %v1444, %v2696
        %2698 = vmatmul.f32.gmra.mxu0 %v1486
        %v2699 = vpop.f32.mrf.mxu0
        %v2700 = vadd.f32 %v1449, %v2699
        %2701 = vmatmul.f32.gmra.mxu0 %v1489
        %v2702 = vpop.f32.mrf.mxu0
        %v2703 = vadd.f32 %v1454, %v2702
        %2704 = vmatmul.f32.gmra.mxu0 %v1492
        %v2705 = vpop.f32.mrf.mxu0
        %v2706 = vadd.f32 %v1459, %v2705
        %2707 = vmatmul.f32.gmra.mxu0 %v1495
        %v2708 = vpop.f32.mrf.mxu0
        %v2709 = vadd.f32 %v1464, %v2708
        %2710 = vmatmul.f32.gmra.mxu0 %v1498
        %v2711 = vpop.f32.mrf.mxu0
        %v2712 = vadd.f32 %v1469, %v2711
        %2713 = vmatmul.f32.gmra.mxu0 %v1501
        %v2714 = vpop.f32.mrf.mxu0
        %v2715 = vadd.f32 %v1474, %v2714
        %2716 = vmatmul.f32.gmra.mxu0 %v1504
        %v2717 = vpop.f32.mrf.mxu0
        %v2718 = vadd.f32 %v1479, %v2717
        %2719 = vdwg.mxu0
        %2720 = vmatpush.msra.mxu0 0.0
        %2721 = vmatpush.msra.mxu0 0.0
        %2722 = vmatpush.msra.mxu0 0.0
        %2723 = vmatpush.msra.mxu0 0.0
        %2724 = vmatpush.msra.mxu0 0.0
        %2725 = vmatpush.msra.mxu0 0.0
        %2726 = vmatpush.msra.mxu0 0.0
        %2727 = vmatpush.msra.mxu0 0.0
        %2728 = vmatpush.msra.mxu0 %v2596
        %2729 = vmatpush.msra.mxu0 %v2592
        %2730 = vmatpush.msra.mxu0 %v2588
        %2731 = vmatpush.msra.mxu0 %v2584
        %2732 = vmatpush.msra.mxu0 %v2580
        %2733 = vmatpush.msra.mxu0 %v2576
        %2734 = vmatpush.msra.mxu0 %v2572
        %2735 = vmatpush.msra.mxu0 %v2568
        %2736 = vmatmul.f32.gmra.mxu0 %v1483
        %v2737 = vpop.f32.mrf.mxu0
        %v2738 = vadd.f32 %v1444, %v2737
        %2739 = vmatmul.f32.gmra.mxu0 %v1486
        %v2740 = vpop.f32.mrf.mxu0
        %v2741 = vadd.f32 %v1449, %v2740
        %2742 = vmatmul.f32.gmra.mxu0 %v1489
        %v2743 = vpop.f32.mrf.mxu0
        %v2744 = vadd.f32 %v1454, %v2743
        %2745 = vmatmul.f32.gmra.mxu0 %v1492
        %v2746 = vpop.f32.mrf.mxu0
        %v2747 = vadd.f32 %v1459, %v2746
        %2748 = vmatmul.f32.gmra.mxu0 %v1495
        %v2749 = vpop.f32.mrf.mxu0
        %v2750 = vadd.f32 %v1464, %v2749
        %2751 = vmatmul.f32.gmra.mxu0 %v1498
        %v2752 = vpop.f32.mrf.mxu0
        %v2753 = vadd.f32 %v1469, %v2752
        %2754 = vmatmul.f32.gmra.mxu0 %v1501
        %v2755 = vpop.f32.mrf.mxu0
        %v2756 = vadd.f32 %v1474, %v2755
        %2757 = vmatmul.f32.gmra.mxu0 %v1504
        %v2758 = vpop.f32.mrf.mxu0
        %v2759 = vadd.f32 %v1479, %v2758
        %2760 = vdwg.mxu0
        %v2761 = vmax.f32 %v2615, 0.0
        %v2762 = vmax.f32 %v2656, 0.0
        %v2763 = vmax.f32 %v2697, 0.0
        %v2764 = vmax.f32 %v2738, 0.0
        %v2765 = vmax.f32 %v2618, 0.0
        %v2766 = vmax.f32 %v2659, 0.0
        %v2767 = vmax.f32 %v2700, 0.0
        %v2768 = vmax.f32 %v2741, 0.0
        %v2769 = vmax.f32 %v2621, 0.0
        %v2770 = vmax.f32 %v2662, 0.0
        %v2771 = vmax.f32 %v2703, 0.0
        %v2772 = vmax.f32 %v2744, 0.0
        %v2773 = vmax.f32 %v2624, 0.0
        %v2774 = vmax.f32 %v2665, 0.0
        %v2775 = vmax.f32 %v2706, 0.0
        %v2776 = vmax.f32 %v2747, 0.0
        %v2777 = vmax.f32 %v2627, 0.0
        %v2778 = vmax.f32 %v2668, 0.0
        %v2779 = vmax.f32 %v2709, 0.0
        %v2780 = vmax.f32 %v2750, 0.0
        %v2781 = vmax.f32 %v2630, 0.0
        %v2782 = vmax.f32 %v2671, 0.0
        %v2783 = vmax.f32 %v2712, 0.0
        %v2784 = vmax.f32 %v2753, 0.0
        %v2785 = vmax.f32 %v2633, 0.0
        %v2786 = vmax.f32 %v2674, 0.0
        %v2787 = vmax.f32 %v2715, 0.0
        %v2788 = vmax.f32 %v2756, 0.0
        %v2789 = vmax.f32 %v2636, 0.0
        %v2790 = vmax.f32 %v2677, 0.0
        %v2791 = vmax.f32 %v2718, 0.0
        %v2792 = vmax.f32 %v2759, 0.0
        %2793 = vmatpush.msra.mxu0 0.0
        %2794 = vmatpush.msra.mxu0 0.0
        %2795 = vmatpush.msra.mxu0 0.0
        %2796 = vmatpush.msra.mxu0 0.0
        %2797 = vmatpush.msra.mxu0 0.0
        %2798 = vmatpush.msra.mxu0 0.0
        %2799 = vmatpush.msra.mxu0 0.0
        %2800 = vmatpush.msra.mxu0 0.0
        %2801 = vmatpush.msra.mxu0 %v2789
        %2802 = vmatpush.msra.mxu0 %v2785
        %2803 = vmatpush.msra.mxu0 %v2781
        %2804 = vmatpush.msra.mxu0 %v2777
        %2805 = vmatpush.msra.mxu0 %v2773
        %2806 = vmatpush.msra.mxu0 %v2769
        %2807 = vmatpush.msra.mxu0 %v2765
        %2808 = vmatpush.msra.mxu0 %v2761
        %2809 = vmatmul.f32.gmra.mxu0 %v1708
        %v2810 = vpop.f32.mrf.mxu0
        %v2811 = vadd.f32 %v1705, %v2810
        %2812 = vdwg.mxu0
        %2813 = vmatpush.msra.mxu0 0.0
        %2814 = vmatpush.msra.mxu0 0.0
        %2815 = vmatpush.msra.mxu0 0.0
        %2816 = vmatpush.msra.mxu0 0.0
        %2817 = vmatpush.msra.mxu0 0.0
        %2818 = vmatpush.msra.mxu0 0.0
        %2819 = vmatpush.msra.mxu0 0.0
        %2820 = vmatpush.msra.mxu0 0.0
        %2821 = vmatpush.msra.mxu0 %v2790
        %2822 = vmatpush.msra.mxu0 %v2786
        %2823 = vmatpush.msra.mxu0 %v2782
        %2824 = vmatpush.msra.mxu0 %v2778
        %2825 = vmatpush.msra.mxu0 %v2774
        %2826 = vmatpush.msra.mxu0 %v2770
        %2827 = vmatpush.msra.mxu0 %v2766
        %2828 = vmatpush.msra.mxu0 %v2762
        %2829 = vmatmul.f32.gmra.mxu0 %v1708
        %v2830 = vpop.f32.mrf.mxu0
        %v2831 = vadd.f32 %v1705, %v2830
        %2832 = vdwg.mxu0
        %2833 = vmatpush.msra.mxu0 0.0
        %2834 = vmatpush.msra.mxu0 0.0
        %2835 = vmatpush.msra.mxu0 0.0
        %2836 = vmatpush.msra.mxu0 0.0
        %2837 = vmatpush.msra.mxu0 0.0
        %2838 = vmatpush.msra.mxu0 0.0
        %2839 = vmatpush.msra.mxu0 0.0
        %2840 = vmatpush.msra.mxu0 0.0
        %2841 = vmatpush.msra.mxu0 %v2791
        %2842 = vmatpush.msra.mxu0 %v2787
        %2843 = vmatpush.msra.mxu0 %v2783
        %2844 = vmatpush.msra.mxu0 %v2779
        %2845 = vmatpush.msra.mxu0 %v2775
        %2846 = vmatpush.msra.mxu0 %v2771
        %2847 = vmatpush.msra.mxu0 %v2767
        %2848 = vmatpush.msra.mxu0 %v2763
        %2849 = vmatmul.f32.gmra.mxu0 %v1708
        %v2850 = vpop.f32.mrf.mxu0
        %v2851 = vadd.f32 %v1705, %v2850
        %2852 = vdwg.mxu0
        %2853 = vmatpush.msra.mxu0 0.0
        %2854 = vmatpush.msra.mxu0 0.0
        %2855 = vmatpush.msra.mxu0 0.0
        %2856 = vmatpush.msra.mxu0 0.0
        %2857 = vmatpush.msra.mxu0 0.0
        %2858 = vmatpush.msra.mxu0 0.0
        %2859 = vmatpush.msra.mxu0 0.0
        %2860 = vmatpush.msra.mxu0 0.0
        %2861 = vmatpush.msra.mxu0 %v2792
        %2862 = vmatpush.msra.mxu0 %v2788
        %2863 = vmatpush.msra.mxu0 %v2784
        %2864 = vmatpush.msra.mxu0 %v2780
        %2865 = vmatpush.msra.mxu0 %v2776
        %2866 = vmatpush.msra.mxu0 %v2772
        %2867 = vmatpush.msra.mxu0 %v2768
        %2868 = vmatpush.msra.mxu0 %v2764
        %2869 = vmatmul.f32.gmra.mxu0 %v1708
        %v2870 = vpop.f32.mrf.mxu0
        %v2871 = vadd.f32 %v1705, %v2870
        %2872 = vdwg.mxu0
        %v2873 = vmax.f32 %v2811, 1e-07
        %v2874 = vmax.f32 %v2831, 1e-07
        %v2875 = vmax.f32 %v2851, 1e-07
        %v2876 = vmax.f32 %v2871, 1e-07
        %v2877 = vmin.f32 %v2873, 0.9999999
        %v2878 = vmin.f32 %v2874, 0.9999999
        %v2879 = vmin.f32 %v2875, 0.9999999
        %v2880 = vmin.f32 %v2876, 0.9999999
        %v2881 = vsub.f32 1.0, %v2877
        %v2882 = vsub.f32 1.0, %v2878
        %v2883 = vsub.f32 1.0, %v2879
        %v2884 = vsub.f32 1.0, %v2880
        %v2889 = vrot.slane %v2882, 4
        %v2890 = vrot.slane %v2884, 4
        %v2891 = vsel %vm811, %v2881, %v2889
        %v2892 = vsel %vm811, %v2883, %v2890
        %v2895 = vmul.f32 %v695, %v2891
        %v2896 = vmul.f32 %v697, %v2892
        %2899 = vst [vmem:[#allocation1] ss:$2 sm:$0xff] %v2895
        %s2900 = scalar_lea.vmem [#allocation1], 16
        %2901 = vst [vmem:[%s2900] ss:$2 sm:$0xff] %v2896
        %v2902 = vld.sshfl [vmem:[#allocation1] sm:$0xff pattern:$0x75316420]
        %v2903 = vld.sshfl [vmem:[#allocation1 + $0x8] sm:$0xff pattern:$0x75316420]
        %v2904 = vld.sshfl [vmem:[#allocation1 + $0x10] sm:$0xff pattern:$0x75316420]
        %v2905 = vld.sshfl [vmem:[#allocation1 + $0x18] sm:$0xff pattern:$0x75316420]
        %v2910 = vadd.f32 %v2877, %v2902
        %v2911 = vadd.f32 %v2878, %v2903
        %v2912 = vadd.f32 %v2879, %v2904
        %v2913 = vadd.f32 %v2880, %v2905
        %v2914 = vrcp.pop %v2910
        %v2915 = vmul.f32 %v2910, %v2914
        %v2916 = vsub.f32 1.0, %v2915
        %v2917 = vmul.f32 %v2914, %v2916
        %v2918 = vadd.f32 %v2914, %v2917
        %vm2919 = vweird.f32 %v2910
        %vm2920 = vweird.f32 %v2914
        %vm2921 = vmor %vm2919, %vm2920
        %v2922 = vsel %vm2921, %v2914, %v2918
        %v2923 = vand.u32 2147483647, %v2910
        %vm2924 = vcmp.eq.f32.partialorder %v2923, 8.507059e+37
        %v2925 = vand.u32 %v2910, 2147483648
        %v2926 = vor.u32 1.1754944e-38, %v2925
        %v2927 = vsel %vm2924, %v2926, %v2922
        %v2928 = vmul.f32 %v2877, %v2927
        %v2929 = vrcp.pop %v2911
        %v2930 = vmul.f32 %v2911, %v2929
        %v2931 = vsub.f32 1.0, %v2930
        %v2932 = vmul.f32 %v2929, %v2931
        %v2933 = vadd.f32 %v2929, %v2932
        %vm2934 = vweird.f32 %v2911
        %vm2935 = vweird.f32 %v2929
        %vm2936 = vmor %vm2934, %vm2935
        %v2937 = vsel %vm2936, %v2929, %v2933
        %v2938 = vand.u32 2147483647, %v2911
        %vm2939 = vcmp.eq.f32.partialorder %v2938, 8.507059e+37
        %v2940 = vand.u32 %v2911, 2147483648
        %v2941 = vor.u32 1.1754944e-38, %v2940
        %v2942 = vsel %vm2939, %v2941, %v2937
        %v2943 = vmul.f32 %v2878, %v2942
        %v2944 = vrcp.pop %v2912
        %v2945 = vmul.f32 %v2912, %v2944
        %v2946 = vsub.f32 1.0, %v2945
        %v2947 = vmul.f32 %v2944, %v2946
        %v2948 = vadd.f32 %v2944, %v2947
        %vm2949 = vweird.f32 %v2912
        %vm2950 = vweird.f32 %v2944
        %vm2951 = vmor %vm2949, %vm2950
        %v2952 = vsel %vm2951, %v2944, %v2948
        %v2953 = vand.u32 2147483647, %v2912
        %vm2954 = vcmp.eq.f32.partialorder %v2953, 8.507059e+37
        %v2955 = vand.u32 %v2912, 2147483648
        %v2956 = vor.u32 1.1754944e-38, %v2955
        %v2957 = vsel %vm2954, %v2956, %v2952
        %v2958 = vmul.f32 %v2879, %v2957
        %v2959 = vrcp.pop %v2913
        %v2960 = vmul.f32 %v2913, %v2959
        %v2961 = vsub.f32 1.0, %v2960
        %v2962 = vmul.f32 %v2959, %v2961
        %v2963 = vadd.f32 %v2959, %v2962
        %vm2964 = vweird.f32 %v2913
        %vm2965 = vweird.f32 %v2959
        %vm2966 = vmor %vm2964, %vm2965
        %v2967 = vsel %vm2966, %v2959, %v2963
        %v2968 = vand.u32 2147483647, %v2913
        %vm2969 = vcmp.eq.f32.partialorder %v2968, 8.507059e+37
        %v2970 = vand.u32 %v2913, 2147483648
        %v2971 = vor.u32 1.1754944e-38, %v2970
        %v2972 = vsel %vm2969, %v2971, %v2967
        %v2973 = vmul.f32 %v2880, %v2972
        %v2978 = vrot.slane %v2943, 4
        %v2979 = vrot.slane %v2973, 4
        %v2980 = vsel %vm811, %v2928, %v2978
        %v2981 = vsel %vm811, %v2958, %v2979
        %s2984 = scalar_lea.vmem %s434, 16 [#allocation5]
        %2985 = vst [vmem:[%s2984] sm:$0x77] %v2980
        %2986 = vst [vmem:[%s2984 + $0x8] sm:$0x77] %v2981
        %s2987 = sand.u32 %s279, 1
        %s2988 = sand.u32 %s279, 1
        %s2989 = smul.addr %s2988, 32
        %s2990 = scalar_lea.vmem [#allocation5], %s2989
        // Predicated region
        $region69: #{tpu_custom_call.1} parent=63 // pred_check
          %p2991 = pneg %p289
        $region70: #{tpu_custom_call.1} parent=63 // pred_check_branch
          %2993 = sbr.rel (%p2991) target = $region72
        $region71: #{tpu_custom_call.1} parent=63 // pred_region
          %s2994 = smul.u32 4, %s25
          %s2995 = smul.addr %s2994, 4
          %s2996 = scalar_lea.vmem %s11, %s2995
          // Predicated region
          $region73: #{tpu_custom_call.1} parent=71 // pred_check
            _
          $region74: #{tpu_custom_call.1} parent=71 // pred_check_branch
            %2998 = sbr.rel (0) target = $region76
          $region75: #{tpu_custom_call.1} parent=71 // pred_region
            // Predicated region
            $region77: #{tpu_custom_call.1} parent=75 // pred_check
              _
            $region78: #{tpu_custom_call.1} parent=75 // pred_check_branch
              %3000 = sbr.rel (0) target = $region80
            $region79: #{tpu_custom_call.1} parent=75 // pred_region
              loop: start=0, step=1, limit=1
              $region81: #{tpu_custom_call.1} parent=79 // loop_pre_header
                _
              $region82: #{tpu_custom_call.1} parent=79 // loop_header
                %s3002 = sphi 0, %s3006
                %p3003 = scmp.ge.s32.totalorder %s3002, 1
                %s3007 = sphi %s2990, %s2990
                %s3008 = sphi %s2996, %s2996
              $region83: #{tpu_custom_call.1} parent=79 // loop_header_branch
                %3005 = sbr.rel (%p3003) target = $region87
              $region84: #{tpu_custom_call.1} parent=79 // loop_body
                %v3009 = vld [vmem:[%s3007] sm:$0xff]
                %3010 = vst [vmem:[%s3008] sm:$0xff] %v3009
                %v3011 = vld [vmem:[%s3007 + $0x8] sm:$0xff]
                %3012 = vst [vmem:[%s3008 + $0x8] sm:$0xff] %v3011
                %v3013 = vld [vmem:[%s3007 + $0x10] sm:$0xff]
                %3014 = vst [vmem:[%s3008 + $0x20] sm:$0xff] %v3013
                %v3015 = vld [vmem:[%s3007 + $0x18] sm:$0xff]
                %3016 = vst [vmem:[%s3008 + $0x28] sm:$0xff] %v3015
              $region85: #{tpu_custom_call.1} parent=79 // loop_footer
                %s3006 = sadd.s32 1, %s3002
              $region86: #{tpu_custom_call.1} parent=79 // loop_footer_branch
                %3001 = sbr.rel target = $region82
              $region87: #{tpu_custom_call.1} parent=79 // loop_exit
                _
            $region80: #{tpu_custom_call.1} parent=75 // pred_fallthru
              _
            // Predicated region
            $region88: #{tpu_custom_call.1} parent=75 // pred_check
              _
            $region89: #{tpu_custom_call.1} parent=75 // pred_check_branch
              %3018 = sbr.rel target = $region91
            $region90: #{tpu_custom_call.1} parent=75 // pred_region
              _
            $region91: #{tpu_custom_call.1} parent=75 // pred_fallthru
              _
          $region76: #{tpu_custom_call.1} parent=71 // pred_fallthru
            _
          %3019 = vnop
        $region72: #{tpu_custom_call.1} parent=63 // pred_fallthru
          _
      $region64: #{tpu_custom_call.1} parent=5 // pred_fallthru
        _
      %p3020 = scmp.le.s32.totalorder 2, %s20
      // Predicated region
      $region92: #{tpu_custom_call.1} parent=5 // pred_check
        %p3021 = pneg %p3020
      $region93: #{tpu_custom_call.1} parent=5 // pred_check_branch
        %3023 = sbr.rel (%p3021) target = $region95
      $region94: #{tpu_custom_call.1} parent=5 // pred_region
        %s3024 = ssub.s32 %s20, 2
        // Predicated region
        $region96: #{tpu_custom_call.1} parent=94 // pred_check
          %p3025 = pneg %p295
        $region97: #{tpu_custom_call.1} parent=94 // pred_check_branch
          %3027 = sbr.rel (%p3025) target = $region99
        $region98: #{tpu_custom_call.1} parent=94 // pred_region
          %s3028 = sand.u32 %s280, 1
          %s3029 = sand.u32 %s280, 1
          %s3030 = smul.addr %s3029, 32
          %s3031 = scalar_lea.vmem [#allocation5], %s3030
        $region99: #{tpu_custom_call.1} parent=94 // pred_fallthru
          _
      $region95: #{tpu_custom_call.1} parent=5 // pred_fallthru
        _
    $region6: #{tpu_custom_call.1} parent=1 // loop_footer
      %s24 = sadd.s32 1, %s20
    $region7: #{tpu_custom_call.1} parent=1 // loop_footer_branch
      %19 = sbr.rel target = $region3
    $region8: #{tpu_custom_call.1} parent=1 // loop_exit
      _
    %3032 = vsyncpa [#allocation4], 1
    %s3033 = scalar_lea.sflag [#allocation4], 1
    %3034 = vsyncpa %s3033, 1

</llo_original>
